<compile_context>
chip_gen: v6e
topology: v6e:2x2x1
jax: 0.10.0
libtpu: 0.0.40
codegen_flags: <defaults>
</compile_context>

<pallas_src>
import jax
import jax.numpy as jnp
from jax import lax
from jax.experimental import pallas as pl
from jax.experimental.pallas import tpu as pltpu


# ----------------------------------------------------------------------------
# Fused encoder kernel builder.
# ----------------------------------------------------------------------------
def _make_encoder_kernel(n_layers, ndirs, T, Bp, H, compute_dtype):
    """Build the kernel body for a stacked (optionally bidirectional) GRU.

    Ref order (inputs, then output, then scratch):
      x_ref:   (T*Bp, D0)                     time-major input, batch padded to Bp
      per layer l:
        wi_l:  (D_in_l, ndirs*3H)             fused input weights (cols: dir-major, gates r,z,n)
        wh_l:  (ndirs*H, ndirs*3H)            block-diagonal hidden weights
        bi_l:  (1, ndirs*3H)                  b_i* (+ b_h{r,z} folded)
        bh_l:  (1, ndirs*3H)                  zeros for r,z lanes; b_hn for n lanes
      out_ref: (T*Bp, ndirs*H)
      gi_ref:  (T*Bp, ndirs*3H) scratch       hoisted input projections (reused per layer)
      ys_ref:  (T*Bp, ndirs*H)  scratch       intermediate layer output slab
    """
    G3 = 3 * H

    def kernel(*refs):
        x_ref = refs[0]
        w_refs = refs[1:1 + 4 * n_layers]
        out_ref = refs[1 + 4 * n_layers]
        gi_ref, ys_ref = refs[2 + 4 * n_layers:]

        for layer in range(n_layers):
            wi_ref, wh_ref, bi_ref, bh_ref = w_refs[4 * layer:4 * layer + 4]
            # Last layer's recurrence writes straight to the output slab.
            dest_ref = out_ref if layer == n_layers - 1 else ys_ref

            # ---- prologue: ONE fused input projection for the whole sequence ----
            if layer == 0:
                src = x_ref[...]                          # already compute_dtype
            else:
                src = ys_ref[...].astype(compute_dtype)
            gi_ref[...] = (jnp.dot(src, wi_ref[...],
                                   preferred_element_type=jnp.float32)
                           + bi_ref[...])

            # ---- recurrence: one fused hidden matmul + VPU gate math per step ----
            # Hoist loop-invariant loads / broadcasts out of the time loop.
            wh = wh_ref[...].astype(compute_dtype)        # (ndirs*H, ndirs*3H) block-diag
            bh = jnp.broadcast_to(bh_ref[...], (Bp, ndirs * G3))  # b_hn (n lanes only)

            def step(t, h):
                # h: (Bp, ndirs*H) f32 carry (kept in vregs, not VMEM).
                hc = h.astype(compute_dtype)
                gh = jnp.dot(hc, wh, preferred_element_type=jnp.float32) + bh
                h_news = []
                for d in range(ndirs):
                    # fwd walks 0..T-1; bwd walks T-1..0 (no flip copies).
                    tt = t if d == 0 else T - 1 - t
                    row = pl.multiple_of(tt * Bp, Bp)
                    gi_d = gi_ref[pl.ds(row, Bp), pl.ds(d * G3, G3)]
                    gh_d = gh[:, d * G3:(d + 1) * G3]
                    r = jax.nn.sigmoid(gi_d[:, :H] + gh_d[:, :H])
                    z = jax.nn.sigmoid(gi_d[:, H:2 * H] + gh_d[:, H:2 * H])
                    n = jnp.tanh(gi_d[:, 2 * H:] + r * gh_d[:, 2 * H:])
                    h_d = h[:, d * H:(d + 1) * H]
                    h_new = (1.0 - z) * n + z * h_d
                    dest_ref[pl.ds(row, Bp), pl.ds(d * H, H)] = h_new
                    h_news.append(h_new)
                return h_news[0] if ndirs == 1 else jnp.concatenate(h_news, axis=-1)

            h0 = jnp.zeros((Bp, ndirs * H), jnp.float32)
            lax.fori_loop(0, T, step, h0,
                          unroll=(True if T <= 8 else 8))   # cap unroll: vreg pressure

    return kernel


# ----------------------------------------------------------------------------
# Weight packing + jitted wrapper.
# ----------------------------------------------------------------------------
def _pack_layer(layer_params, dirs, H, compute_dtype):
    """Pack GRU weights into fused / block-diagonal slabs for the kernel."""
    ndirs = len(dirs)
    wi_cols, wh_blocks, bi_cols, bh_cols = [], [], [], []
    for dname in dirs:
        w_ih, w_hh, b_ih, b_hh = layer_params[dname]   # (D_in,3H),(H,3H),(3H,),(3H,)
        wi_cols.append(w_ih)                           # gate order r,z,n along columns
        wh_blocks.append(w_hh)
        bi_cols.append(jnp.concatenate([
            b_ih[0 * H:1 * H] + b_hh[0 * H:1 * H],     # r: fold b_hr
            b_ih[1 * H:2 * H] + b_hh[1 * H:2 * H],     # z: fold b_hz
            b_ih[2 * H:3 * H],                         # n: input bias only
        ]))
        bh_cols.append(jnp.concatenate([
            jnp.zeros((2 * H,), jnp.float32),          # r,z lanes: nothing
            b_hh[2 * H:3 * H],                         # n lanes: b_hn (stays inside r*(.))
        ]))

    wi = jnp.concatenate(wi_cols, axis=1).astype(compute_dtype)   # (D_in, ndirs*3H)

    # Block-diagonal hidden weights: one MXU push covers both directions & all gates.
    wh = jnp.zeros((ndirs * H, ndirs * 3 * H), jnp.float32)
    for d, blk in enumerate(wh_blocks):
        wh = wh.at[d * H:(d + 1) * H, d * 3 * H:(d + 1) * 3 * H].set(blk)
    wh = wh.astype(compute_dtype)

    bi = jnp.concatenate(bi_cols).reshape(1, ndirs * 3 * H).astype(jnp.float32)
    bh = jnp.concatenate(bh_cols).reshape(1, ndirs * 3 * H).astype(jnp.float32)
    return wi, wh, bi, bh


def make_gru_encoder(params_weights, use_bigru, compute_dtype=jnp.float32):
    """Returns jitted forward(x: (B, T, d_model)) -> (B, T, (1+use_bigru)*d_model).

    compute_dtype=jnp.bfloat16 is recommended on v6e/v7x (bf16 matmul operands,
    f32 accumulation / f32 gate math / f32 hidden carry). Default f32 = exact parity.
    """
    ndirs = 2 if use_bigru else 1
    dirs = ["fwd", "bwd"] if use_bigru else ["fwd"]
    n_layers = len(params_weights)
    H = params_weights[0]["fwd"][1].shape[0]           # hidden size from W_hh

    packed = []
    for lp in params_weights:
        packed.extend(_pack_layer(lp, dirs, H, compute_dtype))
    packed = tuple(packed)

    @jax.jit
    def forward(x_btd):
        B, T, D = x_btd.shape
        Bp = ((B + 7) // 8) * 8                        # pad batch to a sublane multiple
        x = jnp.transpose(x_btd, (1, 0, 2))            # (T, B, D) time-major
        x = jnp.pad(x, ((0, 0), (0, Bp - B), (0, 0)))
        x2d = x.reshape(T * Bp, D).astype(compute_dtype)

        kernel = _make_encoder_kernel(n_layers, ndirs, T, Bp, H, compute_dtype)
        n_in = 1 + 4 * n_layers
        out = pl.pallas_call(
            kernel,
            out_shape=jax.ShapeDtypeStruct((T * Bp, ndirs * H), jnp.float32),
            in_specs=[pl.BlockSpec(memory_space=pltpu.MemorySpace.VMEM)] * n_in,
            out_specs=pl.BlockSpec(memory_space=pltpu.MemorySpace.VMEM),
            scratch_shapes=[
                # gi: hoisted fused input projection (reused across layers)
                pltpu.VMEM((T * Bp, ndirs * 3 * H), jnp.float32),
                # ys: intermediate layer output slab (last layer writes out_ref directly)
                pltpu.VMEM((T * Bp, ndirs * H), jnp.float32),
            ],
        )(x2d, *packed)

        out = out.reshape(T, Bp, ndirs * H)[:, :B, :]
        return jnp.transpose(out, (1, 0, 2))           # (B, T, ndirs*H)

    return forward


# ----------------------------------------------------------------------------
# Pure-JAX reference (lax.scan) for correctness checking.
# ----------------------------------------------------------------------------
def _ref_direction(x_tbd, w_ih, w_hh, b_ih, b_hh):
    H = w_hh.shape[0]

    def step(h, x_t):
        gi = x_t @ w_ih + b_ih
        gh = h @ w_hh + b_hh
        r = jax.nn.sigmoid(gi[:, :H] + gh[:, :H])
        z = jax.nn.sigmoid(gi[:, H:2 * H] + gh[:, H:2 * H])
        n = jnp.tanh(gi[:, 2 * H:] + r * gh[:, 2 * H:])
        h_new = (1.0 - z) * n + z * h
        return h_new, h_new

    h0 = jnp.zeros((x_tbd.shape[1], H), jnp.float32)
    _, ys = jax.lax.scan(step, h0, x_tbd)
    return ys


def _ref_forward(T_in, params_weights, use_bigru):
    x = jnp.transpose(T_in, (1, 0, 2)).astype(jnp.float32)
    for layer_params in params_weights:
        outs = [_ref_direction(x, *layer_params["fwd"])]
        if use_bigru:
            outs.append(jnp.flip(_ref_direction(jnp.flip(x, 0),
                                                *layer_params["bwd"]), 0))
        x = jnp.concatenate(outs, axis=-1)
    return jnp.transpose(x, (1, 0, 2))


# ----------------------------------------------------------------------------
# Deterministic parameter construction (PyTorch-style uniform(-1/sqrt(H), 1/sqrt(H)))
# ----------------------------------------------------------------------------
def init_gru_params(key, d_model, n_layers, use_bigru):
    H = d_model
    k = 1.0 / jnp.sqrt(jnp.float32(H))
    dirs = ["fwd", "bwd"] if use_bigru else ["fwd"]
    params = []
    for layer in range(n_layers):
        d_in = d_model if layer == 0 else d_model * (2 if use_bigru else 1)
        layer_p = {}
        for d in dirs:
            key, k1, k2, k3, k4 = jax.random.split(key, 5)
            w_ih = jax.random.uniform(k1, (d_in, 3 * H), jnp.float32, -k, k)
            w_hh = jax.random.uniform(k2, (H, 3 * H), jnp.float32, -k, k)
            b_ih = jax.random.uniform(k3, (3 * H,), jnp.float32, -k, k)
            b_hh = jax.random.uniform(k4, (3 * H,), jnp.float32, -k, k)
            layer_p[d] = (w_ih, w_hh, b_ih, b_hh)
        params.append(layer_p)
    return params


if __name__ == "__main__":
    # Module params: d_model=32, n_layers=2, dropout=0.0 (eval), use_bigru=True
    d_model = 32
    n_layers = 2
    use_bigru = True
    batch_size = 2
    token_len = 8

    key = jax.random.PRNGKey(0)
    key, k_x = jax.random.split(key)
    T_tokens = jax.random.normal(k_x, (batch_size, token_len, d_model), jnp.float32)
    weights = init_gru_params(key, d_model, n_layers, use_bigru)

    # Bidirectional, 2-layer encoder (exact f32 path; pass compute_dtype=jnp.bfloat16
    # on v6e/v7x for bf16 matmul operands with f32 accumulation / f32 gate math).
    fwd_fn = make_gru_encoder(weights, use_bigru, compute_dtype=jnp.float32)
    out = jax.block_until_ready(fwd_fn(T_tokens))
    expected_shape = (batch_size, token_len, (1 + int(use_bigru)) * d_model)
    assert out.shape == expected_shape, (out.shape, expected_shape)

    ref = jax.block_until_ready(_ref_forward(T_tokens, weights, use_bigru))
    max_err = float(jnp.max(jnp.abs(out - ref)))
    assert jnp.allclose(out, ref, atol=1e-5, rtol=1e-5), max_err

    # Also exercise the unidirectional code path.
    weights_uni = init_gru_params(jax.random.PRNGKey(1), d_model, n_layers, False)
    fwd_uni = make_gru_encoder(weights_uni, False, compute_dtype=jnp.float32)
    out_uni = jax.block_until_ready(fwd_uni(T_tokens))
    ref_uni = jax.block_until_ready(_ref_forward(T_tokens, weights_uni, False))
    assert out_uni.shape == (batch_size, token_len, d_model)
    assert jnp.allclose(out_uni, ref_uni, atol=1e-5, rtol=1e-5), \
        float(jnp.max(jnp.abs(out_uni - ref_uni)))

    print("KERNEL_OK")
</pallas_src>

<mosaic_0001>
module attributes {stable_mosaic.version = 11 : i64} {
  func.func @kernel(%arg0: memref<64x32xf32, #tpu.memory_space<vmem>>, %arg1: memref<32x192xf32, #tpu.memory_space<vmem>>, %arg2: memref<64x192xf32, #tpu.memory_space<vmem>>, %arg3: memref<1x192xf32, #tpu.memory_space<vmem>>, %arg4: memref<1x192xf32, #tpu.memory_space<vmem>>, %arg5: memref<64x192xf32, #tpu.memory_space<vmem>>, %arg6: memref<64x192xf32, #tpu.memory_space<vmem>>, %arg7: memref<1x192xf32, #tpu.memory_space<vmem>>, %arg8: memref<1x192xf32, #tpu.memory_space<vmem>>, %arg9: memref<64x64xf32, #tpu.memory_space<vmem>>, %arg10: memref<64x192xf32, #tpu.memory_space<vmem>>, %arg11: memref<64x64xf32, #tpu.memory_space<vmem>>) attributes {dimension_semantics = [], scalar_prefetch = 0 : i64, scratch_operands = 2 : i64, tpu.core_type = #tpu.core_type<tc>} {
    %c0 = arith.constant 0 : index
    %c0_0 = arith.constant 0 : index
    %0 = vector.load %arg0[%c0, %c0_0] : memref<64x32xf32, #tpu.memory_space<vmem>>, vector<64x32xf32>
    %c0_1 = arith.constant 0 : index
    %c0_2 = arith.constant 0 : index
    %1 = vector.load %arg1[%c0_1, %c0_2] : memref<32x192xf32, #tpu.memory_space<vmem>>, vector<32x192xf32>
    %cst = arith.constant dense<0.000000e+00> : vector<64x192xf32>
    %2 = tpu.matmul %0, %1, %cst {dimension_numbers = #tpu.dot_dimension_numbers<[1], [0], [0], [1], [0, 0, 1, 1], [], []>} : vector<64x32xf32>, vector<32x192xf32>, vector<64x192xf32> -> vector<64x192xf32>
    %c0_3 = arith.constant 0 : index
    %c0_4 = arith.constant 0 : index
    %3 = vector.load %arg3[%c0_3, %c0_4] : memref<1x192xf32, #tpu.memory_space<vmem>>, vector<1x192xf32>
    %4 = vector.broadcast %3 : vector<1x192xf32> to vector<64x192xf32>
    %5 = arith.addf %2, %4 : vector<64x192xf32>
    %c0_5 = arith.constant 0 : index
    %c0_6 = arith.constant 0 : index
    %6 = vector.load %arg10[%c0_5, %c0_6] : memref<64x192xf32, #tpu.memory_space<vmem>>, vector<64x192xf32>
    tpu.vector_store %arg10[%c0_5, %c0_6], %5 {strides = array<i32>} : memref<64x192xf32, #tpu.memory_space<vmem>>, vector<64x192xf32>,
    %c0_7 = arith.constant 0 : index
    %c0_8 = arith.constant 0 : index
    %7 = vector.load %arg2[%c0_7, %c0_8] : memref<64x192xf32, #tpu.memory_space<vmem>>, vector<64x192xf32>
    %c0_9 = arith.constant 0 : index
    %c0_10 = arith.constant 0 : index
    %8 = vector.load %arg4[%c0_9, %c0_10] : memref<1x192xf32, #tpu.memory_space<vmem>>, vector<1x192xf32>
    %9 = vector.shape_cast %8 : vector<1x192xf32> to vector<1x192xf32>
    %10 = vector.broadcast %9 : vector<1x192xf32> to vector<8x192xf32>
    %cst_11 = arith.constant 0.000000e+00 : f32
    %11 = vector.broadcast %cst_11 : f32 to vector<8x64xf32>
    %c0_i32 = arith.constant 0 : i32
    %cst_12 = arith.constant dense<0.000000e+00> : vector<8x192xf32>
    %12 = tpu.matmul %11, %7, %cst_12 {dimension_numbers = #tpu.dot_dimension_numbers<[1], [0], [0], [1], [0, 0, 1, 1], [], []>} : vector<8x64xf32>, vector<64x192xf32>, vector<8x192xf32> -> vector<8x192xf32>
    %13 = arith.addf %12, %10 : vector<8x192xf32>
    %c8_i32 = arith.constant 8 : i32
    %14 = arith.muli %c0_i32, %c8_i32 : i32
    %15 = tpu.assume_multiple %14, 8 : i32
    %16 = arith.index_cast %15 : i32 to index
    %c0_13 = arith.constant 0 : index
    %17 = vector.load %arg10[%16, %c0_13] : memref<64x192xf32, #tpu.memory_space<vmem>>, vector<8x96xf32>
    %18 = vector.extract_strided_slice %13 {offsets = [0, 0], sizes = [8, 96], strides = [1, 1]} : vector<8x192xf32> to vector<8x96xf32>
    %19 = vector.extract_strided_slice %17 {offsets = [0, 0], sizes = [8, 32], strides = [1, 1]} : vector<8x96xf32> to vector<8x32xf32>
    %20 = vector.extract_strided_slice %18 {offsets = [0, 0], sizes = [8, 32], strides = [1, 1]} : vector<8x96xf32> to vector<8x32xf32>
    %21 = arith.addf %19, %20 : vector<8x32xf32>
    %22 = arith.negf %21 : vector<8x32xf32>
    %23 = math.exp %22 : vector<8x32xf32>
    %cst_14 = arith.constant 1.000000e+00 : f32
    %24 = vector.broadcast %cst_14 : f32 to vector<8x32xf32>
    %25 = arith.addf %24, %23 : vector<8x32xf32>
    %26 = arith.divf %24, %25 : vector<8x32xf32>
    %27 = vector.extract_strided_slice %17 {offsets = [0, 32], sizes = [8, 32], strides = [1, 1]} : vector<8x96xf32> to vector<8x32xf32>
    %28 = vector.extract_strided_slice %18 {offsets = [0, 32], sizes = [8, 32], strides = [1, 1]} : vector<8x96xf32> to vector<8x32xf32>
    %29 = arith.addf %27, %28 : vector<8x32xf32>
    %30 = arith.negf %29 : vector<8x32xf32>
    %31 = math.exp %30 : vector<8x32xf32>
    %cst_15 = arith.constant 1.000000e+00 : f32
    %32 = vector.broadcast %cst_15 : f32 to vector<8x32xf32>
    %33 = arith.addf %32, %31 : vector<8x32xf32>
    %34 = arith.divf %32, %33 : vector<8x32xf32>
    %35 = vector.extract_strided_slice %17 {offsets = [0, 64], sizes = [8, 32], strides = [1, 1]} : vector<8x96xf32> to vector<8x32xf32>
    %36 = vector.extract_strided_slice %18 {offsets = [0, 64], sizes = [8, 32], strides = [1, 1]} : vector<8x96xf32> to vector<8x32xf32>
    %37 = arith.mulf %26, %36 : vector<8x32xf32>
    %38 = arith.addf %35, %37 : vector<8x32xf32>
    %39 = math.tanh %38 : vector<8x32xf32>
    %40 = vector.extract_strided_slice %11 {offsets = [0, 0], sizes = [8, 32], strides = [1, 1]} : vector<8x64xf32> to vector<8x32xf32>
    %cst_16 = arith.constant 1.000000e+00 : f32
    %41 = vector.broadcast %cst_16 : f32 to vector<8x32xf32>
    %42 = arith.subf %41, %34 : vector<8x32xf32>
    %43 = arith.mulf %42, %39 : vector<8x32xf32>
    %44 = arith.mulf %34, %40 : vector<8x32xf32>
    %45 = arith.addf %43, %44 : vector<8x32xf32>
    %46 = arith.index_cast %15 : i32 to index
    %c0_17 = arith.constant 0 : index
    %47 = vector.load %arg11[%46, %c0_17] : memref<64x64xf32, #tpu.memory_space<vmem>>, vector<8x32xf32>
    tpu.vector_store %arg11[%46, %c0_17], %45 {strides = array<i32>} : memref<64x64xf32, #tpu.memory_space<vmem>>, vector<8x32xf32>,
    %c7_i32 = arith.constant 7 : i32
    %48 = arith.subi %c7_i32, %c0_i32 : i32
    %c8_i32_18 = arith.constant 8 : i32
    %49 = arith.muli %48, %c8_i32_18 : i32
    %50 = tpu.assume_multiple %49, 8 : i32
    %51 = arith.index_cast %50 : i32 to index
    %c96 = arith.constant 96 : index
    %52 = vector.load %arg10[%51, %c96] : memref<64x192xf32, #tpu.memory_space<vmem>>, vector<8x96xf32>
    %53 = vector.extract_strided_slice %13 {offsets = [0, 96], sizes = [8, 96], strides = [1, 1]} : vector<8x192xf32> to vector<8x96xf32>
    %54 = vector.extract_strided_slice %52 {offsets = [0, 0], sizes = [8, 32], strides = [1, 1]} : vector<8x96xf32> to vector<8x32xf32>
    %55 = vector.extract_strided_slice %53 {offsets = [0, 0], sizes = [8, 32], strides = [1, 1]} : vector<8x96xf32> to vector<8x32xf32>
    %56 = arith.addf %54, %55 : vector<8x32xf32>
    %57 = arith.negf %56 : vector<8x32xf32>
    %58 = math.exp %57 : vector<8x32xf32>
    %cst_19 = arith.constant 1.000000e+00 : f32
    %59 = vector.broadcast %cst_19 : f32 to vector<8x32xf32>
    %60 = arith.addf %59, %58 : vector<8x32xf32>
    %61 = arith.divf %59, %60 : vector<8x32xf32>
    %62 = vector.extract_strided_slice %52 {offsets = [0, 32], sizes = [8, 32], strides = [1, 1]} : vector<8x96xf32> to vector<8x32xf32>
    %63 = vector.extract_strided_slice %53 {offsets = [0, 32], sizes = [8, 32], strides = [1, 1]} : vector<8x96xf32> to vector<8x32xf32>
    %64 = arith.addf %62, %63 : vector<8x32xf32>
    %65 = arith.negf %64 : vector<8x32xf32>
    %66 = math.exp %65 : vector<8x32xf32>
    %cst_20 = arith.constant 1.000000e+00 : f32
    %67 = vector.broadcast %cst_20 : f32 to vector<8x32xf32>
    %68 = arith.addf %67, %66 : vector<8x32xf32>
    %69 = arith.divf %67, %68 : vector<8x32xf32>
    %70 = vector.extract_strided_slice %52 {offsets = [0, 64], sizes = [8, 32], strides = [1, 1]} : vector<8x96xf32> to vector<8x32xf32>
    %71 = vector.extract_strided_slice %53 {offsets = [0, 64], sizes = [8, 32], strides = [1, 1]} : vector<8x96xf32> to vector<8x32xf32>
    %72 = arith.mulf %61, %71 : vector<8x32xf32>
    %73 = arith.addf %70, %72 : vector<8x32xf32>
    %74 = math.tanh %73 : vector<8x32xf32>
    %75 = vector.extract_strided_slice %11 {offsets = [0, 32], sizes = [8, 32], strides = [1, 1]} : vector<8x64xf32> to vector<8x32xf32>
    %cst_21 = arith.constant 1.000000e+00 : f32
    %76 = vector.broadcast %cst_21 : f32 to vector<8x32xf32>
    %77 = arith.subf %76, %69 : vector<8x32xf32>
    %78 = arith.mulf %77, %74 : vector<8x32xf32>
    %79 = arith.mulf %69, %75 : vector<8x32xf32>
    %80 = arith.addf %78, %79 : vector<8x32xf32>
    %81 = arith.index_cast %50 : i32 to index
    %c32 = arith.constant 32 : index
    %82 = vector.load %arg11[%81, %c32] : memref<64x64xf32, #tpu.memory_space<vmem>>, vector<8x32xf32>
    tpu.vector_store %arg11[%81, %c32], %80 {strides = array<i32>} : memref<64x64xf32, #tpu.memory_space<vmem>>, vector<8x32xf32>,
    %83 = tpu.concatenate %45, %80 in 1 : vector<8x32xf32>, vector<8x32xf32> -> vector<8x64xf32>
    %c1_i32 = arith.constant 1 : i32
    %cst_22 = arith.constant dense<0.000000e+00> : vector<8x192xf32>
    %84 = tpu.matmul %83, %7, %cst_22 {dimension_numbers = #tpu.dot_dimension_numbers<[1], [0], [0], [1], [0, 0, 1, 1], [], []>} : vector<8x64xf32>, vector<64x192xf32>, vector<8x192xf32> -> vector<8x192xf32>
    %85 = arith.addf %84, %10 : vector<8x192xf32>
    %c8_i32_23 = arith.constant 8 : i32
    %86 = arith.muli %c1_i32, %c8_i32_23 : i32
    %87 = tpu.assume_multiple %86, 8 : i32
    %88 = arith.index_cast %87 : i32 to index
    %c0_24 = arith.constant 0 : index
    %89 = vector.load %arg10[%88, %c0_24] : memref<64x192xf32, #tpu.memory_space<vmem>>, vector<8x96xf32>
    %90 = vector.extract_strided_slice %85 {offsets = [0, 0], sizes = [8, 96], strides = [1, 1]} : vector<8x192xf32> to vector<8x96xf32>
    %91 = vector.extract_strided_slice %89 {offsets = [0, 0], sizes = [8, 32], strides = [1, 1]} : vector<8x96xf32> to vector<8x32xf32>
    %92 = vector.extract_strided_slice %90 {offsets = [0, 0], sizes = [8, 32], strides = [1, 1]} : vector<8x96xf32> to vector<8x32xf32>
    %93 = arith.addf %91, %92 : vector<8x32xf32>
    %94 = arith.negf %93 : vector<8x32xf32>
    %95 = math.exp %94 : vector<8x32xf32>
    %cst_25 = arith.constant 1.000000e+00 : f32
    %96 = vector.broadcast %cst_25 : f32 to vector<8x32xf32>
    %97 = arith.addf %96, %95 : vector<8x32xf32>
    %98 = arith.divf %96, %97 : vector<8x32xf32>
    %99 = vector.extract_strided_slice %89 {offsets = [0, 32], sizes = [8, 32], strides = [1, 1]} : vector<8x96xf32> to vector<8x32xf32>
    %100 = vector.extract_strided_slice %90 {offsets = [0, 32], sizes = [8, 32], strides = [1, 1]} : vector<8x96xf32> to vector<8x32xf32>
    %101 = arith.addf %99, %100 : vector<8x32xf32>
    %102 = arith.negf %101 : vector<8x32xf32>
    %103 = math.exp %102 : vector<8x32xf32>
    %cst_26 = arith.constant 1.000000e+00 : f32
    %104 = vector.broadcast %cst_26 : f32 to vector<8x32xf32>
    %105 = arith.addf %104, %103 : vector<8x32xf32>
    %106 = arith.divf %104, %105 : vector<8x32xf32>
    %107 = vector.extract_strided_slice %89 {offsets = [0, 64], sizes = [8, 32], strides = [1, 1]} : vector<8x96xf32> to vector<8x32xf32>
    %108 = vector.extract_strided_slice %90 {offsets = [0, 64], sizes = [8, 32], strides = [1, 1]} : vector<8x96xf32> to vector<8x32xf32>
    %109 = arith.mulf %98, %108 : vector<8x32xf32>
    %110 = arith.addf %107, %109 : vector<8x32xf32>
    %111 = math.tanh %110 : vector<8x32xf32>
    %112 = vector.extract_strided_slice %83 {offsets = [0, 0], sizes = [8, 32], strides = [1, 1]} : vector<8x64xf32> to vector<8x32xf32>
    %cst_27 = arith.constant 1.000000e+00 : f32
    %113 = vector.broadcast %cst_27 : f32 to vector<8x32xf32>
    %114 = arith.subf %113, %106 : vector<8x32xf32>
    %115 = arith.mulf %114, %111 : vector<8x32xf32>
    %116 = arith.mulf %106, %112 : vector<8x32xf32>
    %117 = arith.addf %115, %116 : vector<8x32xf32>
    %118 = arith.index_cast %87 : i32 to index
    %c0_28 = arith.constant 0 : index
    %119 = vector.load %arg11[%118, %c0_28] : memref<64x64xf32, #tpu.memory_space<vmem>>, vector<8x32xf32>
    tpu.vector_store %arg11[%118, %c0_28], %117 {strides = array<i32>} : memref<64x64xf32, #tpu.memory_space<vmem>>, vector<8x32xf32>,
    %c7_i32_29 = arith.constant 7 : i32
    %120 = arith.subi %c7_i32_29, %c1_i32 : i32
    %c8_i32_30 = arith.constant 8 : i32
    %121 = arith.muli %120, %c8_i32_30 : i32
    %122 = tpu.assume_multiple %121, 8 : i32
    %123 = arith.index_cast %122 : i32 to index
    %c96_31 = arith.constant 96 : index
    %124 = vector.load %arg10[%123, %c96_31] : memref<64x192xf32, #tpu.memory_space<vmem>>, vector<8x96xf32>
    %125 = vector.extract_strided_slice %85 {offsets = [0, 96], sizes = [8, 96], strides = [1, 1]} : vector<8x192xf32> to vector<8x96xf32>
    %126 = vector.extract_strided_slice %124 {offsets = [0, 0], sizes = [8, 32], strides = [1, 1]} : vector<8x96xf32> to vector<8x32xf32>
    %127 = vector.extract_strided_slice %125 {offsets = [0, 0], sizes = [8, 32], strides = [1, 1]} : vector<8x96xf32> to vector<8x32xf32>
    %128 = arith.addf %126, %127 : vector<8x32xf32>
    %129 = arith.negf %128 : vector<8x32xf32>
    %130 = math.exp %129 : vector<8x32xf32>
    %cst_32 = arith.constant 1.000000e+00 : f32
    %131 = vector.broadcast %cst_32 : f32 to vector<8x32xf32>
    %132 = arith.addf %131, %130 : vector<8x32xf32>
    %133 = arith.divf %131, %132 : vector<8x32xf32>
    %134 = vector.extract_strided_slice %124 {offsets = [0, 32], sizes = [8, 32], strides = [1, 1]} : vector<8x96xf32> to vector<8x32xf32>
    %135 = vector.extract_strided_slice %125 {offsets = [0, 32], sizes = [8, 32], strides = [1, 1]} : vector<8x96xf32> to vector<8x32xf32>
    %136 = arith.addf %134, %135 : vector<8x32xf32>
    %137 = arith.negf %136 : vector<8x32xf32>
    %138 = math.exp %137 : vector<8x32xf32>
    %cst_33 = arith.constant 1.000000e+00 : f32
    %139 = vector.broadcast %cst_33 : f32 to vector<8x32xf32>
    %140 = arith.addf %139, %138 : vector<8x32xf32>
    %141 = arith.divf %139, %140 : vector<8x32xf32>
    %142 = vector.extract_strided_slice %124 {offsets = [0, 64], sizes = [8, 32], strides = [1, 1]} : vector<8x96xf32> to vector<8x32xf32>
    %143 = vector.extract_strided_slice %125 {offsets = [0, 64], sizes = [8, 32], strides = [1, 1]} : vector<8x96xf32> to vector<8x32xf32>
    %144 = arith.mulf %133, %143 : vector<8x32xf32>
    %145 = arith.addf %142, %144 : vector<8x32xf32>
    %146 = math.tanh %145 : vector<8x32xf32>
    %147 = vector.extract_strided_slice %83 {offsets = [0, 32], sizes = [8, 32], strides = [1, 1]} : vector<8x64xf32> to vector<8x32xf32>
    %cst_34 = arith.constant 1.000000e+00 : f32
    %148 = vector.broadcast %cst_34 : f32 to vector<8x32xf32>
    %149 = arith.subf %148, %141 : vector<8x32xf32>
    %150 = arith.mulf %149, %146 : vector<8x32xf32>
    %151 = arith.mulf %141, %147 : vector<8x32xf32>
    %152 = arith.addf %150, %151 : vector<8x32xf32>
    %153 = arith.index_cast %122 : i32 to index
    %c32_35 = arith.constant 32 : index
    %154 = vector.load %arg11[%153, %c32_35] : memref<64x64xf32, #tpu.memory_space<vmem>>, vector<8x32xf32>
    tpu.vector_store %arg11[%153, %c32_35], %152 {strides = array<i32>} : memref<64x64xf32, #tpu.memory_space<vmem>>, vector<8x32xf32>,
    %155 = tpu.concatenate %117, %152 in 1 : vector<8x32xf32>, vector<8x32xf32> -> vector<8x64xf32>
    %c2_i32 = arith.constant 2 : i32
    %cst_36 = arith.constant dense<0.000000e+00> : vector<8x192xf32>
    %156 = tpu.matmul %155, %7, %cst_36 {dimension_numbers = #tpu.dot_dimension_numbers<[1], [0], [0], [1], [0, 0, 1, 1], [], []>} : vector<8x64xf32>, vector<64x192xf32>, vector<8x192xf32> -> vector<8x192xf32>
    %157 = arith.addf %156, %10 : vector<8x192xf32>
    %c8_i32_37 = arith.constant 8 : i32
    %158 = arith.muli %c2_i32, %c8_i32_37 : i32
    %159 = tpu.assume_multiple %158, 8 : i32
    %160 = arith.index_cast %159 : i32 to index
    %c0_38 = arith.constant 0 : index
    %161 = vector.load %arg10[%160, %c0_38] : memref<64x192xf32, #tpu.memory_space<vmem>>, vector<8x96xf32>
    %162 = vector.extract_strided_slice %157 {offsets = [0, 0], sizes = [8, 96], strides = [1, 1]} : vector<8x192xf32> to vector<8x96xf32>
    %163 = vector.extract_strided_slice %161 {offsets = [0, 0], sizes = [8, 32], strides = [1, 1]} : vector<8x96xf32> to vector<8x32xf32>
    %164 = vector.extract_strided_slice %162 {offsets = [0, 0], sizes = [8, 32], strides = [1, 1]} : vector<8x96xf32> to vector<8x32xf32>
    %165 = arith.addf %163, %164 : vector<8x32xf32>
    %166 = arith.negf %165 : vector<8x32xf32>
    %167 = math.exp %166 : vector<8x32xf32>
    %cst_39 = arith.constant 1.000000e+00 : f32
    %168 = vector.broadcast %cst_39 : f32 to vector<8x32xf32>
    %169 = arith.addf %168, %167 : vector<8x32xf32>
    %170 = arith.divf %168, %169 : vector<8x32xf32>
    %171 = vector.extract_strided_slice %161 {offsets = [0, 32], sizes = [8, 32], strides = [1, 1]} : vector<8x96xf32> to vector<8x32xf32>
    %172 = vector.extract_strided_slice %162 {offsets = [0, 32], sizes = [8, 32], strides = [1, 1]} : vector<8x96xf32> to vector<8x32xf32>
    %173 = arith.addf %171, %172 : vector<8x32xf32>
    %174 = arith.negf %173 : vector<8x32xf32>
    %175 = math.exp %174 : vector<8x32xf32>
    %cst_40 = arith.constant 1.000000e+00 : f32
    %176 = vector.broadcast %cst_40 : f32 to vector<8x32xf32>
    %177 = arith.addf %176, %175 : vector<8x32xf32>
    %178 = arith.divf %176, %177 : vector<8x32xf32>
    %179 = vector.extract_strided_slice %161 {offsets = [0, 64], sizes = [8, 32], strides = [1, 1]} : vector<8x96xf32> to vector<8x32xf32>
    %180 = vector.extract_strided_slice %162 {offsets = [0, 64], sizes = [8, 32], strides = [1, 1]} : vector<8x96xf32> to vector<8x32xf32>
    %181 = arith.mulf %170, %180 : vector<8x32xf32>
    %182 = arith.addf %179, %181 : vector<8x32xf32>
    %183 = math.tanh %182 : vector<8x32xf32>
    %184 = vector.extract_strided_slice %155 {offsets = [0, 0], sizes = [8, 32], strides = [1, 1]} : vector<8x64xf32> to vector<8x32xf32>
    %cst_41 = arith.constant 1.000000e+00 : f32
    %185 = vector.broadcast %cst_41 : f32 to vector<8x32xf32>
    %186 = arith.subf %185, %178 : vector<8x32xf32>
    %187 = arith.mulf %186, %183 : vector<8x32xf32>
    %188 = arith.mulf %178, %184 : vector<8x32xf32>
    %189 = arith.addf %187, %188 : vector<8x32xf32>
    %190 = arith.index_cast %159 : i32 to index
    %c0_42 = arith.constant 0 : index
    %191 = vector.load %arg11[%190, %c0_42] : memref<64x64xf32, #tpu.memory_space<vmem>>, vector<8x32xf32>
    tpu.vector_store %arg11[%190, %c0_42], %189 {strides = array<i32>} : memref<64x64xf32, #tpu.memory_space<vmem>>, vector<8x32xf32>,
    %c7_i32_43 = arith.constant 7 : i32
    %192 = arith.subi %c7_i32_43, %c2_i32 : i32
    %c8_i32_44 = arith.constant 8 : i32
    %193 = arith.muli %192, %c8_i32_44 : i32
    %194 = tpu.assume_multiple %193, 8 : i32
    %195 = arith.index_cast %194 : i32 to index
    %c96_45 = arith.constant 96 : index
    %196 = vector.load %arg10[%195, %c96_45] : memref<64x192xf32, #tpu.memory_space<vmem>>, vector<8x96xf32>
    %197 = vector.extract_strided_slice %157 {offsets = [0, 96], sizes = [8, 96], strides = [1, 1]} : vector<8x192xf32> to vector<8x96xf32>
    %198 = vector.extract_strided_slice %196 {offsets = [0, 0], sizes = [8, 32], strides = [1, 1]} : vector<8x96xf32> to vector<8x32xf32>
    %199 = vector.extract_strided_slice %197 {offsets = [0, 0], sizes = [8, 32], strides = [1, 1]} : vector<8x96xf32> to vector<8x32xf32>
    %200 = arith.addf %198, %199 : vector<8x32xf32>
    %201 = arith.negf %200 : vector<8x32xf32>
    %202 = math.exp %201 : vector<8x32xf32>
    %cst_46 = arith.constant 1.000000e+00 : f32
    %203 = vector.broadcast %cst_46 : f32 to vector<8x32xf32>
    %204 = arith.addf %203, %202 : vector<8x32xf32>
    %205 = arith.divf %203, %204 : vector<8x32xf32>
    %206 = vector.extract_strided_slice %196 {offsets = [0, 32], sizes = [8, 32], strides = [1, 1]} : vector<8x96xf32> to vector<8x32xf32>
    %207 = vector.extract_strided_slice %197 {offsets = [0, 32], sizes = [8, 32], strides = [1, 1]} : vector<8x96xf32> to vector<8x32xf32>
    %208 = arith.addf %206, %207 : vector<8x32xf32>
    %209 = arith.negf %208 : vector<8x32xf32>
    %210 = math.exp %209 : vector<8x32xf32>
    %cst_47 = arith.constant 1.000000e+00 : f32
    %211 = vector.broadcast %cst_47 : f32 to vector<8x32xf32>
    %212 = arith.addf %211, %210 : vector<8x32xf32>
    %213 = arith.divf %211, %212 : vector<8x32xf32>
    %214 = vector.extract_strided_slice %196 {offsets = [0, 64], sizes = [8, 32], strides = [1, 1]} : vector<8x96xf32> to vector<8x32xf32>
    %215 = vector.extract_strided_slice %197 {offsets = [0, 64], sizes = [8, 32], strides = [1, 1]} : vector<8x96xf32> to vector<8x32xf32>
    %216 = arith.mulf %205, %215 : vector<8x32xf32>
    %217 = arith.addf %214, %216 : vector<8x32xf32>
    %218 = math.tanh %217 : vector<8x32xf32>
    %219 = vector.extract_strided_slice %155 {offsets = [0, 32], sizes = [8, 32], strides = [1, 1]} : vector<8x64xf32> to vector<8x32xf32>
    %cst_48 = arith.constant 1.000000e+00 : f32
    %220 = vector.broadcast %cst_48 : f32 to vector<8x32xf32>
    %221 = arith.subf %220, %213 : vector<8x32xf32>
    %222 = arith.mulf %221, %218 : vector<8x32xf32>
    %223 = arith.mulf %213, %219 : vector<8x32xf32>
    %224 = arith.addf %222, %223 : vector<8x32xf32>
    %225 = arith.index_cast %194 : i32 to index
    %c32_49 = arith.constant 32 : index
    %226 = vector.load %arg11[%225, %c32_49] : memref<64x64xf32, #tpu.memory_space<vmem>>, vector<8x32xf32>
    tpu.vector_store %arg11[%225, %c32_49], %224 {strides = array<i32>} : memref<64x64xf32, #tpu.memory_space<vmem>>, vector<8x32xf32>,
    %227 = tpu.concatenate %189, %224 in 1 : vector<8x32xf32>, vector<8x32xf32> -> vector<8x64xf32>
    %c3_i32 = arith.constant 3 : i32
    %cst_50 = arith.constant dense<0.000000e+00> : vector<8x192xf32>
    %228 = tpu.matmul %227, %7, %cst_50 {dimension_numbers = #tpu.dot_dimension_numbers<[1], [0], [0], [1], [0, 0, 1, 1], [], []>} : vector<8x64xf32>, vector<64x192xf32>, vector<8x192xf32> -> vector<8x192xf32>
    %229 = arith.addf %228, %10 : vector<8x192xf32>
    %c8_i32_51 = arith.constant 8 : i32
    %230 = arith.muli %c3_i32, %c8_i32_51 : i32
    %231 = tpu.assume_multiple %230, 8 : i32
    %232 = arith.index_cast %231 : i32 to index
    %c0_52 = arith.constant 0 : index
    %233 = vector.load %arg10[%232, %c0_52] : memref<64x192xf32, #tpu.memory_space<vmem>>, vector<8x96xf32>
    %234 = vector.extract_strided_slice %229 {offsets = [0, 0], sizes = [8, 96], strides = [1, 1]} : vector<8x192xf32> to vector<8x96xf32>
    %235 = vector.extract_strided_slice %233 {offsets = [0, 0], sizes = [8, 32], strides = [1, 1]} : vector<8x96xf32> to vector<8x32xf32>
    %236 = vector.extract_strided_slice %234 {offsets = [0, 0], sizes = [8, 32], strides = [1, 1]} : vector<8x96xf32> to vector<8x32xf32>
    %237 = arith.addf %235, %236 : vector<8x32xf32>
    %238 = arith.negf %237 : vector<8x32xf32>
    %239 = math.exp %238 : vector<8x32xf32>
    %cst_53 = arith.constant 1.000000e+00 : f32
    %240 = vector.broadcast %cst_53 : f32 to vector<8x32xf32>
    %241 = arith.addf %240, %239 : vector<8x32xf32>
    %242 = arith.divf %240, %241 : vector<8x32xf32>
    %243 = vector.extract_strided_slice %233 {offsets = [0, 32], sizes = [8, 32], strides = [1, 1]} : vector<8x96xf32> to vector<8x32xf32>
    %244 = vector.extract_strided_slice %234 {offsets = [0, 32], sizes = [8, 32], strides = [1, 1]} : vector<8x96xf32> to vector<8x32xf32>
    %245 = arith.addf %243, %244 : vector<8x32xf32>
    %246 = arith.negf %245 : vector<8x32xf32>
    %247 = math.exp %246 : vector<8x32xf32>
    %cst_54 = arith.constant 1.000000e+00 : f32
    %248 = vector.broadcast %cst_54 : f32 to vector<8x32xf32>
    %249 = arith.addf %248, %247 : vector<8x32xf32>
    %250 = arith.divf %248, %249 : vector<8x32xf32>
    %251 = vector.extract_strided_slice %233 {offsets = [0, 64], sizes = [8, 32], strides = [1, 1]} : vector<8x96xf32> to vector<8x32xf32>
    %252 = vector.extract_strided_slice %234 {offsets = [0, 64], sizes = [8, 32], strides = [1, 1]} : vector<8x96xf32> to vector<8x32xf32>
    %253 = arith.mulf %242, %252 : vector<8x32xf32>
    %254 = arith.addf %251, %253 : vector<8x32xf32>
    %255 = math.tanh %254 : vector<8x32xf32>
    %256 = vector.extract_strided_slice %227 {offsets = [0, 0], sizes = [8, 32], strides = [1, 1]} : vector<8x64xf32> to vector<8x32xf32>
    %cst_55 = arith.constant 1.000000e+00 : f32
    %257 = vector.broadcast %cst_55 : f32 to vector<8x32xf32>
    %258 = arith.subf %257, %250 : vector<8x32xf32>
    %259 = arith.mulf %258, %255 : vector<8x32xf32>
    %260 = arith.mulf %250, %256 : vector<8x32xf32>
    %261 = arith.addf %259, %260 : vector<8x32xf32>
    %262 = arith.index_cast %231 : i32 to index
    %c0_56 = arith.constant 0 : index
    %263 = vector.load %arg11[%262, %c0_56] : memref<64x64xf32, #tpu.memory_space<vmem>>, vector<8x32xf32>
    tpu.vector_store %arg11[%262, %c0_56], %261 {strides = array<i32>} : memref<64x64xf32, #tpu.memory_space<vmem>>, vector<8x32xf32>,
    %c7_i32_57 = arith.constant 7 : i32
    %264 = arith.subi %c7_i32_57, %c3_i32 : i32
    %c8_i32_58 = arith.constant 8 : i32
    %265 = arith.muli %264, %c8_i32_58 : i32
    %266 = tpu.assume_multiple %265, 8 : i32
    %267 = arith.index_cast %266 : i32 to index
    %c96_59 = arith.constant 96 : index
    %268 = vector.load %arg10[%267, %c96_59] : memref<64x192xf32, #tpu.memory_space<vmem>>, vector<8x96xf32>
    %269 = vector.extract_strided_slice %229 {offsets = [0, 96], sizes = [8, 96], strides = [1, 1]} : vector<8x192xf32> to vector<8x96xf32>
    %270 = vector.extract_strided_slice %268 {offsets = [0, 0], sizes = [8, 32], strides = [1, 1]} : vector<8x96xf32> to vector<8x32xf32>
    %271 = vector.extract_strided_slice %269 {offsets = [0, 0], sizes = [8, 32], strides = [1, 1]} : vector<8x96xf32> to vector<8x32xf32>
    %272 = arith.addf %270, %271 : vector<8x32xf32>
    %273 = arith.negf %272 : vector<8x32xf32>
    %274 = math.exp %273 : vector<8x32xf32>
    %cst_60 = arith.constant 1.000000e+00 : f32
    %275 = vector.broadcast %cst_60 : f32 to vector<8x32xf32>
    %276 = arith.addf %275, %274 : vector<8x32xf32>
    %277 = arith.divf %275, %276 : vector<8x32xf32>
    %278 = vector.extract_strided_slice %268 {offsets = [0, 32], sizes = [8, 32], strides = [1, 1]} : vector<8x96xf32> to vector<8x32xf32>
    %279 = vector.extract_strided_slice %269 {offsets = [0, 32], sizes = [8, 32], strides = [1, 1]} : vector<8x96xf32> to vector<8x32xf32>
    %280 = arith.addf %278, %279 : vector<8x32xf32>
    %281 = arith.negf %280 : vector<8x32xf32>
    %282 = math.exp %281 : vector<8x32xf32>
    %cst_61 = arith.constant 1.000000e+00 : f32
    %283 = vector.broadcast %cst_61 : f32 to vector<8x32xf32>
    %284 = arith.addf %283, %282 : vector<8x32xf32>
    %285 = arith.divf %283, %284 : vector<8x32xf32>
    %286 = vector.extract_strided_slice %268 {offsets = [0, 64], sizes = [8, 32], strides = [1, 1]} : vector<8x96xf32> to vector<8x32xf32>
    %287 = vector.extract_strided_slice %269 {offsets = [0, 64], sizes = [8, 32], strides = [1, 1]} : vector<8x96xf32> to vector<8x32xf32>
    %288 = arith.mulf %277, %287 : vector<8x32xf32>
    %289 = arith.addf %286, %288 : vector<8x32xf32>
    %290 = math.tanh %289 : vector<8x32xf32>
    %291 = vector.extract_strided_slice %227 {offsets = [0, 32], sizes = [8, 32], strides = [1, 1]} : vector<8x64xf32> to vector<8x32xf32>
    %cst_62 = arith.constant 1.000000e+00 : f32
    %292 = vector.broadcast %cst_62 : f32 to vector<8x32xf32>
    %293 = arith.subf %292, %285 : vector<8x32xf32>
    %294 = arith.mulf %293, %290 : vector<8x32xf32>
    %295 = arith.mulf %285, %291 : vector<8x32xf32>
    %296 = arith.addf %294, %295 : vector<8x32xf32>
    %297 = arith.index_cast %266 : i32 to index
    %c32_63 = arith.constant 32 : index
    %298 = vector.load %arg11[%297, %c32_63] : memref<64x64xf32, #tpu.memory_space<vmem>>, vector<8x32xf32>
    tpu.vector_store %arg11[%297, %c32_63], %296 {strides = array<i32>} : memref<64x64xf32, #tpu.memory_space<vmem>>, vector<8x32xf32>,
    %299 = tpu.concatenate %261, %296 in 1 : vector<8x32xf32>, vector<8x32xf32> -> vector<8x64xf32>
    %c4_i32 = arith.constant 4 : i32
    %cst_64 = arith.constant dense<0.000000e+00> : vector<8x192xf32>
    %300 = tpu.matmul %299, %7, %cst_64 {dimension_numbers = #tpu.dot_dimension_numbers<[1], [0], [0], [1], [0, 0, 1, 1], [], []>} : vector<8x64xf32>, vector<64x192xf32>, vector<8x192xf32> -> vector<8x192xf32>
    %301 = arith.addf %300, %10 : vector<8x192xf32>
    %c8_i32_65 = arith.constant 8 : i32
    %302 = arith.muli %c4_i32, %c8_i32_65 : i32
    %303 = tpu.assume_multiple %302, 8 : i32
    %304 = arith.index_cast %303 : i32 to index
    %c0_66 = arith.constant 0 : index
    %305 = vector.load %arg10[%304, %c0_66] : memref<64x192xf32, #tpu.memory_space<vmem>>, vector<8x96xf32>
    %306 = vector.extract_strided_slice %301 {offsets = [0, 0], sizes = [8, 96], strides = [1, 1]} : vector<8x192xf32> to vector<8x96xf32>
    %307 = vector.extract_strided_slice %305 {offsets = [0, 0], sizes = [8, 32], strides = [1, 1]} : vector<8x96xf32> to vector<8x32xf32>
    %308 = vector.extract_strided_slice %306 {offsets = [0, 0], sizes = [8, 32], strides = [1, 1]} : vector<8x96xf32> to vector<8x32xf32>
    %309 = arith.addf %307, %308 : vector<8x32xf32>
    %310 = arith.negf %309 : vector<8x32xf32>
    %311 = math.exp %310 : vector<8x32xf32>
    %cst_67 = arith.constant 1.000000e+00 : f32
    %312 = vector.broadcast %cst_67 : f32 to vector<8x32xf32>
    %313 = arith.addf %312, %311 : vector<8x32xf32>
    %314 = arith.divf %312, %313 : vector<8x32xf32>
    %315 = vector.extract_strided_slice %305 {offsets = [0, 32], sizes = [8, 32], strides = [1, 1]} : vector<8x96xf32> to vector<8x32xf32>
    %316 = vector.extract_strided_slice %306 {offsets = [0, 32], sizes = [8, 32], strides = [1, 1]} : vector<8x96xf32> to vector<8x32xf32>
    %317 = arith.addf %315, %316 : vector<8x32xf32>
    %318 = arith.negf %317 : vector<8x32xf32>
    %319 = math.exp %318 : vector<8x32xf32>
    %cst_68 = arith.constant 1.000000e+00 : f32
    %320 = vector.broadcast %cst_68 : f32 to vector<8x32xf32>
    %321 = arith.addf %320, %319 : vector<8x32xf32>
    %322 = arith.divf %320, %321 : vector<8x32xf32>
    %323 = vector.extract_strided_slice %305 {offsets = [0, 64], sizes = [8, 32], strides = [1, 1]} : vector<8x96xf32> to vector<8x32xf32>
    %324 = vector.extract_strided_slice %306 {offsets = [0, 64], sizes = [8, 32], strides = [1, 1]} : vector<8x96xf32> to vector<8x32xf32>
    %325 = arith.mulf %314, %324 : vector<8x32xf32>
    %326 = arith.addf %323, %325 : vector<8x32xf32>
    %327 = math.tanh %326 : vector<8x32xf32>
    %328 = vector.extract_strided_slice %299 {offsets = [0, 0], sizes = [8, 32], strides = [1, 1]} : vector<8x64xf32> to vector<8x32xf32>
    %cst_69 = arith.constant 1.000000e+00 : f32
    %329 = vector.broadcast %cst_69 : f32 to vector<8x32xf32>
    %330 = arith.subf %329, %322 : vector<8x32xf32>
    %331 = arith.mulf %330, %327 : vector<8x32xf32>
    %332 = arith.mulf %322, %328 : vector<8x32xf32>
    %333 = arith.addf %331, %332 : vector<8x32xf32>
    %334 = arith.index_cast %303 : i32 to index
    %c0_70 = arith.constant 0 : index
    %335 = vector.load %arg11[%334, %c0_70] : memref<64x64xf32, #tpu.memory_space<vmem>>, vector<8x32xf32>
    tpu.vector_store %arg11[%334, %c0_70], %333 {strides = array<i32>} : memref<64x64xf32, #tpu.memory_space<vmem>>, vector<8x32xf32>,
    %c7_i32_71 = arith.constant 7 : i32
    %336 = arith.subi %c7_i32_71, %c4_i32 : i32
    %c8_i32_72 = arith.constant 8 : i32
    %337 = arith.muli %336, %c8_i32_72 : i32
    %338 = tpu.assume_multiple %337, 8 : i32
    %339 = arith.index_cast %338 : i32 to index
    %c96_73 = arith.constant 96 : index
    %340 = vector.load %arg10[%339, %c96_73] : memref<64x192xf32, #tpu.memory_space<vmem>>, vector<8x96xf32>
    %341 = vector.extract_strided_slice %301 {offsets = [0, 96], sizes = [8, 96], strides = [1, 1]} : vector<8x192xf32> to vector<8x96xf32>
    %342 = vector.extract_strided_slice %340 {offsets = [0, 0], sizes = [8, 32], strides = [1, 1]} : vector<8x96xf32> to vector<8x32xf32>
    %343 = vector.extract_strided_slice %341 {offsets = [0, 0], sizes = [8, 32], strides = [1, 1]} : vector<8x96xf32> to vector<8x32xf32>
    %344 = arith.addf %342, %343 : vector<8x32xf32>
    %345 = arith.negf %344 : vector<8x32xf32>
    %346 = math.exp %345 : vector<8x32xf32>
    %cst_74 = arith.constant 1.000000e+00 : f32
    %347 = vector.broadcast %cst_74 : f32 to vector<8x32xf32>
    %348 = arith.addf %347, %346 : vector<8x32xf32>
    %349 = arith.divf %347, %348 : vector<8x32xf32>
    %350 = vector.extract_strided_slice %340 {offsets = [0, 32], sizes = [8, 32], strides = [1, 1]} : vector<8x96xf32> to vector<8x32xf32>
    %351 = vector.extract_strided_slice %341 {offsets = [0, 32], sizes = [8, 32], strides = [1, 1]} : vector<8x96xf32> to vector<8x32xf32>
    %352 = arith.addf %350, %351 : vector<8x32xf32>
    %353 = arith.negf %352 : vector<8x32xf32>
    %354 = math.exp %353 : vector<8x32xf32>
    %cst_75 = arith.constant 1.000000e+00 : f32
    %355 = vector.broadcast %cst_75 : f32 to vector<8x32xf32>
    %356 = arith.addf %355, %354 : vector<8x32xf32>
    %357 = arith.divf %355, %356 : vector<8x32xf32>
    %358 = vector.extract_strided_slice %340 {offsets = [0, 64], sizes = [8, 32], strides = [1, 1]} : vector<8x96xf32> to vector<8x32xf32>
    %359 = vector.extract_strided_slice %341 {offsets = [0, 64], sizes = [8, 32], strides = [1, 1]} : vector<8x96xf32> to vector<8x32xf32>
    %360 = arith.mulf %349, %359 : vector<8x32xf32>
    %361 = arith.addf %358, %360 : vector<8x32xf32>
    %362 = math.tanh %361 : vector<8x32xf32>
    %363 = vector.extract_strided_slice %299 {offsets = [0, 32], sizes = [8, 32], strides = [1, 1]} : vector<8x64xf32> to vector<8x32xf32>
    %cst_76 = arith.constant 1.000000e+00 : f32
    %364 = vector.broadcast %cst_76 : f32 to vector<8x32xf32>
    %365 = arith.subf %364, %357 : vector<8x32xf32>
    %366 = arith.mulf %365, %362 : vector<8x32xf32>
    %367 = arith.mulf %357, %363 : vector<8x32xf32>
    %368 = arith.addf %366, %367 : vector<8x32xf32>
    %369 = arith.index_cast %338 : i32 to index
    %c32_77 = arith.constant 32 : index
    %370 = vector.load %arg11[%369, %c32_77] : memref<64x64xf32, #tpu.memory_space<vmem>>, vector<8x32xf32>
    tpu.vector_store %arg11[%369, %c32_77], %368 {strides = array<i32>} : memref<64x64xf32, #tpu.memory_space<vmem>>, vector<8x32xf32>,
    %371 = tpu.concatenate %333, %368 in 1 : vector<8x32xf32>, vector<8x32xf32> -> vector<8x64xf32>
    %c5_i32 = arith.constant 5 : i32
    %cst_78 = arith.constant dense<0.000000e+00> : vector<8x192xf32>
    %372 = tpu.matmul %371, %7, %cst_78 {dimension_numbers = #tpu.dot_dimension_numbers<[1], [0], [0], [1], [0, 0, 1, 1], [], []>} : vector<8x64xf32>, vector<64x192xf32>, vector<8x192xf32> -> vector<8x192xf32>
    %373 = arith.addf %372, %10 : vector<8x192xf32>
    %c8_i32_79 = arith.constant 8 : i32
    %374 = arith.muli %c5_i32, %c8_i32_79 : i32
    %375 = tpu.assume_multiple %374, 8 : i32
    %376 = arith.index_cast %375 : i32 to index
    %c0_80 = arith.constant 0 : index
    %377 = vector.load %arg10[%376, %c0_80] : memref<64x192xf32, #tpu.memory_space<vmem>>, vector<8x96xf32>
    %378 = vector.extract_strided_slice %373 {offsets = [0, 0], sizes = [8, 96], strides = [1, 1]} : vector<8x192xf32> to vector<8x96xf32>
    %379 = vector.extract_strided_slice %377 {offsets = [0, 0], sizes = [8, 32], strides = [1, 1]} : vector<8x96xf32> to vector<8x32xf32>
    %380 = vector.extract_strided_slice %378 {offsets = [0, 0], sizes = [8, 32], strides = [1, 1]} : vector<8x96xf32> to vector<8x32xf32>
    %381 = arith.addf %379, %380 : vector<8x32xf32>
    %382 = arith.negf %381 : vector<8x32xf32>
    %383 = math.exp %382 : vector<8x32xf32>
    %cst_81 = arith.constant 1.000000e+00 : f32
    %384 = vector.broadcast %cst_81 : f32 to vector<8x32xf32>
    %385 = arith.addf %384, %383 : vector<8x32xf32>
    %386 = arith.divf %384, %385 : vector<8x32xf32>
    %387 = vector.extract_strided_slice %377 {offsets = [0, 32], sizes = [8, 32], strides = [1, 1]} : vector<8x96xf32> to vector<8x32xf32>
    %388 = vector.extract_strided_slice %378 {offsets = [0, 32], sizes = [8, 32], strides = [1, 1]} : vector<8x96xf32> to vector<8x32xf32>
    %389 = arith.addf %387, %388 : vector<8x32xf32>
    %390 = arith.negf %389 : vector<8x32xf32>
    %391 = math.exp %390 : vector<8x32xf32>
    %cst_82 = arith.constant 1.000000e+00 : f32
    %392 = vector.broadcast %cst_82 : f32 to vector<8x32xf32>
    %393 = arith.addf %392, %391 : vector<8x32xf32>
    %394 = arith.divf %392, %393 : vector<8x32xf32>
    %395 = vector.extract_strided_slice %377 {offsets = [0, 64], sizes = [8, 32], strides = [1, 1]} : vector<8x96xf32> to vector<8x32xf32>
    %396 = vector.extract_strided_slice %378 {offsets = [0, 64], sizes = [8, 32], strides = [1, 1]} : vector<8x96xf32> to vector<8x32xf32>
    %397 = arith.mulf %386, %396 : vector<8x32xf32>
    %398 = arith.addf %395, %397 : vector<8x32xf32>
    %399 = math.tanh %398 : vector<8x32xf32>
    %400 = vector.extract_strided_slice %371 {offsets = [0, 0], sizes = [8, 32], strides = [1, 1]} : vector<8x64xf32> to vector<8x32xf32>
    %cst_83 = arith.constant 1.000000e+00 : f32
    %401 = vector.broadcast %cst_83 : f32 to vector<8x32xf32>
    %402 = arith.subf %401, %394 : vector<8x32xf32>
    %403 = arith.mulf %402, %399 : vector<8x32xf32>
    %404 = arith.mulf %394, %400 : vector<8x32xf32>
    %405 = arith.addf %403, %404 : vector<8x32xf32>
    %406 = arith.index_cast %375 : i32 to index
    %c0_84 = arith.constant 0 : index
    %407 = vector.load %arg11[%406, %c0_84] : memref<64x64xf32, #tpu.memory_space<vmem>>, vector<8x32xf32>
    tpu.vector_store %arg11[%406, %c0_84], %405 {strides = array<i32>} : memref<64x64xf32, #tpu.memory_space<vmem>>, vector<8x32xf32>,
    %c7_i32_85 = arith.constant 7 : i32
    %408 = arith.subi %c7_i32_85, %c5_i32 : i32
    %c8_i32_86 = arith.constant 8 : i32
    %409 = arith.muli %408, %c8_i32_86 : i32
    %410 = tpu.assume_multiple %409, 8 : i32
    %411 = arith.index_cast %410 : i32 to index
    %c96_87 = arith.constant 96 : index
    %412 = vector.load %arg10[%411, %c96_87] : memref<64x192xf32, #tpu.memory_space<vmem>>, vector<8x96xf32>
    %413 = vector.extract_strided_slice %373 {offsets = [0, 96], sizes = [8, 96], strides = [1, 1]} : vector<8x192xf32> to vector<8x96xf32>
    %414 = vector.extract_strided_slice %412 {offsets = [0, 0], sizes = [8, 32], strides = [1, 1]} : vector<8x96xf32> to vector<8x32xf32>
    %415 = vector.extract_strided_slice %413 {offsets = [0, 0], sizes = [8, 32], strides = [1, 1]} : vector<8x96xf32> to vector<8x32xf32>
    %416 = arith.addf %414, %415 : vector<8x32xf32>
    %417 = arith.negf %416 : vector<8x32xf32>
    %418 = math.exp %417 : vector<8x32xf32>
    %cst_88 = arith.constant 1.000000e+00 : f32
    %419 = vector.broadcast %cst_88 : f32 to vector<8x32xf32>
    %420 = arith.addf %419, %418 : vector<8x32xf32>
    %421 = arith.divf %419, %420 : vector<8x32xf32>
    %422 = vector.extract_strided_slice %412 {offsets = [0, 32], sizes = [8, 32], strides = [1, 1]} : vector<8x96xf32> to vector<8x32xf32>
    %423 = vector.extract_strided_slice %413 {offsets = [0, 32], sizes = [8, 32], strides = [1, 1]} : vector<8x96xf32> to vector<8x32xf32>
    %424 = arith.addf %422, %423 : vector<8x32xf32>
    %425 = arith.negf %424 : vector<8x32xf32>
    %426 = math.exp %425 : vector<8x32xf32>
    %cst_89 = arith.constant 1.000000e+00 : f32
    %427 = vector.broadcast %cst_89 : f32 to vector<8x32xf32>
    %428 = arith.addf %427, %426 : vector<8x32xf32>
    %429 = arith.divf %427, %428 : vector<8x32xf32>
    %430 = vector.extract_strided_slice %412 {offsets = [0, 64], sizes = [8, 32], strides = [1, 1]} : vector<8x96xf32> to vector<8x32xf32>
    %431 = vector.extract_strided_slice %413 {offsets = [0, 64], sizes = [8, 32], strides = [1, 1]} : vector<8x96xf32> to vector<8x32xf32>
    %432 = arith.mulf %421, %431 : vector<8x32xf32>
    %433 = arith.addf %430, %432 : vector<8x32xf32>
    %434 = math.tanh %433 : vector<8x32xf32>
    %435 = vector.extract_strided_slice %371 {offsets = [0, 32], sizes = [8, 32], strides = [1, 1]} : vector<8x64xf32> to vector<8x32xf32>
    %cst_90 = arith.constant 1.000000e+00 : f32
    %436 = vector.broadcast %cst_90 : f32 to vector<8x32xf32>
    %437 = arith.subf %436, %429 : vector<8x32xf32>
    %438 = arith.mulf %437, %434 : vector<8x32xf32>
    %439 = arith.mulf %429, %435 : vector<8x32xf32>
    %440 = arith.addf %438, %439 : vector<8x32xf32>
    %441 = arith.index_cast %410 : i32 to index
    %c32_91 = arith.constant 32 : index
    %442 = vector.load %arg11[%441, %c32_91] : memref<64x64xf32, #tpu.memory_space<vmem>>, vector<8x32xf32>
    tpu.vector_store %arg11[%441, %c32_91], %440 {strides = array<i32>} : memref<64x64xf32, #tpu.memory_space<vmem>>, vector<8x32xf32>,
    %443 = tpu.concatenate %405, %440 in 1 : vector<8x32xf32>, vector<8x32xf32> -> vector<8x64xf32>
    %c6_i32 = arith.constant 6 : i32
    %cst_92 = arith.constant dense<0.000000e+00> : vector<8x192xf32>
    %444 = tpu.matmul %443, %7, %cst_92 {dimension_numbers = #tpu.dot_dimension_numbers<[1], [0], [0], [1], [0, 0, 1, 1], [], []>} : vector<8x64xf32>, vector<64x192xf32>, vector<8x192xf32> -> vector<8x192xf32>
    %445 = arith.addf %444, %10 : vector<8x192xf32>
    %c8_i32_93 = arith.constant 8 : i32
    %446 = arith.muli %c6_i32, %c8_i32_93 : i32
    %447 = tpu.assume_multiple %446, 8 : i32
    %448 = arith.index_cast %447 : i32 to index
    %c0_94 = arith.constant 0 : index
    %449 = vector.load %arg10[%448, %c0_94] : memref<64x192xf32, #tpu.memory_space<vmem>>, vector<8x96xf32>
    %450 = vector.extract_strided_slice %445 {offsets = [0, 0], sizes = [8, 96], strides = [1, 1]} : vector<8x192xf32> to vector<8x96xf32>
    %451 = vector.extract_strided_slice %449 {offsets = [0, 0], sizes = [8, 32], strides = [1, 1]} : vector<8x96xf32> to vector<8x32xf32>
    %452 = vector.extract_strided_slice %450 {offsets = [0, 0], sizes = [8, 32], strides = [1, 1]} : vector<8x96xf32> to vector<8x32xf32>
    %453 = arith.addf %451, %452 : vector<8x32xf32>
    %454 = arith.negf %453 : vector<8x32xf32>
    %455 = math.exp %454 : vector<8x32xf32>
    %cst_95 = arith.constant 1.000000e+00 : f32
    %456 = vector.broadcast %cst_95 : f32 to vector<8x32xf32>
    %457 = arith.addf %456, %455 : vector<8x32xf32>
    %458 = arith.divf %456, %457 : vector<8x32xf32>
    %459 = vector.extract_strided_slice %449 {offsets = [0, 32], sizes = [8, 32], strides = [1, 1]} : vector<8x96xf32> to vector<8x32xf32>
    %460 = vector.extract_strided_slice %450 {offsets = [0, 32], sizes = [8, 32], strides = [1, 1]} : vector<8x96xf32> to vector<8x32xf32>
    %461 = arith.addf %459, %460 : vector<8x32xf32>
    %462 = arith.negf %461 : vector<8x32xf32>
    %463 = math.exp %462 : vector<8x32xf32>
    %cst_96 = arith.constant 1.000000e+00 : f32
    %464 = vector.broadcast %cst_96 : f32 to vector<8x32xf32>
    %465 = arith.addf %464, %463 : vector<8x32xf32>
    %466 = arith.divf %464, %465 : vector<8x32xf32>
    %467 = vector.extract_strided_slice %449 {offsets = [0, 64], sizes = [8, 32], strides = [1, 1]} : vector<8x96xf32> to vector<8x32xf32>
    %468 = vector.extract_strided_slice %450 {offsets = [0, 64], sizes = [8, 32], strides = [1, 1]} : vector<8x96xf32> to vector<8x32xf32>
    %469 = arith.mulf %458, %468 : vector<8x32xf32>
    %470 = arith.addf %467, %469 : vector<8x32xf32>
    %471 = math.tanh %470 : vector<8x32xf32>
    %472 = vector.extract_strided_slice %443 {offsets = [0, 0], sizes = [8, 32], strides = [1, 1]} : vector<8x64xf32> to vector<8x32xf32>
    %cst_97 = arith.constant 1.000000e+00 : f32
    %473 = vector.broadcast %cst_97 : f32 to vector<8x32xf32>
    %474 = arith.subf %473, %466 : vector<8x32xf32>
    %475 = arith.mulf %474, %471 : vector<8x32xf32>
    %476 = arith.mulf %466, %472 : vector<8x32xf32>
    %477 = arith.addf %475, %476 : vector<8x32xf32>
    %478 = arith.index_cast %447 : i32 to index
    %c0_98 = arith.constant 0 : index
    %479 = vector.load %arg11[%478, %c0_98] : memref<64x64xf32, #tpu.memory_space<vmem>>, vector<8x32xf32>
    tpu.vector_store %arg11[%478, %c0_98], %477 {strides = array<i32>} : memref<64x64xf32, #tpu.memory_space<vmem>>, vector<8x32xf32>,
    %c7_i32_99 = arith.constant 7 : i32
    %480 = arith.subi %c7_i32_99, %c6_i32 : i32
    %c8_i32_100 = arith.constant 8 : i32
    %481 = arith.muli %480, %c8_i32_100 : i32
    %482 = tpu.assume_multiple %481, 8 : i32
    %483 = arith.index_cast %482 : i32 to index
    %c96_101 = arith.constant 96 : index
    %484 = vector.load %arg10[%483, %c96_101] : memref<64x192xf32, #tpu.memory_space<vmem>>, vector<8x96xf32>
    %485 = vector.extract_strided_slice %445 {offsets = [0, 96], sizes = [8, 96], strides = [1, 1]} : vector<8x192xf32> to vector<8x96xf32>
    %486 = vector.extract_strided_slice %484 {offsets = [0, 0], sizes = [8, 32], strides = [1, 1]} : vector<8x96xf32> to vector<8x32xf32>
    %487 = vector.extract_strided_slice %485 {offsets = [0, 0], sizes = [8, 32], strides = [1, 1]} : vector<8x96xf32> to vector<8x32xf32>
    %488 = arith.addf %486, %487 : vector<8x32xf32>
    %489 = arith.negf %488 : vector<8x32xf32>
    %490 = math.exp %489 : vector<8x32xf32>
    %cst_102 = arith.constant 1.000000e+00 : f32
    %491 = vector.broadcast %cst_102 : f32 to vector<8x32xf32>
    %492 = arith.addf %491, %490 : vector<8x32xf32>
    %493 = arith.divf %491, %492 : vector<8x32xf32>
    %494 = vector.extract_strided_slice %484 {offsets = [0, 32], sizes = [8, 32], strides = [1, 1]} : vector<8x96xf32> to vector<8x32xf32>
    %495 = vector.extract_strided_slice %485 {offsets = [0, 32], sizes = [8, 32], strides = [1, 1]} : vector<8x96xf32> to vector<8x32xf32>
    %496 = arith.addf %494, %495 : vector<8x32xf32>
    %497 = arith.negf %496 : vector<8x32xf32>
    %498 = math.exp %497 : vector<8x32xf32>
    %cst_103 = arith.constant 1.000000e+00 : f32
    %499 = vector.broadcast %cst_103 : f32 to vector<8x32xf32>
    %500 = arith.addf %499, %498 : vector<8x32xf32>
    %501 = arith.divf %499, %500 : vector<8x32xf32>
    %502 = vector.extract_strided_slice %484 {offsets = [0, 64], sizes = [8, 32], strides = [1, 1]} : vector<8x96xf32> to vector<8x32xf32>
    %503 = vector.extract_strided_slice %485 {offsets = [0, 64], sizes = [8, 32], strides = [1, 1]} : vector<8x96xf32> to vector<8x32xf32>
    %504 = arith.mulf %493, %503 : vector<8x32xf32>
    %505 = arith.addf %502, %504 : vector<8x32xf32>
    %506 = math.tanh %505 : vector<8x32xf32>
    %507 = vector.extract_strided_slice %443 {offsets = [0, 32], sizes = [8, 32], strides = [1, 1]} : vector<8x64xf32> to vector<8x32xf32>
    %cst_104 = arith.constant 1.000000e+00 : f32
    %508 = vector.broadcast %cst_104 : f32 to vector<8x32xf32>
    %509 = arith.subf %508, %501 : vector<8x32xf32>
    %510 = arith.mulf %509, %506 : vector<8x32xf32>
    %511 = arith.mulf %501, %507 : vector<8x32xf32>
    %512 = arith.addf %510, %511 : vector<8x32xf32>
    %513 = arith.index_cast %482 : i32 to index
    %c32_105 = arith.constant 32 : index
    %514 = vector.load %arg11[%513, %c32_105] : memref<64x64xf32, #tpu.memory_space<vmem>>, vector<8x32xf32>
    tpu.vector_store %arg11[%513, %c32_105], %512 {strides = array<i32>} : memref<64x64xf32, #tpu.memory_space<vmem>>, vector<8x32xf32>,
    %515 = tpu.concatenate %477, %512 in 1 : vector<8x32xf32>, vector<8x32xf32> -> vector<8x64xf32>
    %c7_i32_106 = arith.constant 7 : i32
    %cst_107 = arith.constant dense<0.000000e+00> : vector<8x192xf32>
    %516 = tpu.matmul %515, %7, %cst_107 {dimension_numbers = #tpu.dot_dimension_numbers<[1], [0], [0], [1], [0, 0, 1, 1], [], []>} : vector<8x64xf32>, vector<64x192xf32>, vector<8x192xf32> -> vector<8x192xf32>
    %517 = arith.addf %516, %10 : vector<8x192xf32>
    %c8_i32_108 = arith.constant 8 : i32
    %518 = arith.muli %c7_i32_106, %c8_i32_108 : i32
    %519 = tpu.assume_multiple %518, 8 : i32
    %520 = arith.index_cast %519 : i32 to index
    %c0_109 = arith.constant 0 : index
    %521 = vector.load %arg10[%520, %c0_109] : memref<64x192xf32, #tpu.memory_space<vmem>>, vector<8x96xf32>
    %522 = vector.extract_strided_slice %517 {offsets = [0, 0], sizes = [8, 96], strides = [1, 1]} : vector<8x192xf32> to vector<8x96xf32>
    %523 = vector.extract_strided_slice %521 {offsets = [0, 0], sizes = [8, 32], strides = [1, 1]} : vector<8x96xf32> to vector<8x32xf32>
    %524 = vector.extract_strided_slice %522 {offsets = [0, 0], sizes = [8, 32], strides = [1, 1]} : vector<8x96xf32> to vector<8x32xf32>
    %525 = arith.addf %523, %524 : vector<8x32xf32>
    %526 = arith.negf %525 : vector<8x32xf32>
    %527 = math.exp %526 : vector<8x32xf32>
    %cst_110 = arith.constant 1.000000e+00 : f32
    %528 = vector.broadcast %cst_110 : f32 to vector<8x32xf32>
    %529 = arith.addf %528, %527 : vector<8x32xf32>
    %530 = arith.divf %528, %529 : vector<8x32xf32>
    %531 = vector.extract_strided_slice %521 {offsets = [0, 32], sizes = [8, 32], strides = [1, 1]} : vector<8x96xf32> to vector<8x32xf32>
    %532 = vector.extract_strided_slice %522 {offsets = [0, 32], sizes = [8, 32], strides = [1, 1]} : vector<8x96xf32> to vector<8x32xf32>
    %533 = arith.addf %531, %532 : vector<8x32xf32>
    %534 = arith.negf %533 : vector<8x32xf32>
    %535 = math.exp %534 : vector<8x32xf32>
    %cst_111 = arith.constant 1.000000e+00 : f32
    %536 = vector.broadcast %cst_111 : f32 to vector<8x32xf32>
    %537 = arith.addf %536, %535 : vector<8x32xf32>
    %538 = arith.divf %536, %537 : vector<8x32xf32>
    %539 = vector.extract_strided_slice %521 {offsets = [0, 64], sizes = [8, 32], strides = [1, 1]} : vector<8x96xf32> to vector<8x32xf32>
    %540 = vector.extract_strided_slice %522 {offsets = [0, 64], sizes = [8, 32], strides = [1, 1]} : vector<8x96xf32> to vector<8x32xf32>
    %541 = arith.mulf %530, %540 : vector<8x32xf32>
    %542 = arith.addf %539, %541 : vector<8x32xf32>
    %543 = math.tanh %542 : vector<8x32xf32>
    %544 = vector.extract_strided_slice %515 {offsets = [0, 0], sizes = [8, 32], strides = [1, 1]} : vector<8x64xf32> to vector<8x32xf32>
    %cst_112 = arith.constant 1.000000e+00 : f32
    %545 = vector.broadcast %cst_112 : f32 to vector<8x32xf32>
    %546 = arith.subf %545, %538 : vector<8x32xf32>
    %547 = arith.mulf %546, %543 : vector<8x32xf32>
    %548 = arith.mulf %538, %544 : vector<8x32xf32>
    %549 = arith.addf %547, %548 : vector<8x32xf32>
    %550 = arith.index_cast %519 : i32 to index
    %c0_113 = arith.constant 0 : index
    %551 = vector.load %arg11[%550, %c0_113] : memref<64x64xf32, #tpu.memory_space<vmem>>, vector<8x32xf32>
    tpu.vector_store %arg11[%550, %c0_113], %549 {strides = array<i32>} : memref<64x64xf32, #tpu.memory_space<vmem>>, vector<8x32xf32>,
    %c7_i32_114 = arith.constant 7 : i32
    %552 = arith.subi %c7_i32_114, %c7_i32_106 : i32
    %c8_i32_115 = arith.constant 8 : i32
    %553 = arith.muli %552, %c8_i32_115 : i32
    %554 = tpu.assume_multiple %553, 8 : i32
    %555 = arith.index_cast %554 : i32 to index
    %c96_116 = arith.constant 96 : index
    %556 = vector.load %arg10[%555, %c96_116] : memref<64x192xf32, #tpu.memory_space<vmem>>, vector<8x96xf32>
    %557 = vector.extract_strided_slice %517 {offsets = [0, 96], sizes = [8, 96], strides = [1, 1]} : vector<8x192xf32> to vector<8x96xf32>
    %558 = vector.extract_strided_slice %556 {offsets = [0, 0], sizes = [8, 32], strides = [1, 1]} : vector<8x96xf32> to vector<8x32xf32>
    %559 = vector.extract_strided_slice %557 {offsets = [0, 0], sizes = [8, 32], strides = [1, 1]} : vector<8x96xf32> to vector<8x32xf32>
    %560 = arith.addf %558, %559 : vector<8x32xf32>
    %561 = arith.negf %560 : vector<8x32xf32>
    %562 = math.exp %561 : vector<8x32xf32>
    %cst_117 = arith.constant 1.000000e+00 : f32
    %563 = vector.broadcast %cst_117 : f32 to vector<8x32xf32>
    %564 = arith.addf %563, %562 : vector<8x32xf32>
    %565 = arith.divf %563, %564 : vector<8x32xf32>
    %566 = vector.extract_strided_slice %556 {offsets = [0, 32], sizes = [8, 32], strides = [1, 1]} : vector<8x96xf32> to vector<8x32xf32>
    %567 = vector.extract_strided_slice %557 {offsets = [0, 32], sizes = [8, 32], strides = [1, 1]} : vector<8x96xf32> to vector<8x32xf32>
    %568 = arith.addf %566, %567 : vector<8x32xf32>
    %569 = arith.negf %568 : vector<8x32xf32>
    %570 = math.exp %569 : vector<8x32xf32>
    %cst_118 = arith.constant 1.000000e+00 : f32
    %571 = vector.broadcast %cst_118 : f32 to vector<8x32xf32>
    %572 = arith.addf %571, %570 : vector<8x32xf32>
    %573 = arith.divf %571, %572 : vector<8x32xf32>
    %574 = vector.extract_strided_slice %556 {offsets = [0, 64], sizes = [8, 32], strides = [1, 1]} : vector<8x96xf32> to vector<8x32xf32>
    %575 = vector.extract_strided_slice %557 {offsets = [0, 64], sizes = [8, 32], strides = [1, 1]} : vector<8x96xf32> to vector<8x32xf32>
    %576 = arith.mulf %565, %575 : vector<8x32xf32>
    %577 = arith.addf %574, %576 : vector<8x32xf32>
    %578 = math.tanh %577 : vector<8x32xf32>
    %579 = vector.extract_strided_slice %515 {offsets = [0, 32], sizes = [8, 32], strides = [1, 1]} : vector<8x64xf32> to vector<8x32xf32>
    %cst_119 = arith.constant 1.000000e+00 : f32
    %580 = vector.broadcast %cst_119 : f32 to vector<8x32xf32>
    %581 = arith.subf %580, %573 : vector<8x32xf32>
    %582 = arith.mulf %581, %578 : vector<8x32xf32>
    %583 = arith.mulf %573, %579 : vector<8x32xf32>
    %584 = arith.addf %582, %583 : vector<8x32xf32>
    %585 = arith.index_cast %554 : i32 to index
    %c32_120 = arith.constant 32 : index
    %586 = vector.load %arg11[%585, %c32_120] : memref<64x64xf32, #tpu.memory_space<vmem>>, vector<8x32xf32>
    tpu.vector_store %arg11[%585, %c32_120], %584 {strides = array<i32>} : memref<64x64xf32, #tpu.memory_space<vmem>>, vector<8x32xf32>,
    %587 = tpu.concatenate %549, %584 in 1 : vector<8x32xf32>, vector<8x32xf32> -> vector<8x64xf32>
    %c8_i32_121 = arith.constant 8 : i32
    %c0_122 = arith.constant 0 : index
    %c0_123 = arith.constant 0 : index
    %588 = vector.load %arg11[%c0_122, %c0_123] : memref<64x64xf32, #tpu.memory_space<vmem>>, vector<64x64xf32>
    %c0_124 = arith.constant 0 : index
    %c0_125 = arith.constant 0 : index
    %589 = vector.load %arg5[%c0_124, %c0_125] : memref<64x192xf32, #tpu.memory_space<vmem>>, vector<64x192xf32>
    %cst_126 = arith.constant dense<0.000000e+00> : vector<64x192xf32>
    %590 = tpu.matmul %588, %589, %cst_126 {dimension_numbers = #tpu.dot_dimension_numbers<[1], [0], [0], [1], [0, 0, 1, 1], [], []>} : vector<64x64xf32>, vector<64x192xf32>, vector<64x192xf32> -> vector<64x192xf32>
    %c0_127 = arith.constant 0 : index
    %c0_128 = arith.constant 0 : index
    %591 = vector.load %arg7[%c0_127, %c0_128] : memref<1x192xf32, #tpu.memory_space<vmem>>, vector<1x192xf32>
    %592 = vector.broadcast %591 : vector<1x192xf32> to vector<64x192xf32>
    %593 = arith.addf %590, %592 : vector<64x192xf32>
    %c0_129 = arith.constant 0 : index
    %c0_130 = arith.constant 0 : index
    %594 = vector.load %arg10[%c0_129, %c0_130] : memref<64x192xf32, #tpu.memory_space<vmem>>, vector<64x192xf32>
    tpu.vector_store %arg10[%c0_129, %c0_130], %593 {strides = array<i32>} : memref<64x192xf32, #tpu.memory_space<vmem>>, vector<64x192xf32>,
    %c0_131 = arith.constant 0 : index
    %c0_132 = arith.constant 0 : index
    %595 = vector.load %arg6[%c0_131, %c0_132] : memref<64x192xf32, #tpu.memory_space<vmem>>, vector<64x192xf32>
    %c0_133 = arith.constant 0 : index
    %c0_134 = arith.constant 0 : index
    %596 = vector.load %arg8[%c0_133, %c0_134] : memref<1x192xf32, #tpu.memory_space<vmem>>, vector<1x192xf32>
    %597 = vector.shape_cast %596 : vector<1x192xf32> to vector<1x192xf32>
    %598 = vector.broadcast %597 : vector<1x192xf32> to vector<8x192xf32>
    %cst_135 = arith.constant 0.000000e+00 : f32
    %599 = vector.broadcast %cst_135 : f32 to vector<8x64xf32>
    %c0_i32_136 = arith.constant 0 : i32
    %cst_137 = arith.constant dense<0.000000e+00> : vector<8x192xf32>
    %600 = tpu.matmul %599, %595, %cst_137 {dimension_numbers = #tpu.dot_dimension_numbers<[1], [0], [0], [1], [0, 0, 1, 1], [], []>} : vector<8x64xf32>, vector<64x192xf32>, vector<8x192xf32> -> vector<8x192xf32>
    %601 = arith.addf %600, %598 : vector<8x192xf32>
    %c8_i32_138 = arith.constant 8 : i32
    %602 = arith.muli %c0_i32_136, %c8_i32_138 : i32
    %603 = tpu.assume_multiple %602, 8 : i32
    %604 = arith.index_cast %603 : i32 to index
    %c0_139 = arith.constant 0 : index
    %605 = vector.load %arg10[%604, %c0_139] : memref<64x192xf32, #tpu.memory_space<vmem>>, vector<8x96xf32>
    %606 = vector.extract_strided_slice %601 {offsets = [0, 0], sizes = [8, 96], strides = [1, 1]} : vector<8x192xf32> to vector<8x96xf32>
    %607 = vector.extract_strided_slice %605 {offsets = [0, 0], sizes = [8, 32], strides = [1, 1]} : vector<8x96xf32> to vector<8x32xf32>
    %608 = vector.extract_strided_slice %606 {offsets = [0, 0], sizes = [8, 32], strides = [1, 1]} : vector<8x96xf32> to vector<8x32xf32>
    %609 = arith.addf %607, %608 : vector<8x32xf32>
    %610 = arith.negf %609 : vector<8x32xf32>
    %611 = math.exp %610 : vector<8x32xf32>
    %cst_140 = arith.constant 1.000000e+00 : f32
    %612 = vector.broadcast %cst_140 : f32 to vector<8x32xf32>
    %613 = arith.addf %612, %611 : vector<8x32xf32>
    %614 = arith.divf %612, %613 : vector<8x32xf32>
    %615 = vector.extract_strided_slice %605 {offsets = [0, 32], sizes = [8, 32], strides = [1, 1]} : vector<8x96xf32> to vector<8x32xf32>
    %616 = vector.extract_strided_slice %606 {offsets = [0, 32], sizes = [8, 32], strides = [1, 1]} : vector<8x96xf32> to vector<8x32xf32>
    %617 = arith.addf %615, %616 : vector<8x32xf32>
    %618 = arith.negf %617 : vector<8x32xf32>
    %619 = math.exp %618 : vector<8x32xf32>
    %cst_141 = arith.constant 1.000000e+00 : f32
    %620 = vector.broadcast %cst_141 : f32 to vector<8x32xf32>
    %621 = arith.addf %620, %619 : vector<8x32xf32>
    %622 = arith.divf %620, %621 : vector<8x32xf32>
    %623 = vector.extract_strided_slice %605 {offsets = [0, 64], sizes = [8, 32], strides = [1, 1]} : vector<8x96xf32> to vector<8x32xf32>
    %624 = vector.extract_strided_slice %606 {offsets = [0, 64], sizes = [8, 32], strides = [1, 1]} : vector<8x96xf32> to vector<8x32xf32>
    %625 = arith.mulf %614, %624 : vector<8x32xf32>
    %626 = arith.addf %623, %625 : vector<8x32xf32>
    %627 = math.tanh %626 : vector<8x32xf32>
    %628 = vector.extract_strided_slice %599 {offsets = [0, 0], sizes = [8, 32], strides = [1, 1]} : vector<8x64xf32> to vector<8x32xf32>
    %cst_142 = arith.constant 1.000000e+00 : f32
    %629 = vector.broadcast %cst_142 : f32 to vector<8x32xf32>
    %630 = arith.subf %629, %622 : vector<8x32xf32>
    %631 = arith.mulf %630, %627 : vector<8x32xf32>
    %632 = arith.mulf %622, %628 : vector<8x32xf32>
    %633 = arith.addf %631, %632 : vector<8x32xf32>
    %634 = arith.index_cast %603 : i32 to index
    %c0_143 = arith.constant 0 : index
    %635 = vector.load %arg9[%634, %c0_143] : memref<64x64xf32, #tpu.memory_space<vmem>>, vector<8x32xf32>
    tpu.vector_store %arg9[%634, %c0_143], %633 {strides = array<i32>} : memref<64x64xf32, #tpu.memory_space<vmem>>, vector<8x32xf32>,
    %c7_i32_144 = arith.constant 7 : i32
    %636 = arith.subi %c7_i32_144, %c0_i32_136 : i32
    %c8_i32_145 = arith.constant 8 : i32
    %637 = arith.muli %636, %c8_i32_145 : i32
    %638 = tpu.assume_multiple %637, 8 : i32
    %639 = arith.index_cast %638 : i32 to index
    %c96_146 = arith.constant 96 : index
    %640 = vector.load %arg10[%639, %c96_146] : memref<64x192xf32, #tpu.memory_space<vmem>>, vector<8x96xf32>
    %641 = vector.extract_strided_slice %601 {offsets = [0, 96], sizes = [8, 96], strides = [1, 1]} : vector<8x192xf32> to vector<8x96xf32>
    %642 = vector.extract_strided_slice %640 {offsets = [0, 0], sizes = [8, 32], strides = [1, 1]} : vector<8x96xf32> to vector<8x32xf32>
    %643 = vector.extract_strided_slice %641 {offsets = [0, 0], sizes = [8, 32], strides = [1, 1]} : vector<8x96xf32> to vector<8x32xf32>
    %644 = arith.addf %642, %643 : vector<8x32xf32>
    %645 = arith.negf %644 : vector<8x32xf32>
    %646 = math.exp %645 : vector<8x32xf32>
    %cst_147 = arith.constant 1.000000e+00 : f32
    %647 = vector.broadcast %cst_147 : f32 to vector<8x32xf32>
    %648 = arith.addf %647, %646 : vector<8x32xf32>
    %649 = arith.divf %647, %648 : vector<8x32xf32>
    %650 = vector.extract_strided_slice %640 {offsets = [0, 32], sizes = [8, 32], strides = [1, 1]} : vector<8x96xf32> to vector<8x32xf32>
    %651 = vector.extract_strided_slice %641 {offsets = [0, 32], sizes = [8, 32], strides = [1, 1]} : vector<8x96xf32> to vector<8x32xf32>
    %652 = arith.addf %650, %651 : vector<8x32xf32>
    %653 = arith.negf %652 : vector<8x32xf32>
    %654 = math.exp %653 : vector<8x32xf32>
    %cst_148 = arith.constant 1.000000e+00 : f32
    %655 = vector.broadcast %cst_148 : f32 to vector<8x32xf32>
    %656 = arith.addf %655, %654 : vector<8x32xf32>
    %657 = arith.divf %655, %656 : vector<8x32xf32>
    %658 = vector.extract_strided_slice %640 {offsets = [0, 64], sizes = [8, 32], strides = [1, 1]} : vector<8x96xf32> to vector<8x32xf32>
    %659 = vector.extract_strided_slice %641 {offsets = [0, 64], sizes = [8, 32], strides = [1, 1]} : vector<8x96xf32> to vector<8x32xf32>
    %660 = arith.mulf %649, %659 : vector<8x32xf32>
    %661 = arith.addf %658, %660 : vector<8x32xf32>
    %662 = math.tanh %661 : vector<8x32xf32>
    %663 = vector.extract_strided_slice %599 {offsets = [0, 32], sizes = [8, 32], strides = [1, 1]} : vector<8x64xf32> to vector<8x32xf32>
    %cst_149 = arith.constant 1.000000e+00 : f32
    %664 = vector.broadcast %cst_149 : f32 to vector<8x32xf32>
    %665 = arith.subf %664, %657 : vector<8x32xf32>
    %666 = arith.mulf %665, %662 : vector<8x32xf32>
    %667 = arith.mulf %657, %663 : vector<8x32xf32>
    %668 = arith.addf %666, %667 : vector<8x32xf32>
    %669 = arith.index_cast %638 : i32 to index
    %c32_150 = arith.constant 32 : index
    %670 = vector.load %arg9[%669, %c32_150] : memref<64x64xf32, #tpu.memory_space<vmem>>, vector<8x32xf32>
    tpu.vector_store %arg9[%669, %c32_150], %668 {strides = array<i32>} : memref<64x64xf32, #tpu.memory_space<vmem>>, vector<8x32xf32>,
    %671 = tpu.concatenate %633, %668 in 1 : vector<8x32xf32>, vector<8x32xf32> -> vector<8x64xf32>
    %c1_i32_151 = arith.constant 1 : i32
    %cst_152 = arith.constant dense<0.000000e+00> : vector<8x192xf32>
    %672 = tpu.matmul %671, %595, %cst_152 {dimension_numbers = #tpu.dot_dimension_numbers<[1], [0], [0], [1], [0, 0, 1, 1], [], []>} : vector<8x64xf32>, vector<64x192xf32>, vector<8x192xf32> -> vector<8x192xf32>
    %673 = arith.addf %672, %598 : vector<8x192xf32>
    %c8_i32_153 = arith.constant 8 : i32
    %674 = arith.muli %c1_i32_151, %c8_i32_153 : i32
    %675 = tpu.assume_multiple %674, 8 : i32
    %676 = arith.index_cast %675 : i32 to index
    %c0_154 = arith.constant 0 : index
    %677 = vector.load %arg10[%676, %c0_154] : memref<64x192xf32, #tpu.memory_space<vmem>>, vector<8x96xf32>
    %678 = vector.extract_strided_slice %673 {offsets = [0, 0], sizes = [8, 96], strides = [1, 1]} : vector<8x192xf32> to vector<8x96xf32>
    %679 = vector.extract_strided_slice %677 {offsets = [0, 0], sizes = [8, 32], strides = [1, 1]} : vector<8x96xf32> to vector<8x32xf32>
    %680 = vector.extract_strided_slice %678 {offsets = [0, 0], sizes = [8, 32], strides = [1, 1]} : vector<8x96xf32> to vector<8x32xf32>
    %681 = arith.addf %679, %680 : vector<8x32xf32>
    %682 = arith.negf %681 : vector<8x32xf32>
    %683 = math.exp %682 : vector<8x32xf32>
    %cst_155 = arith.constant 1.000000e+00 : f32
    %684 = vector.broadcast %cst_155 : f32 to vector<8x32xf32>
    %685 = arith.addf %684, %683 : vector<8x32xf32>
    %686 = arith.divf %684, %685 : vector<8x32xf32>
    %687 = vector.extract_strided_slice %677 {offsets = [0, 32], sizes = [8, 32], strides = [1, 1]} : vector<8x96xf32> to vector<8x32xf32>
    %688 = vector.extract_strided_slice %678 {offsets = [0, 32], sizes = [8, 32], strides = [1, 1]} : vector<8x96xf32> to vector<8x32xf32>
    %689 = arith.addf %687, %688 : vector<8x32xf32>
    %690 = arith.negf %689 : vector<8x32xf32>
    %691 = math.exp %690 : vector<8x32xf32>
    %cst_156 = arith.constant 1.000000e+00 : f32
    %692 = vector.broadcast %cst_156 : f32 to vector<8x32xf32>
    %693 = arith.addf %692, %691 : vector<8x32xf32>
    %694 = arith.divf %692, %693 : vector<8x32xf32>
    %695 = vector.extract_strided_slice %677 {offsets = [0, 64], sizes = [8, 32], strides = [1, 1]} : vector<8x96xf32> to vector<8x32xf32>
    %696 = vector.extract_strided_slice %678 {offsets = [0, 64], sizes = [8, 32], strides = [1, 1]} : vector<8x96xf32> to vector<8x32xf32>
    %697 = arith.mulf %686, %696 : vector<8x32xf32>
    %698 = arith.addf %695, %697 : vector<8x32xf32>
    %699 = math.tanh %698 : vector<8x32xf32>
    %700 = vector.extract_strided_slice %671 {offsets = [0, 0], sizes = [8, 32], strides = [1, 1]} : vector<8x64xf32> to vector<8x32xf32>
    %cst_157 = arith.constant 1.000000e+00 : f32
    %701 = vector.broadcast %cst_157 : f32 to vector<8x32xf32>
    %702 = arith.subf %701, %694 : vector<8x32xf32>
    %703 = arith.mulf %702, %699 : vector<8x32xf32>
    %704 = arith.mulf %694, %700 : vector<8x32xf32>
    %705 = arith.addf %703, %704 : vector<8x32xf32>
    %706 = arith.index_cast %675 : i32 to index
    %c0_158 = arith.constant 0 : index
    %707 = vector.load %arg9[%706, %c0_158] : memref<64x64xf32, #tpu.memory_space<vmem>>, vector<8x32xf32>
    tpu.vector_store %arg9[%706, %c0_158], %705 {strides = array<i32>} : memref<64x64xf32, #tpu.memory_space<vmem>>, vector<8x32xf32>,
    %c7_i32_159 = arith.constant 7 : i32
    %708 = arith.subi %c7_i32_159, %c1_i32_151 : i32
    %c8_i32_160 = arith.constant 8 : i32
    %709 = arith.muli %708, %c8_i32_160 : i32
    %710 = tpu.assume_multiple %709, 8 : i32
    %711 = arith.index_cast %710 : i32 to index
    %c96_161 = arith.constant 96 : index
    %712 = vector.load %arg10[%711, %c96_161] : memref<64x192xf32, #tpu.memory_space<vmem>>, vector<8x96xf32>
    %713 = vector.extract_strided_slice %673 {offsets = [0, 96], sizes = [8, 96], strides = [1, 1]} : vector<8x192xf32> to vector<8x96xf32>
    %714 = vector.extract_strided_slice %712 {offsets = [0, 0], sizes = [8, 32], strides = [1, 1]} : vector<8x96xf32> to vector<8x32xf32>
    %715 = vector.extract_strided_slice %713 {offsets = [0, 0], sizes = [8, 32], strides = [1, 1]} : vector<8x96xf32> to vector<8x32xf32>
    %716 = arith.addf %714, %715 : vector<8x32xf32>
    %717 = arith.negf %716 : vector<8x32xf32>
    %718 = math.exp %717 : vector<8x32xf32>
    %cst_162 = arith.constant 1.000000e+00 : f32
    %719 = vector.broadcast %cst_162 : f32 to vector<8x32xf32>
    %720 = arith.addf %719, %718 : vector<8x32xf32>
    %721 = arith.divf %719, %720 : vector<8x32xf32>
    %722 = vector.extract_strided_slice %712 {offsets = [0, 32], sizes = [8, 32], strides = [1, 1]} : vector<8x96xf32> to vector<8x32xf32>
    %723 = vector.extract_strided_slice %713 {offsets = [0, 32], sizes = [8, 32], strides = [1, 1]} : vector<8x96xf32> to vector<8x32xf32>
    %724 = arith.addf %722, %723 : vector<8x32xf32>
    %725 = arith.negf %724 : vector<8x32xf32>
    %726 = math.exp %725 : vector<8x32xf32>
    %cst_163 = arith.constant 1.000000e+00 : f32
    %727 = vector.broadcast %cst_163 : f32 to vector<8x32xf32>
    %728 = arith.addf %727, %726 : vector<8x32xf32>
    %729 = arith.divf %727, %728 : vector<8x32xf32>
    %730 = vector.extract_strided_slice %712 {offsets = [0, 64], sizes = [8, 32], strides = [1, 1]} : vector<8x96xf32> to vector<8x32xf32>
    %731 = vector.extract_strided_slice %713 {offsets = [0, 64], sizes = [8, 32], strides = [1, 1]} : vector<8x96xf32> to vector<8x32xf32>
    %732 = arith.mulf %721, %731 : vector<8x32xf32>
    %733 = arith.addf %730, %732 : vector<8x32xf32>
    %734 = math.tanh %733 : vector<8x32xf32>
    %735 = vector.extract_strided_slice %671 {offsets = [0, 32], sizes = [8, 32], strides = [1, 1]} : vector<8x64xf32> to vector<8x32xf32>
    %cst_164 = arith.constant 1.000000e+00 : f32
    %736 = vector.broadcast %cst_164 : f32 to vector<8x32xf32>
    %737 = arith.subf %736, %729 : vector<8x32xf32>
    %738 = arith.mulf %737, %734 : vector<8x32xf32>
    %739 = arith.mulf %729, %735 : vector<8x32xf32>
    %740 = arith.addf %738, %739 : vector<8x32xf32>
    %741 = arith.index_cast %710 : i32 to index
    %c32_165 = arith.constant 32 : index
    %742 = vector.load %arg9[%741, %c32_165] : memref<64x64xf32, #tpu.memory_space<vmem>>, vector<8x32xf32>
    tpu.vector_store %arg9[%741, %c32_165], %740 {strides = array<i32>} : memref<64x64xf32, #tpu.memory_space<vmem>>, vector<8x32xf32>,
    %743 = tpu.concatenate %705, %740 in 1 : vector<8x32xf32>, vector<8x32xf32> -> vector<8x64xf32>
    %c2_i32_166 = arith.constant 2 : i32
    %cst_167 = arith.constant dense<0.000000e+00> : vector<8x192xf32>
    %744 = tpu.matmul %743, %595, %cst_167 {dimension_numbers = #tpu.dot_dimension_numbers<[1], [0], [0], [1], [0, 0, 1, 1], [], []>} : vector<8x64xf32>, vector<64x192xf32>, vector<8x192xf32> -> vector<8x192xf32>
    %745 = arith.addf %744, %598 : vector<8x192xf32>
    %c8_i32_168 = arith.constant 8 : i32
    %746 = arith.muli %c2_i32_166, %c8_i32_168 : i32
    %747 = tpu.assume_multiple %746, 8 : i32
    %748 = arith.index_cast %747 : i32 to index
    %c0_169 = arith.constant 0 : index
    %749 = vector.load %arg10[%748, %c0_169] : memref<64x192xf32, #tpu.memory_space<vmem>>, vector<8x96xf32>
    %750 = vector.extract_strided_slice %745 {offsets = [0, 0], sizes = [8, 96], strides = [1, 1]} : vector<8x192xf32> to vector<8x96xf32>
    %751 = vector.extract_strided_slice %749 {offsets = [0, 0], sizes = [8, 32], strides = [1, 1]} : vector<8x96xf32> to vector<8x32xf32>
    %752 = vector.extract_strided_slice %750 {offsets = [0, 0], sizes = [8, 32], strides = [1, 1]} : vector<8x96xf32> to vector<8x32xf32>
    %753 = arith.addf %751, %752 : vector<8x32xf32>
    %754 = arith.negf %753 : vector<8x32xf32>
    %755 = math.exp %754 : vector<8x32xf32>
    %cst_170 = arith.constant 1.000000e+00 : f32
    %756 = vector.broadcast %cst_170 : f32 to vector<8x32xf32>
    %757 = arith.addf %756, %755 : vector<8x32xf32>
    %758 = arith.divf %756, %757 : vector<8x32xf32>
    %759 = vector.extract_strided_slice %749 {offsets = [0, 32], sizes = [8, 32], strides = [1, 1]} : vector<8x96xf32> to vector<8x32xf32>
    %760 = vector.extract_strided_slice %750 {offsets = [0, 32], sizes = [8, 32], strides = [1, 1]} : vector<8x96xf32> to vector<8x32xf32>
    %761 = arith.addf %759, %760 : vector<8x32xf32>
    %762 = arith.negf %761 : vector<8x32xf32>
    %763 = math.exp %762 : vector<8x32xf32>
    %cst_171 = arith.constant 1.000000e+00 : f32
    %764 = vector.broadcast %cst_171 : f32 to vector<8x32xf32>
    %765 = arith.addf %764, %763 : vector<8x32xf32>
    %766 = arith.divf %764, %765 : vector<8x32xf32>
    %767 = vector.extract_strided_slice %749 {offsets = [0, 64], sizes = [8, 32], strides = [1, 1]} : vector<8x96xf32> to vector<8x32xf32>
    %768 = vector.extract_strided_slice %750 {offsets = [0, 64], sizes = [8, 32], strides = [1, 1]} : vector<8x96xf32> to vector<8x32xf32>
    %769 = arith.mulf %758, %768 : vector<8x32xf32>
    %770 = arith.addf %767, %769 : vector<8x32xf32>
    %771 = math.tanh %770 : vector<8x32xf32>
    %772 = vector.extract_strided_slice %743 {offsets = [0, 0], sizes = [8, 32], strides = [1, 1]} : vector<8x64xf32> to vector<8x32xf32>
    %cst_172 = arith.constant 1.000000e+00 : f32
    %773 = vector.broadcast %cst_172 : f32 to vector<8x32xf32>
    %774 = arith.subf %773, %766 : vector<8x32xf32>
    %775 = arith.mulf %774, %771 : vector<8x32xf32>
    %776 = arith.mulf %766, %772 : vector<8x32xf32>
    %777 = arith.addf %775, %776 : vector<8x32xf32>
    %778 = arith.index_cast %747 : i32 to index
    %c0_173 = arith.constant 0 : index
    %779 = vector.load %arg9[%778, %c0_173] : memref<64x64xf32, #tpu.memory_space<vmem>>, vector<8x32xf32>
    tpu.vector_store %arg9[%778, %c0_173], %777 {strides = array<i32>} : memref<64x64xf32, #tpu.memory_space<vmem>>, vector<8x32xf32>,
    %c7_i32_174 = arith.constant 7 : i32
    %780 = arith.subi %c7_i32_174, %c2_i32_166 : i32
    %c8_i32_175 = arith.constant 8 : i32
    %781 = arith.muli %780, %c8_i32_175 : i32
    %782 = tpu.assume_multiple %781, 8 : i32
    %783 = arith.index_cast %782 : i32 to index
    %c96_176 = arith.constant 96 : index
    %784 = vector.load %arg10[%783, %c96_176] : memref<64x192xf32, #tpu.memory_space<vmem>>, vector<8x96xf32>
    %785 = vector.extract_strided_slice %745 {offsets = [0, 96], sizes = [8, 96], strides = [1, 1]} : vector<8x192xf32> to vector<8x96xf32>
    %786 = vector.extract_strided_slice %784 {offsets = [0, 0], sizes = [8, 32], strides = [1, 1]} : vector<8x96xf32> to vector<8x32xf32>
    %787 = vector.extract_strided_slice %785 {offsets = [0, 0], sizes = [8, 32], strides = [1, 1]} : vector<8x96xf32> to vector<8x32xf32>
    %788 = arith.addf %786, %787 : vector<8x32xf32>
    %789 = arith.negf %788 : vector<8x32xf32>
    %790 = math.exp %789 : vector<8x32xf32>
    %cst_177 = arith.constant 1.000000e+00 : f32
    %791 = vector.broadcast %cst_177 : f32 to vector<8x32xf32>
    %792 = arith.addf %791, %790 : vector<8x32xf32>
    %793 = arith.divf %791, %792 : vector<8x32xf32>
    %794 = vector.extract_strided_slice %784 {offsets = [0, 32], sizes = [8, 32], strides = [1, 1]} : vector<8x96xf32> to vector<8x32xf32>
    %795 = vector.extract_strided_slice %785 {offsets = [0, 32], sizes = [8, 32], strides = [1, 1]} : vector<8x96xf32> to vector<8x32xf32>
    %796 = arith.addf %794, %795 : vector<8x32xf32>
    %797 = arith.negf %796 : vector<8x32xf32>
    %798 = math.exp %797 : vector<8x32xf32>
    %cst_178 = arith.constant 1.000000e+00 : f32
    %799 = vector.broadcast %cst_178 : f32 to vector<8x32xf32>
    %800 = arith.addf %799, %798 : vector<8x32xf32>
    %801 = arith.divf %799, %800 : vector<8x32xf32>
    %802 = vector.extract_strided_slice %784 {offsets = [0, 64], sizes = [8, 32], strides = [1, 1]} : vector<8x96xf32> to vector<8x32xf32>
    %803 = vector.extract_strided_slice %785 {offsets = [0, 64], sizes = [8, 32], strides = [1, 1]} : vector<8x96xf32> to vector<8x32xf32>
    %804 = arith.mulf %793, %803 : vector<8x32xf32>
    %805 = arith.addf %802, %804 : vector<8x32xf32>
    %806 = math.tanh %805 : vector<8x32xf32>
    %807 = vector.extract_strided_slice %743 {offsets = [0, 32], sizes = [8, 32], strides = [1, 1]} : vector<8x64xf32> to vector<8x32xf32>
    %cst_179 = arith.constant 1.000000e+00 : f32
    %808 = vector.broadcast %cst_179 : f32 to vector<8x32xf32>
    %809 = arith.subf %808, %801 : vector<8x32xf32>
    %810 = arith.mulf %809, %806 : vector<8x32xf32>
    %811 = arith.mulf %801, %807 : vector<8x32xf32>
    %812 = arith.addf %810, %811 : vector<8x32xf32>
    %813 = arith.index_cast %782 : i32 to index
    %c32_180 = arith.constant 32 : index
    %814 = vector.load %arg9[%813, %c32_180] : memref<64x64xf32, #tpu.memory_space<vmem>>, vector<8x32xf32>
    tpu.vector_store %arg9[%813, %c32_180], %812 {strides = array<i32>} : memref<64x64xf32, #tpu.memory_space<vmem>>, vector<8x32xf32>,
    %815 = tpu.concatenate %777, %812 in 1 : vector<8x32xf32>, vector<8x32xf32> -> vector<8x64xf32>
    %c3_i32_181 = arith.constant 3 : i32
    %cst_182 = arith.constant dense<0.000000e+00> : vector<8x192xf32>
    %816 = tpu.matmul %815, %595, %cst_182 {dimension_numbers = #tpu.dot_dimension_numbers<[1], [0], [0], [1], [0, 0, 1, 1], [], []>} : vector<8x64xf32>, vector<64x192xf32>, vector<8x192xf32> -> vector<8x192xf32>
    %817 = arith.addf %816, %598 : vector<8x192xf32>
    %c8_i32_183 = arith.constant 8 : i32
    %818 = arith.muli %c3_i32_181, %c8_i32_183 : i32
    %819 = tpu.assume_multiple %818, 8 : i32
    %820 = arith.index_cast %819 : i32 to index
    %c0_184 = arith.constant 0 : index
    %821 = vector.load %arg10[%820, %c0_184] : memref<64x192xf32, #tpu.memory_space<vmem>>, vector<8x96xf32>
    %822 = vector.extract_strided_slice %817 {offsets = [0, 0], sizes = [8, 96], strides = [1, 1]} : vector<8x192xf32> to vector<8x96xf32>
    %823 = vector.extract_strided_slice %821 {offsets = [0, 0], sizes = [8, 32], strides = [1, 1]} : vector<8x96xf32> to vector<8x32xf32>
    %824 = vector.extract_strided_slice %822 {offsets = [0, 0], sizes = [8, 32], strides = [1, 1]} : vector<8x96xf32> to vector<8x32xf32>
    %825 = arith.addf %823, %824 : vector<8x32xf32>
    %826 = arith.negf %825 : vector<8x32xf32>
    %827 = math.exp %826 : vector<8x32xf32>
    %cst_185 = arith.constant 1.000000e+00 : f32
    %828 = vector.broadcast %cst_185 : f32 to vector<8x32xf32>
    %829 = arith.addf %828, %827 : vector<8x32xf32>
    %830 = arith.divf %828, %829 : vector<8x32xf32>
    %831 = vector.extract_strided_slice %821 {offsets = [0, 32], sizes = [8, 32], strides = [1, 1]} : vector<8x96xf32> to vector<8x32xf32>
    %832 = vector.extract_strided_slice %822 {offsets = [0, 32], sizes = [8, 32], strides = [1, 1]} : vector<8x96xf32> to vector<8x32xf32>
    %833 = arith.addf %831, %832 : vector<8x32xf32>
    %834 = arith.negf %833 : vector<8x32xf32>
    %835 = math.exp %834 : vector<8x32xf32>
    %cst_186 = arith.constant 1.000000e+00 : f32
    %836 = vector.broadcast %cst_186 : f32 to vector<8x32xf32>
    %837 = arith.addf %836, %835 : vector<8x32xf32>
    %838 = arith.divf %836, %837 : vector<8x32xf32>
    %839 = vector.extract_strided_slice %821 {offsets = [0, 64], sizes = [8, 32], strides = [1, 1]} : vector<8x96xf32> to vector<8x32xf32>
    %840 = vector.extract_strided_slice %822 {offsets = [0, 64], sizes = [8, 32], strides = [1, 1]} : vector<8x96xf32> to vector<8x32xf32>
    %841 = arith.mulf %830, %840 : vector<8x32xf32>
    %842 = arith.addf %839, %841 : vector<8x32xf32>
    %843 = math.tanh %842 : vector<8x32xf32>
    %844 = vector.extract_strided_slice %815 {offsets = [0, 0], sizes = [8, 32], strides = [1, 1]} : vector<8x64xf32> to vector<8x32xf32>
    %cst_187 = arith.constant 1.000000e+00 : f32
    %845 = vector.broadcast %cst_187 : f32 to vector<8x32xf32>
    %846 = arith.subf %845, %838 : vector<8x32xf32>
    %847 = arith.mulf %846, %843 : vector<8x32xf32>
    %848 = arith.mulf %838, %844 : vector<8x32xf32>
    %849 = arith.addf %847, %848 : vector<8x32xf32>
    %850 = arith.index_cast %819 : i32 to index
    %c0_188 = arith.constant 0 : index
    %851 = vector.load %arg9[%850, %c0_188] : memref<64x64xf32, #tpu.memory_space<vmem>>, vector<8x32xf32>
    tpu.vector_store %arg9[%850, %c0_188], %849 {strides = array<i32>} : memref<64x64xf32, #tpu.memory_space<vmem>>, vector<8x32xf32>,
    %c7_i32_189 = arith.constant 7 : i32
    %852 = arith.subi %c7_i32_189, %c3_i32_181 : i32
    %c8_i32_190 = arith.constant 8 : i32
    %853 = arith.muli %852, %c8_i32_190 : i32
    %854 = tpu.assume_multiple %853, 8 : i32
    %855 = arith.index_cast %854 : i32 to index
    %c96_191 = arith.constant 96 : index
    %856 = vector.load %arg10[%855, %c96_191] : memref<64x192xf32, #tpu.memory_space<vmem>>, vector<8x96xf32>
    %857 = vector.extract_strided_slice %817 {offsets = [0, 96], sizes = [8, 96], strides = [1, 1]} : vector<8x192xf32> to vector<8x96xf32>
    %858 = vector.extract_strided_slice %856 {offsets = [0, 0], sizes = [8, 32], strides = [1, 1]} : vector<8x96xf32> to vector<8x32xf32>
    %859 = vector.extract_strided_slice %857 {offsets = [0, 0], sizes = [8, 32], strides = [1, 1]} : vector<8x96xf32> to vector<8x32xf32>
    %860 = arith.addf %858, %859 : vector<8x32xf32>
    %861 = arith.negf %860 : vector<8x32xf32>
    %862 = math.exp %861 : vector<8x32xf32>
    %cst_192 = arith.constant 1.000000e+00 : f32
    %863 = vector.broadcast %cst_192 : f32 to vector<8x32xf32>
    %864 = arith.addf %863, %862 : vector<8x32xf32>
    %865 = arith.divf %863, %864 : vector<8x32xf32>
    %866 = vector.extract_strided_slice %856 {offsets = [0, 32], sizes = [8, 32], strides = [1, 1]} : vector<8x96xf32> to vector<8x32xf32>
    %867 = vector.extract_strided_slice %857 {offsets = [0, 32], sizes = [8, 32], strides = [1, 1]} : vector<8x96xf32> to vector<8x32xf32>
    %868 = arith.addf %866, %867 : vector<8x32xf32>
    %869 = arith.negf %868 : vector<8x32xf32>
    %870 = math.exp %869 : vector<8x32xf32>
    %cst_193 = arith.constant 1.000000e+00 : f32
    %871 = vector.broadcast %cst_193 : f32 to vector<8x32xf32>
    %872 = arith.addf %871, %870 : vector<8x32xf32>
    %873 = arith.divf %871, %872 : vector<8x32xf32>
    %874 = vector.extract_strided_slice %856 {offsets = [0, 64], sizes = [8, 32], strides = [1, 1]} : vector<8x96xf32> to vector<8x32xf32>
    %875 = vector.extract_strided_slice %857 {offsets = [0, 64], sizes = [8, 32], strides = [1, 1]} : vector<8x96xf32> to vector<8x32xf32>
    %876 = arith.mulf %865, %875 : vector<8x32xf32>
    %877 = arith.addf %874, %876 : vector<8x32xf32>
    %878 = math.tanh %877 : vector<8x32xf32>
    %879 = vector.extract_strided_slice %815 {offsets = [0, 32], sizes = [8, 32], strides = [1, 1]} : vector<8x64xf32> to vector<8x32xf32>
    %cst_194 = arith.constant 1.000000e+00 : f32
    %880 = vector.broadcast %cst_194 : f32 to vector<8x32xf32>
    %881 = arith.subf %880, %873 : vector<8x32xf32>
    %882 = arith.mulf %881, %878 : vector<8x32xf32>
    %883 = arith.mulf %873, %879 : vector<8x32xf32>
    %884 = arith.addf %882, %883 : vector<8x32xf32>
    %885 = arith.index_cast %854 : i32 to index
    %c32_195 = arith.constant 32 : index
    %886 = vector.load %arg9[%885, %c32_195] : memref<64x64xf32, #tpu.memory_space<vmem>>, vector<8x32xf32>
    tpu.vector_store %arg9[%885, %c32_195], %884 {strides = array<i32>} : memref<64x64xf32, #tpu.memory_space<vmem>>, vector<8x32xf32>,
    %887 = tpu.concatenate %849, %884 in 1 : vector<8x32xf32>, vector<8x32xf32> -> vector<8x64xf32>
    %c4_i32_196 = arith.constant 4 : i32
    %cst_197 = arith.constant dense<0.000000e+00> : vector<8x192xf32>
    %888 = tpu.matmul %887, %595, %cst_197 {dimension_numbers = #tpu.dot_dimension_numbers<[1], [0], [0], [1], [0, 0, 1, 1], [], []>} : vector<8x64xf32>, vector<64x192xf32>, vector<8x192xf32> -> vector<8x192xf32>
    %889 = arith.addf %888, %598 : vector<8x192xf32>
    %c8_i32_198 = arith.constant 8 : i32
    %890 = arith.muli %c4_i32_196, %c8_i32_198 : i32
    %891 = tpu.assume_multiple %890, 8 : i32
    %892 = arith.index_cast %891 : i32 to index
    %c0_199 = arith.constant 0 : index
    %893 = vector.load %arg10[%892, %c0_199] : memref<64x192xf32, #tpu.memory_space<vmem>>, vector<8x96xf32>
    %894 = vector.extract_strided_slice %889 {offsets = [0, 0], sizes = [8, 96], strides = [1, 1]} : vector<8x192xf32> to vector<8x96xf32>
    %895 = vector.extract_strided_slice %893 {offsets = [0, 0], sizes = [8, 32], strides = [1, 1]} : vector<8x96xf32> to vector<8x32xf32>
    %896 = vector.extract_strided_slice %894 {offsets = [0, 0], sizes = [8, 32], strides = [1, 1]} : vector<8x96xf32> to vector<8x32xf32>
    %897 = arith.addf %895, %896 : vector<8x32xf32>
    %898 = arith.negf %897 : vector<8x32xf32>
    %899 = math.exp %898 : vector<8x32xf32>
    %cst_200 = arith.constant 1.000000e+00 : f32
    %900 = vector.broadcast %cst_200 : f32 to vector<8x32xf32>
    %901 = arith.addf %900, %899 : vector<8x32xf32>
    %902 = arith.divf %900, %901 : vector<8x32xf32>
    %903 = vector.extract_strided_slice %893 {offsets = [0, 32], sizes = [8, 32], strides = [1, 1]} : vector<8x96xf32> to vector<8x32xf32>
    %904 = vector.extract_strided_slice %894 {offsets = [0, 32], sizes = [8, 32], strides = [1, 1]} : vector<8x96xf32> to vector<8x32xf32>
    %905 = arith.addf %903, %904 : vector<8x32xf32>
    %906 = arith.negf %905 : vector<8x32xf32>
    %907 = math.exp %906 : vector<8x32xf32>
    %cst_201 = arith.constant 1.000000e+00 : f32
    %908 = vector.broadcast %cst_201 : f32 to vector<8x32xf32>
    %909 = arith.addf %908, %907 : vector<8x32xf32>
    %910 = arith.divf %908, %909 : vector<8x32xf32>
    %911 = vector.extract_strided_slice %893 {offsets = [0, 64], sizes = [8, 32], strides = [1, 1]} : vector<8x96xf32> to vector<8x32xf32>
    %912 = vector.extract_strided_slice %894 {offsets = [0, 64], sizes = [8, 32], strides = [1, 1]} : vector<8x96xf32> to vector<8x32xf32>
    %913 = arith.mulf %902, %912 : vector<8x32xf32>
    %914 = arith.addf %911, %913 : vector<8x32xf32>
    %915 = math.tanh %914 : vector<8x32xf32>
    %916 = vector.extract_strided_slice %887 {offsets = [0, 0], sizes = [8, 32], strides = [1, 1]} : vector<8x64xf32> to vector<8x32xf32>
    %cst_202 = arith.constant 1.000000e+00 : f32
    %917 = vector.broadcast %cst_202 : f32 to vector<8x32xf32>
    %918 = arith.subf %917, %910 : vector<8x32xf32>
    %919 = arith.mulf %918, %915 : vector<8x32xf32>
    %920 = arith.mulf %910, %916 : vector<8x32xf32>
    %921 = arith.addf %919, %920 : vector<8x32xf32>
    %922 = arith.index_cast %891 : i32 to index
    %c0_203 = arith.constant 0 : index
    %923 = vector.load %arg9[%922, %c0_203] : memref<64x64xf32, #tpu.memory_space<vmem>>, vector<8x32xf32>
    tpu.vector_store %arg9[%922, %c0_203], %921 {strides = array<i32>} : memref<64x64xf32, #tpu.memory_space<vmem>>, vector<8x32xf32>,
    %c7_i32_204 = arith.constant 7 : i32
    %924 = arith.subi %c7_i32_204, %c4_i32_196 : i32
    %c8_i32_205 = arith.constant 8 : i32
    %925 = arith.muli %924, %c8_i32_205 : i32
    %926 = tpu.assume_multiple %925, 8 : i32
    %927 = arith.index_cast %926 : i32 to index
    %c96_206 = arith.constant 96 : index
    %928 = vector.load %arg10[%927, %c96_206] : memref<64x192xf32, #tpu.memory_space<vmem>>, vector<8x96xf32>
    %929 = vector.extract_strided_slice %889 {offsets = [0, 96], sizes = [8, 96], strides = [1, 1]} : vector<8x192xf32> to vector<8x96xf32>
    %930 = vector.extract_strided_slice %928 {offsets = [0, 0], sizes = [8, 32], strides = [1, 1]} : vector<8x96xf32> to vector<8x32xf32>
    %931 = vector.extract_strided_slice %929 {offsets = [0, 0], sizes = [8, 32], strides = [1, 1]} : vector<8x96xf32> to vector<8x32xf32>
    %932 = arith.addf %930, %931 : vector<8x32xf32>
    %933 = arith.negf %932 : vector<8x32xf32>
    %934 = math.exp %933 : vector<8x32xf32>
    %cst_207 = arith.constant 1.000000e+00 : f32
    %935 = vector.broadcast %cst_207 : f32 to vector<8x32xf32>
    %936 = arith.addf %935, %934 : vector<8x32xf32>
    %937 = arith.divf %935, %936 : vector<8x32xf32>
    %938 = vector.extract_strided_slice %928 {offsets = [0, 32], sizes = [8, 32], strides = [1, 1]} : vector<8x96xf32> to vector<8x32xf32>
    %939 = vector.extract_strided_slice %929 {offsets = [0, 32], sizes = [8, 32], strides = [1, 1]} : vector<8x96xf32> to vector<8x32xf32>
    %940 = arith.addf %938, %939 : vector<8x32xf32>
    %941 = arith.negf %940 : vector<8x32xf32>
    %942 = math.exp %941 : vector<8x32xf32>
    %cst_208 = arith.constant 1.000000e+00 : f32
    %943 = vector.broadcast %cst_208 : f32 to vector<8x32xf32>
    %944 = arith.addf %943, %942 : vector<8x32xf32>
    %945 = arith.divf %943, %944 : vector<8x32xf32>
    %946 = vector.extract_strided_slice %928 {offsets = [0, 64], sizes = [8, 32], strides = [1, 1]} : vector<8x96xf32> to vector<8x32xf32>
    %947 = vector.extract_strided_slice %929 {offsets = [0, 64], sizes = [8, 32], strides = [1, 1]} : vector<8x96xf32> to vector<8x32xf32>
    %948 = arith.mulf %937, %947 : vector<8x32xf32>
    %949 = arith.addf %946, %948 : vector<8x32xf32>
    %950 = math.tanh %949 : vector<8x32xf32>
    %951 = vector.extract_strided_slice %887 {offsets = [0, 32], sizes = [8, 32], strides = [1, 1]} : vector<8x64xf32> to vector<8x32xf32>
    %cst_209 = arith.constant 1.000000e+00 : f32
    %952 = vector.broadcast %cst_209 : f32 to vector<8x32xf32>
    %953 = arith.subf %952, %945 : vector<8x32xf32>
    %954 = arith.mulf %953, %950 : vector<8x32xf32>
    %955 = arith.mulf %945, %951 : vector<8x32xf32>
    %956 = arith.addf %954, %955 : vector<8x32xf32>
    %957 = arith.index_cast %926 : i32 to index
    %c32_210 = arith.constant 32 : index
    %958 = vector.load %arg9[%957, %c32_210] : memref<64x64xf32, #tpu.memory_space<vmem>>, vector<8x32xf32>
    tpu.vector_store %arg9[%957, %c32_210], %956 {strides = array<i32>} : memref<64x64xf32, #tpu.memory_space<vmem>>, vector<8x32xf32>,
    %959 = tpu.concatenate %921, %956 in 1 : vector<8x32xf32>, vector<8x32xf32> -> vector<8x64xf32>
    %c5_i32_211 = arith.constant 5 : i32
    %cst_212 = arith.constant dense<0.000000e+00> : vector<8x192xf32>
    %960 = tpu.matmul %959, %595, %cst_212 {dimension_numbers = #tpu.dot_dimension_numbers<[1], [0], [0], [1], [0, 0, 1, 1], [], []>} : vector<8x64xf32>, vector<64x192xf32>, vector<8x192xf32> -> vector<8x192xf32>
    %961 = arith.addf %960, %598 : vector<8x192xf32>
    %c8_i32_213 = arith.constant 8 : i32
    %962 = arith.muli %c5_i32_211, %c8_i32_213 : i32
    %963 = tpu.assume_multiple %962, 8 : i32
    %964 = arith.index_cast %963 : i32 to index
    %c0_214 = arith.constant 0 : index
    %965 = vector.load %arg10[%964, %c0_214] : memref<64x192xf32, #tpu.memory_space<vmem>>, vector<8x96xf32>
    %966 = vector.extract_strided_slice %961 {offsets = [0, 0], sizes = [8, 96], strides = [1, 1]} : vector<8x192xf32> to vector<8x96xf32>
    %967 = vector.extract_strided_slice %965 {offsets = [0, 0], sizes = [8, 32], strides = [1, 1]} : vector<8x96xf32> to vector<8x32xf32>
    %968 = vector.extract_strided_slice %966 {offsets = [0, 0], sizes = [8, 32], strides = [1, 1]} : vector<8x96xf32> to vector<8x32xf32>
    %969 = arith.addf %967, %968 : vector<8x32xf32>
    %970 = arith.negf %969 : vector<8x32xf32>
    %971 = math.exp %970 : vector<8x32xf32>
    %cst_215 = arith.constant 1.000000e+00 : f32
    %972 = vector.broadcast %cst_215 : f32 to vector<8x32xf32>
    %973 = arith.addf %972, %971 : vector<8x32xf32>
    %974 = arith.divf %972, %973 : vector<8x32xf32>
    %975 = vector.extract_strided_slice %965 {offsets = [0, 32], sizes = [8, 32], strides = [1, 1]} : vector<8x96xf32> to vector<8x32xf32>
    %976 = vector.extract_strided_slice %966 {offsets = [0, 32], sizes = [8, 32], strides = [1, 1]} : vector<8x96xf32> to vector<8x32xf32>
    %977 = arith.addf %975, %976 : vector<8x32xf32>
    %978 = arith.negf %977 : vector<8x32xf32>
    %979 = math.exp %978 : vector<8x32xf32>
    %cst_216 = arith.constant 1.000000e+00 : f32
    %980 = vector.broadcast %cst_216 : f32 to vector<8x32xf32>
    %981 = arith.addf %980, %979 : vector<8x32xf32>
    %982 = arith.divf %980, %981 : vector<8x32xf32>
    %983 = vector.extract_strided_slice %965 {offsets = [0, 64], sizes = [8, 32], strides = [1, 1]} : vector<8x96xf32> to vector<8x32xf32>
    %984 = vector.extract_strided_slice %966 {offsets = [0, 64], sizes = [8, 32], strides = [1, 1]} : vector<8x96xf32> to vector<8x32xf32>
    %985 = arith.mulf %974, %984 : vector<8x32xf32>
    %986 = arith.addf %983, %985 : vector<8x32xf32>
    %987 = math.tanh %986 : vector<8x32xf32>
    %988 = vector.extract_strided_slice %959 {offsets = [0, 0], sizes = [8, 32], strides = [1, 1]} : vector<8x64xf32> to vector<8x32xf32>
    %cst_217 = arith.constant 1.000000e+00 : f32
    %989 = vector.broadcast %cst_217 : f32 to vector<8x32xf32>
    %990 = arith.subf %989, %982 : vector<8x32xf32>
    %991 = arith.mulf %990, %987 : vector<8x32xf32>
    %992 = arith.mulf %982, %988 : vector<8x32xf32>
    %993 = arith.addf %991, %992 : vector<8x32xf32>
    %994 = arith.index_cast %963 : i32 to index
    %c0_218 = arith.constant 0 : index
    %995 = vector.load %arg9[%994, %c0_218] : memref<64x64xf32, #tpu.memory_space<vmem>>, vector<8x32xf32>
    tpu.vector_store %arg9[%994, %c0_218], %993 {strides = array<i32>} : memref<64x64xf32, #tpu.memory_space<vmem>>, vector<8x32xf32>,
    %c7_i32_219 = arith.constant 7 : i32
    %996 = arith.subi %c7_i32_219, %c5_i32_211 : i32
    %c8_i32_220 = arith.constant 8 : i32
    %997 = arith.muli %996, %c8_i32_220 : i32
    %998 = tpu.assume_multiple %997, 8 : i32
    %999 = arith.index_cast %998 : i32 to index
    %c96_221 = arith.constant 96 : index
    %1000 = vector.load %arg10[%999, %c96_221] : memref<64x192xf32, #tpu.memory_space<vmem>>, vector<8x96xf32>
    %1001 = vector.extract_strided_slice %961 {offsets = [0, 96], sizes = [8, 96], strides = [1, 1]} : vector<8x192xf32> to vector<8x96xf32>
    %1002 = vector.extract_strided_slice %1000 {offsets = [0, 0], sizes = [8, 32], strides = [1, 1]} : vector<8x96xf32> to vector<8x32xf32>
    %1003 = vector.extract_strided_slice %1001 {offsets = [0, 0], sizes = [8, 32], strides = [1, 1]} : vector<8x96xf32> to vector<8x32xf32>
    %1004 = arith.addf %1002, %1003 : vector<8x32xf32>
    %1005 = arith.negf %1004 : vector<8x32xf32>
    %1006 = math.exp %1005 : vector<8x32xf32>
    %cst_222 = arith.constant 1.000000e+00 : f32
    %1007 = vector.broadcast %cst_222 : f32 to vector<8x32xf32>
    %1008 = arith.addf %1007, %1006 : vector<8x32xf32>
    %1009 = arith.divf %1007, %1008 : vector<8x32xf32>
    %1010 = vector.extract_strided_slice %1000 {offsets = [0, 32], sizes = [8, 32], strides = [1, 1]} : vector<8x96xf32> to vector<8x32xf32>
    %1011 = vector.extract_strided_slice %1001 {offsets = [0, 32], sizes = [8, 32], strides = [1, 1]} : vector<8x96xf32> to vector<8x32xf32>
    %1012 = arith.addf %1010, %1011 : vector<8x32xf32>
    %1013 = arith.negf %1012 : vector<8x32xf32>
    %1014 = math.exp %1013 : vector<8x32xf32>
    %cst_223 = arith.constant 1.000000e+00 : f32
    %1015 = vector.broadcast %cst_223 : f32 to vector<8x32xf32>
    %1016 = arith.addf %1015, %1014 : vector<8x32xf32>
    %1017 = arith.divf %1015, %1016 : vector<8x32xf32>
    %1018 = vector.extract_strided_slice %1000 {offsets = [0, 64], sizes = [8, 32], strides = [1, 1]} : vector<8x96xf32> to vector<8x32xf32>
    %1019 = vector.extract_strided_slice %1001 {offsets = [0, 64], sizes = [8, 32], strides = [1, 1]} : vector<8x96xf32> to vector<8x32xf32>
    %1020 = arith.mulf %1009, %1019 : vector<8x32xf32>
    %1021 = arith.addf %1018, %1020 : vector<8x32xf32>
    %1022 = math.tanh %1021 : vector<8x32xf32>
    %1023 = vector.extract_strided_slice %959 {offsets = [0, 32], sizes = [8, 32], strides = [1, 1]} : vector<8x64xf32> to vector<8x32xf32>
    %cst_224 = arith.constant 1.000000e+00 : f32
    %1024 = vector.broadcast %cst_224 : f32 to vector<8x32xf32>
    %1025 = arith.subf %1024, %1017 : vector<8x32xf32>
    %1026 = arith.mulf %1025, %1022 : vector<8x32xf32>
    %1027 = arith.mulf %1017, %1023 : vector<8x32xf32>
    %1028 = arith.addf %1026, %1027 : vector<8x32xf32>
    %1029 = arith.index_cast %998 : i32 to index
    %c32_225 = arith.constant 32 : index
    %1030 = vector.load %arg9[%1029, %c32_225] : memref<64x64xf32, #tpu.memory_space<vmem>>, vector<8x32xf32>
    tpu.vector_store %arg9[%1029, %c32_225], %1028 {strides = array<i32>} : memref<64x64xf32, #tpu.memory_space<vmem>>, vector<8x32xf32>,
    %1031 = tpu.concatenate %993, %1028 in 1 : vector<8x32xf32>, vector<8x32xf32> -> vector<8x64xf32>
    %c6_i32_226 = arith.constant 6 : i32
    %cst_227 = arith.constant dense<0.000000e+00> : vector<8x192xf32>
    %1032 = tpu.matmul %1031, %595, %cst_227 {dimension_numbers = #tpu.dot_dimension_numbers<[1], [0], [0], [1], [0, 0, 1, 1], [], []>} : vector<8x64xf32>, vector<64x192xf32>, vector<8x192xf32> -> vector<8x192xf32>
    %1033 = arith.addf %1032, %598 : vector<8x192xf32>
    %c8_i32_228 = arith.constant 8 : i32
    %1034 = arith.muli %c6_i32_226, %c8_i32_228 : i32
    %1035 = tpu.assume_multiple %1034, 8 : i32
    %1036 = arith.index_cast %1035 : i32 to index
    %c0_229 = arith.constant 0 : index
    %1037 = vector.load %arg10[%1036, %c0_229] : memref<64x192xf32, #tpu.memory_space<vmem>>, vector<8x96xf32>
    %1038 = vector.extract_strided_slice %1033 {offsets = [0, 0], sizes = [8, 96], strides = [1, 1]} : vector<8x192xf32> to vector<8x96xf32>
    %1039 = vector.extract_strided_slice %1037 {offsets = [0, 0], sizes = [8, 32], strides = [1, 1]} : vector<8x96xf32> to vector<8x32xf32>
    %1040 = vector.extract_strided_slice %1038 {offsets = [0, 0], sizes = [8, 32], strides = [1, 1]} : vector<8x96xf32> to vector<8x32xf32>
    %1041 = arith.addf %1039, %1040 : vector<8x32xf32>
    %1042 = arith.negf %1041 : vector<8x32xf32>
    %1043 = math.exp %1042 : vector<8x32xf32>
    %cst_230 = arith.constant 1.000000e+00 : f32
    %1044 = vector.broadcast %cst_230 : f32 to vector<8x32xf32>
    %1045 = arith.addf %1044, %1043 : vector<8x32xf32>
    %1046 = arith.divf %1044, %1045 : vector<8x32xf32>
    %1047 = vector.extract_strided_slice %1037 {offsets = [0, 32], sizes = [8, 32], strides = [1, 1]} : vector<8x96xf32> to vector<8x32xf32>
    %1048 = vector.extract_strided_slice %1038 {offsets = [0, 32], sizes = [8, 32], strides = [1, 1]} : vector<8x96xf32> to vector<8x32xf32>
    %1049 = arith.addf %1047, %1048 : vector<8x32xf32>
    %1050 = arith.negf %1049 : vector<8x32xf32>
    %1051 = math.exp %1050 : vector<8x32xf32>
    %cst_231 = arith.constant 1.000000e+00 : f32
    %1052 = vector.broadcast %cst_231 : f32 to vector<8x32xf32>
    %1053 = arith.addf %1052, %1051 : vector<8x32xf32>
    %1054 = arith.divf %1052, %1053 : vector<8x32xf32>
    %1055 = vector.extract_strided_slice %1037 {offsets = [0, 64], sizes = [8, 32], strides = [1, 1]} : vector<8x96xf32> to vector<8x32xf32>
    %1056 = vector.extract_strided_slice %1038 {offsets = [0, 64], sizes = [8, 32], strides = [1, 1]} : vector<8x96xf32> to vector<8x32xf32>
    %1057 = arith.mulf %1046, %1056 : vector<8x32xf32>
    %1058 = arith.addf %1055, %1057 : vector<8x32xf32>
    %1059 = math.tanh %1058 : vector<8x32xf32>
    %1060 = vector.extract_strided_slice %1031 {offsets = [0, 0], sizes = [8, 32], strides = [1, 1]} : vector<8x64xf32> to vector<8x32xf32>
    %cst_232 = arith.constant 1.000000e+00 : f32
    %1061 = vector.broadcast %cst_232 : f32 to vector<8x32xf32>
    %1062 = arith.subf %1061, %1054 : vector<8x32xf32>
    %1063 = arith.mulf %1062, %1059 : vector<8x32xf32>
    %1064 = arith.mulf %1054, %1060 : vector<8x32xf32>
    %1065 = arith.addf %1063, %1064 : vector<8x32xf32>
    %1066 = arith.index_cast %1035 : i32 to index
    %c0_233 = arith.constant 0 : index
    %1067 = vector.load %arg9[%1066, %c0_233] : memref<64x64xf32, #tpu.memory_space<vmem>>, vector<8x32xf32>
    tpu.vector_store %arg9[%1066, %c0_233], %1065 {strides = array<i32>} : memref<64x64xf32, #tpu.memory_space<vmem>>, vector<8x32xf32>,
    %c7_i32_234 = arith.constant 7 : i32
    %1068 = arith.subi %c7_i32_234, %c6_i32_226 : i32
    %c8_i32_235 = arith.constant 8 : i32
    %1069 = arith.muli %1068, %c8_i32_235 : i32
    %1070 = tpu.assume_multiple %1069, 8 : i32
    %1071 = arith.index_cast %1070 : i32 to index
    %c96_236 = arith.constant 96 : index
    %1072 = vector.load %arg10[%1071, %c96_236] : memref<64x192xf32, #tpu.memory_space<vmem>>, vector<8x96xf32>
    %1073 = vector.extract_strided_slice %1033 {offsets = [0, 96], sizes = [8, 96], strides = [1, 1]} : vector<8x192xf32> to vector<8x96xf32>
    %1074 = vector.extract_strided_slice %1072 {offsets = [0, 0], sizes = [8, 32], strides = [1, 1]} : vector<8x96xf32> to vector<8x32xf32>
    %1075 = vector.extract_strided_slice %1073 {offsets = [0, 0], sizes = [8, 32], strides = [1, 1]} : vector<8x96xf32> to vector<8x32xf32>
    %1076 = arith.addf %1074, %1075 : vector<8x32xf32>
    %1077 = arith.negf %1076 : vector<8x32xf32>
    %1078 = math.exp %1077 : vector<8x32xf32>
    %cst_237 = arith.constant 1.000000e+00 : f32
    %1079 = vector.broadcast %cst_237 : f32 to vector<8x32xf32>
    %1080 = arith.addf %1079, %1078 : vector<8x32xf32>
    %1081 = arith.divf %1079, %1080 : vector<8x32xf32>
    %1082 = vector.extract_strided_slice %1072 {offsets = [0, 32], sizes = [8, 32], strides = [1, 1]} : vector<8x96xf32> to vector<8x32xf32>
    %1083 = vector.extract_strided_slice %1073 {offsets = [0, 32], sizes = [8, 32], strides = [1, 1]} : vector<8x96xf32> to vector<8x32xf32>
    %1084 = arith.addf %1082, %1083 : vector<8x32xf32>
    %1085 = arith.negf %1084 : vector<8x32xf32>
    %1086 = math.exp %1085 : vector<8x32xf32>
    %cst_238 = arith.constant 1.000000e+00 : f32
    %1087 = vector.broadcast %cst_238 : f32 to vector<8x32xf32>
    %1088 = arith.addf %1087, %1086 : vector<8x32xf32>
    %1089 = arith.divf %1087, %1088 : vector<8x32xf32>
    %1090 = vector.extract_strided_slice %1072 {offsets = [0, 64], sizes = [8, 32], strides = [1, 1]} : vector<8x96xf32> to vector<8x32xf32>
    %1091 = vector.extract_strided_slice %1073 {offsets = [0, 64], sizes = [8, 32], strides = [1, 1]} : vector<8x96xf32> to vector<8x32xf32>
    %1092 = arith.mulf %1081, %1091 : vector<8x32xf32>
    %1093 = arith.addf %1090, %1092 : vector<8x32xf32>
    %1094 = math.tanh %1093 : vector<8x32xf32>
    %1095 = vector.extract_strided_slice %1031 {offsets = [0, 32], sizes = [8, 32], strides = [1, 1]} : vector<8x64xf32> to vector<8x32xf32>
    %cst_239 = arith.constant 1.000000e+00 : f32
    %1096 = vector.broadcast %cst_239 : f32 to vector<8x32xf32>
    %1097 = arith.subf %1096, %1089 : vector<8x32xf32>
    %1098 = arith.mulf %1097, %1094 : vector<8x32xf32>
    %1099 = arith.mulf %1089, %1095 : vector<8x32xf32>
    %1100 = arith.addf %1098, %1099 : vector<8x32xf32>
    %1101 = arith.index_cast %1070 : i32 to index
    %c32_240 = arith.constant 32 : index
    %1102 = vector.load %arg9[%1101, %c32_240] : memref<64x64xf32, #tpu.memory_space<vmem>>, vector<8x32xf32>
    tpu.vector_store %arg9[%1101, %c32_240], %1100 {strides = array<i32>} : memref<64x64xf32, #tpu.memory_space<vmem>>, vector<8x32xf32>,
    %1103 = tpu.concatenate %1065, %1100 in 1 : vector<8x32xf32>, vector<8x32xf32> -> vector<8x64xf32>
    %c7_i32_241 = arith.constant 7 : i32
    %cst_242 = arith.constant dense<0.000000e+00> : vector<8x192xf32>
    %1104 = tpu.matmul %1103, %595, %cst_242 {dimension_numbers = #tpu.dot_dimension_numbers<[1], [0], [0], [1], [0, 0, 1, 1], [], []>} : vector<8x64xf32>, vector<64x192xf32>, vector<8x192xf32> -> vector<8x192xf32>
    %1105 = arith.addf %1104, %598 : vector<8x192xf32>
    %c8_i32_243 = arith.constant 8 : i32
    %1106 = arith.muli %c7_i32_241, %c8_i32_243 : i32
    %1107 = tpu.assume_multiple %1106, 8 : i32
    %1108 = arith.index_cast %1107 : i32 to index
    %c0_244 = arith.constant 0 : index
    %1109 = vector.load %arg10[%1108, %c0_244] : memref<64x192xf32, #tpu.memory_space<vmem>>, vector<8x96xf32>
    %1110 = vector.extract_strided_slice %1105 {offsets = [0, 0], sizes = [8, 96], strides = [1, 1]} : vector<8x192xf32> to vector<8x96xf32>
    %1111 = vector.extract_strided_slice %1109 {offsets = [0, 0], sizes = [8, 32], strides = [1, 1]} : vector<8x96xf32> to vector<8x32xf32>
    %1112 = vector.extract_strided_slice %1110 {offsets = [0, 0], sizes = [8, 32], strides = [1, 1]} : vector<8x96xf32> to vector<8x32xf32>
    %1113 = arith.addf %1111, %1112 : vector<8x32xf32>
    %1114 = arith.negf %1113 : vector<8x32xf32>
    %1115 = math.exp %1114 : vector<8x32xf32>
    %cst_245 = arith.constant 1.000000e+00 : f32
    %1116 = vector.broadcast %cst_245 : f32 to vector<8x32xf32>
    %1117 = arith.addf %1116, %1115 : vector<8x32xf32>
    %1118 = arith.divf %1116, %1117 : vector<8x32xf32>
    %1119 = vector.extract_strided_slice %1109 {offsets = [0, 32], sizes = [8, 32], strides = [1, 1]} : vector<8x96xf32> to vector<8x32xf32>
    %1120 = vector.extract_strided_slice %1110 {offsets = [0, 32], sizes = [8, 32], strides = [1, 1]} : vector<8x96xf32> to vector<8x32xf32>
    %1121 = arith.addf %1119, %1120 : vector<8x32xf32>
    %1122 = arith.negf %1121 : vector<8x32xf32>
    %1123 = math.exp %1122 : vector<8x32xf32>
    %cst_246 = arith.constant 1.000000e+00 : f32
    %1124 = vector.broadcast %cst_246 : f32 to vector<8x32xf32>
    %1125 = arith.addf %1124, %1123 : vector<8x32xf32>
    %1126 = arith.divf %1124, %1125 : vector<8x32xf32>
    %1127 = vector.extract_strided_slice %1109 {offsets = [0, 64], sizes = [8, 32], strides = [1, 1]} : vector<8x96xf32> to vector<8x32xf32>
    %1128 = vector.extract_strided_slice %1110 {offsets = [0, 64], sizes = [8, 32], strides = [1, 1]} : vector<8x96xf32> to vector<8x32xf32>
    %1129 = arith.mulf %1118, %1128 : vector<8x32xf32>
    %1130 = arith.addf %1127, %1129 : vector<8x32xf32>
    %1131 = math.tanh %1130 : vector<8x32xf32>
    %1132 = vector.extract_strided_slice %1103 {offsets = [0, 0], sizes = [8, 32], strides = [1, 1]} : vector<8x64xf32> to vector<8x32xf32>
    %cst_247 = arith.constant 1.000000e+00 : f32
    %1133 = vector.broadcast %cst_247 : f32 to vector<8x32xf32>
    %1134 = arith.subf %1133, %1126 : vector<8x32xf32>
    %1135 = arith.mulf %1134, %1131 : vector<8x32xf32>
    %1136 = arith.mulf %1126, %1132 : vector<8x32xf32>
    %1137 = arith.addf %1135, %1136 : vector<8x32xf32>
    %1138 = arith.index_cast %1107 : i32 to index
    %c0_248 = arith.constant 0 : index
    %1139 = vector.load %arg9[%1138, %c0_248] : memref<64x64xf32, #tpu.memory_space<vmem>>, vector<8x32xf32>
    tpu.vector_store %arg9[%1138, %c0_248], %1137 {strides = array<i32>} : memref<64x64xf32, #tpu.memory_space<vmem>>, vector<8x32xf32>,
    %c7_i32_249 = arith.constant 7 : i32
    %1140 = arith.subi %c7_i32_249, %c7_i32_241 : i32
    %c8_i32_250 = arith.constant 8 : i32
    %1141 = arith.muli %1140, %c8_i32_250 : i32
    %1142 = tpu.assume_multiple %1141, 8 : i32
    %1143 = arith.index_cast %1142 : i32 to index
    %c96_251 = arith.constant 96 : index
    %1144 = vector.load %arg10[%1143, %c96_251] : memref<64x192xf32, #tpu.memory_space<vmem>>, vector<8x96xf32>
    %1145 = vector.extract_strided_slice %1105 {offsets = [0, 96], sizes = [8, 96], strides = [1, 1]} : vector<8x192xf32> to vector<8x96xf32>
    %1146 = vector.extract_strided_slice %1144 {offsets = [0, 0], sizes = [8, 32], strides = [1, 1]} : vector<8x96xf32> to vector<8x32xf32>
    %1147 = vector.extract_strided_slice %1145 {offsets = [0, 0], sizes = [8, 32], strides = [1, 1]} : vector<8x96xf32> to vector<8x32xf32>
    %1148 = arith.addf %1146, %1147 : vector<8x32xf32>
    %1149 = arith.negf %1148 : vector<8x32xf32>
    %1150 = math.exp %1149 : vector<8x32xf32>
    %cst_252 = arith.constant 1.000000e+00 : f32
    %1151 = vector.broadcast %cst_252 : f32 to vector<8x32xf32>
    %1152 = arith.addf %1151, %1150 : vector<8x32xf32>
    %1153 = arith.divf %1151, %1152 : vector<8x32xf32>
    %1154 = vector.extract_strided_slice %1144 {offsets = [0, 32], sizes = [8, 32], strides = [1, 1]} : vector<8x96xf32> to vector<8x32xf32>
    %1155 = vector.extract_strided_slice %1145 {offsets = [0, 32], sizes = [8, 32], strides = [1, 1]} : vector<8x96xf32> to vector<8x32xf32>
    %1156 = arith.addf %1154, %1155 : vector<8x32xf32>
    %1157 = arith.negf %1156 : vector<8x32xf32>
    %1158 = math.exp %1157 : vector<8x32xf32>
    %cst_253 = arith.constant 1.000000e+00 : f32
    %1159 = vector.broadcast %cst_253 : f32 to vector<8x32xf32>
    %1160 = arith.addf %1159, %1158 : vector<8x32xf32>
    %1161 = arith.divf %1159, %1160 : vector<8x32xf32>
    %1162 = vector.extract_strided_slice %1144 {offsets = [0, 64], sizes = [8, 32], strides = [1, 1]} : vector<8x96xf32> to vector<8x32xf32>
    %1163 = vector.extract_strided_slice %1145 {offsets = [0, 64], sizes = [8, 32], strides = [1, 1]} : vector<8x96xf32> to vector<8x32xf32>
    %1164 = arith.mulf %1153, %1163 : vector<8x32xf32>
    %1165 = arith.addf %1162, %1164 : vector<8x32xf32>
    %1166 = math.tanh %1165 : vector<8x32xf32>
    %1167 = vector.extract_strided_slice %1103 {offsets = [0, 32], sizes = [8, 32], strides = [1, 1]} : vector<8x64xf32> to vector<8x32xf32>
    %cst_254 = arith.constant 1.000000e+00 : f32
    %1168 = vector.broadcast %cst_254 : f32 to vector<8x32xf32>
    %1169 = arith.subf %1168, %1161 : vector<8x32xf32>
    %1170 = arith.mulf %1169, %1166 : vector<8x32xf32>
    %1171 = arith.mulf %1161, %1167 : vector<8x32xf32>
    %1172 = arith.addf %1170, %1171 : vector<8x32xf32>
    %1173 = arith.index_cast %1142 : i32 to index
    %c32_255 = arith.constant 32 : index
    %1174 = vector.load %arg9[%1173, %c32_255] : memref<64x64xf32, #tpu.memory_space<vmem>>, vector<8x32xf32>
    tpu.vector_store %arg9[%1173, %c32_255], %1172 {strides = array<i32>} : memref<64x64xf32, #tpu.memory_space<vmem>>, vector<8x32xf32>,
    %1175 = tpu.concatenate %1137, %1172 in 1 : vector<8x32xf32>, vector<8x32xf32> -> vector<8x64xf32>
    %c8_i32_256 = arith.constant 8 : i32
    return
  }
}

</mosaic_0001>

<llo_original>
// kernel: forward.1
$region0: #{forward.1}
  #allocation0 [shape = 'u32[]', space=smem, size = 0x4, offset = 0x4, fixed_abs, tag = 'smem constant byte address 0x4 - core index']
  #allocation1 [shape = 'u32[144,128]{1,0:T(1,128)}', space=vmem, size = 0x12000, scoped, tag = 'internal scratch']
  #allocation2 [shape = 'f32[64,192]{1,0:T(8,128)}', space=vmem, size = 0x10000, scoped, tag = 'scratch operand']
  #allocation3 [shape = 'f32[64,64]{1,0:T(8,128)}', space=vmem, size = 0x8000, scoped, tag = 'scratch operand']
  %s0 = inlined_call_operand.vmem [shape: f32[64,32], index: 0, kind: input, shape index: {}]
  %s1 = inlined_call_operand.vmem [shape: f32[32,192], index: 1, kind: input, shape index: {}]
  %s2 = inlined_call_operand.hbm [shape: f32[64,192], index: 2, kind: input, shape index: {}]
  %s3 = inlined_call_operand.vmem [shape: f32[1,192], index: 3, kind: input, shape index: {}]
  %s4 = inlined_call_operand.vmem [shape: f32[1,192], index: 4, kind: input, shape index: {}]
  %s5 = inlined_call_operand.hbm [shape: f32[64,192], index: 5, kind: input, shape index: {}]
  %s6 = inlined_call_operand.hbm [shape: f32[64,192], index: 6, kind: input, shape index: {}]
  %s7 = inlined_call_operand.vmem [shape: f32[1,192], index: 7, kind: input, shape index: {}]
  %s8 = inlined_call_operand.vmem [shape: f32[1,192], index: 8, kind: input, shape index: {}]
  %s9 = inlined_call_operand.vmem [shape: f32[64,64], index: 9, kind: output, shape index: {}]
  %s10 = sld [smem:[#allocation0]]
  $region58: #{forward.1} parent=0
    _
  %s12 = ssub.s32 1, %s10
  %s13 = scalar_select 0, %s12, %s10
  $region1: #{forward.1} parent=0
    #allocation4 [shape = 'u8[65536]{0}', space=vmem, size = 0x10000, scoped, tag = 'input window, operand 2, single buffered']
    #allocation5 [shape = 's32[1]{0}', space=sflag, size = 0x4, scoped, tag = 'scoped memory for forward.1']
    #allocation6 [shape = 'u8[65536]{0}', space=vmem, size = 0x10000, scoped, tag = 'input window, operand 5, single buffered']
    #allocation7 [shape = 's32[1]{0}', space=sflag, size = 0x4, scoped, tag = 'scoped memory for forward.1']
    #allocation8 [shape = 'u8[65536]{0}', space=vmem, size = 0x10000, scoped, tag = 'input window, operand 6, single buffered']
    %14 = vsyncpa [#allocation5], 0
    %15 = vsyncpa [#allocation7], 0
    // Predicated region
    $region2: #{forward.1} parent=1 // pred_check
      _
    $region3: #{forward.1} parent=1 // pred_check_branch
      %17 = sbr.rel (0) target = $region5
    $region4: #{forward.1} parent=1 // pred_region
      _
    $region5: #{forward.1} parent=1 // pred_fallthru
      _
    // Predicated region
    $region6: #{forward.1} parent=1 // pred_check
      _
    $region7: #{forward.1} parent=1 // pred_check_branch
      %19 = sbr.rel (0) target = $region9
    $region8: #{forward.1} parent=1 // pred_region
      _
    $region9: #{forward.1} parent=1 // pred_fallthru
      _
    // Predicated region
    $region10: #{forward.1} parent=1 // pred_check
      _
    $region11: #{forward.1} parent=1 // pred_check_branch
      %21 = sbr.rel (0) target = $region13
    $region12: #{forward.1} parent=1 // pred_region
      %s23 = ssub.s32 2048, 2048
      %24 = vsyncadd [#allocation5], %s23
      %s25 = sshll.u32 [#allocation4], 4
      %s26 = int_to_ptr.vmem [resolvable:$true] %s25
      %31 = dma.hbm_to_vmem [thread:$0]  %s2, 2048, %s26, [#allocation5], 256, 256, 16
    $region13: #{forward.1} parent=1 // pred_fallthru
      _
    // Predicated region
    $region14: #{forward.1} parent=1 // pred_check
      _
    $region15: #{forward.1} parent=1 // pred_check_branch
      %33 = sbr.rel (0) target = $region17
    $region16: #{forward.1} parent=1 // pred_region
      _
    $region17: #{forward.1} parent=1 // pred_fallthru
      _
    // Predicated region
    $region18: #{forward.1} parent=1 // pred_check
      _
    $region19: #{forward.1} parent=1 // pred_check_branch
      %35 = sbr.rel (0) target = $region21
    $region20: #{forward.1} parent=1 // pred_region
      _
    $region21: #{forward.1} parent=1 // pred_fallthru
      _
    // Predicated region
    $region22: #{forward.1} parent=1 // pred_check
      _
    $region23: #{forward.1} parent=1 // pred_check_branch
      %37 = sbr.rel (0) target = $region25
    $region24: #{forward.1} parent=1 // pred_region
      %s39 = ssub.s32 2048, 2048
      %40 = vsyncadd [#allocation7], %s39
      %s41 = sshll.u32 [#allocation6], 4
      %s42 = int_to_ptr.vmem [resolvable:$true] %s41
      %47 = dma.hbm_to_vmem [thread:$0]  %s5, 2048, %s42, [#allocation7], 256, 256, 16
    $region25: #{forward.1} parent=1 // pred_fallthru
      _
    // Predicated region
    $region26: #{forward.1} parent=1 // pred_check
      _
    $region27: #{forward.1} parent=1 // pred_check_branch
      %49 = sbr.rel (0) target = $region29
    $region28: #{forward.1} parent=1 // pred_region
      %s51 = ssub.s32 2048, 2048
      %52 = vsyncadd [#allocation7], %s51
      %s53 = sshll.u32 [#allocation8], 4
      %s54 = int_to_ptr.vmem [resolvable:$true] %s53
      %59 = dma.hbm_to_vmem [thread:$0]  %s6, 2048, %s54, [#allocation7], 256, 256, 16
    $region29: #{forward.1} parent=1 // pred_fallthru
      _
    // Predicated region
    $region30: #{forward.1} parent=1 // pred_check
      _
    $region31: #{forward.1} parent=1 // pred_check_branch
      %61 = sbr.rel (0) target = $region33
    $region32: #{forward.1} parent=1 // pred_region
      _
    $region33: #{forward.1} parent=1 // pred_fallthru
      _
    // Predicated region
    $region34: #{forward.1} parent=1 // pred_check
      _
    $region35: #{forward.1} parent=1 // pred_check_branch
      %63 = sbr.rel (0) target = $region37
    $region36: #{forward.1} parent=1 // pred_region
      _
    $region37: #{forward.1} parent=1 // pred_fallthru
      _
    // Predicated region
    $region38: #{forward.1} parent=1 // pred_check
      _
    $region39: #{forward.1} parent=1 // pred_check_branch
      %65 = sbr.rel (0) target = $region41
    $region40: #{forward.1} parent=1 // pred_region
      %66 = dma.done [#allocation5], 2048
    $region41: #{forward.1} parent=1 // pred_fallthru
      _
    // Predicated region
    $region42: #{forward.1} parent=1 // pred_check
      _
    $region43: #{forward.1} parent=1 // pred_check_branch
      %68 = sbr.rel (0) target = $region45
    $region44: #{forward.1} parent=1 // pred_region
      %69 = dma.done [#allocation7], 2048
    $region45: #{forward.1} parent=1 // pred_fallthru
      _
    // Predicated region
    $region46: #{forward.1} parent=1 // pred_check
      _
    $region47: #{forward.1} parent=1 // pred_check_branch
      %71 = sbr.rel (0) target = $region49
    $region48: #{forward.1} parent=1 // pred_region
      %72 = dma.done [#allocation7], 2048
    $region49: #{forward.1} parent=1 // pred_fallthru
      _
    %v73 = vld [vmem:[%s0] sm:$0xff]
    %v74 = vld [vmem:[%s0 + $0x8] sm:$0xff]
    %v75 = vld [vmem:[%s0 + $0x10] sm:$0xff]
    %v76 = vld [vmem:[%s0 + $0x18] sm:$0xff]
    %v77 = vld [vmem:[%s0 + $0x20] sm:$0xff]
    %v78 = vld [vmem:[%s0 + $0x28] sm:$0xff]
    %v79 = vld [vmem:[%s0 + $0x30] sm:$0xff]
    %v80 = vld [vmem:[%s0 + $0x38] sm:$0xff]
    %v81 = vld [vmem:[%s1] sm:$0xff]
    %v82 = vld [vmem:[%s1 + $0x8] sm:$0xff]
    %v83 = vld [vmem:[%s1 + $0x10] sm:$0xff]
    %v84 = vld [vmem:[%s1 + $0x18] sm:$0xff]
    %v85 = vld [vmem:[%s1 + $0x20] sm:$0xff]
    %v86 = vld [vmem:[%s1 + $0x28] sm:$0xff]
    %v87 = vld [vmem:[%s1 + $0x30] sm:$0xff]
    %v88 = vld [vmem:[%s1 + $0x38] sm:$0xff]
    %v89 = vld [vmem:[%s3] sm:$0x3]
    %v91 = vlaneseq
    %v92 = vshrl.u32 %v91, 7
    %v93 = vsub.s32 0, %v92
    %v94 = vrot.slane %v89, %v93
    %v95 = vlaneseq
    %v96 = vshrl.u32 %v95, 7
    %v97 = vsub.s32 1, %v96
    %v98 = vrot.slane %v89, %v97
    %vm101 = vcmask 261120
    %v103 = vsel %vm101, %v73, 0
    %v106 = vsel %vm101, %v74, 0
    %v109 = vsel %vm101, %v75, 0
    %v112 = vsel %vm101, %v76, 0
    %v115 = vsel %vm101, %v77, 0
    %v118 = vsel %vm101, %v78, 0
    %v121 = vsel %vm101, %v79, 0
    %v124 = vsel %vm101, %v80, 0
    %126 = vmatprep.subr.mxu0 0.0
    %127 = vmatpush1.msra.mxu0 0.0
    %128 = vmatprep.subr.mxu0 0.0
    %129 = vmatpush1.msra.mxu0 0.0
    %130 = vmatprep.subr.mxu0 0.0
    %131 = vmatpush1.msra.mxu0 0.0
    %132 = vmatprep.subr.mxu0 0.0
    %133 = vmatpush1.msra.mxu0 0.0
    %134 = vmatprep.subr.mxu0 0.0
    %135 = vmatpush1.msra.mxu0 0.0
    %136 = vmatprep.subr.mxu0 0.0
    %137 = vmatpush1.msra.mxu0 0.0
    %138 = vmatprep.subr.mxu0 0.0
    %139 = vmatpush1.msra.mxu0 0.0
    %140 = vmatprep.subr.mxu0 0.0
    %141 = vmatpush1.msra.mxu0 0.0
    %142 = vmatprep.subr.mxu0 0.0
    %143 = vmatpush1.msra.mxu0 0.0
    %144 = vmatprep.subr.mxu0 0.0
    %145 = vmatpush1.msra.mxu0 0.0
    %146 = vmatprep.subr.mxu0 0.0
    %147 = vmatpush1.msra.mxu0 0.0
    %148 = vmatprep.subr.mxu0 0.0
    %149 = vmatpush1.msra.mxu0 0.0
    %150 = vmatprep.subr.mxu0 %v88
    %151 = vmatpush1.msra.mxu0 %v87
    %152 = vmatprep.subr.mxu0 %v86
    %153 = vmatpush1.msra.mxu0 %v85
    %154 = vmatprep.subr.mxu0 %v84
    %155 = vmatpush1.msra.mxu0 %v83
    %156 = vmatprep.subr.mxu0 %v82
    %157 = vmatpush1.msra.mxu0 %v81
    %158 = vmatprep.subr.mxu0 0.0
    %159 = vmatpush2.msra.mxu0 0.0
    %160 = vmatprep.subr.mxu0 0.0
    %161 = vmatpush2.msra.mxu0 0.0
    %162 = vmatprep.subr.mxu0 0.0
    %163 = vmatpush2.msra.mxu0 0.0
    %164 = vmatprep.subr.mxu0 0.0
    %165 = vmatpush2.msra.mxu0 0.0
    %166 = vmatprep.subr.mxu0 0.0
    %167 = vmatpush2.msra.mxu0 0.0
    %168 = vmatprep.subr.mxu0 0.0
    %169 = vmatpush2.msra.mxu0 0.0
    %170 = vmatprep.subr.mxu0 0.0
    %171 = vmatpush2.msra.mxu0 0.0
    %172 = vmatprep.subr.mxu0 0.0
    %173 = vmatpush2.msra.mxu0 0.0
    %174 = vmatprep.subr.mxu0 0.0
    %175 = vmatpush2.msra.mxu0 0.0
    %176 = vmatprep.subr.mxu0 0.0
    %177 = vmatpush2.msra.mxu0 0.0
    %178 = vmatprep.subr.mxu0 0.0
    %179 = vmatpush2.msra.mxu0 0.0
    %180 = vmatprep.subr.mxu0 0.0
    %181 = vmatpush2.msra.mxu0 0.0
    %182 = vmatprep.subr.mxu0 0.0
    %183 = vmatpush2.msra.mxu0 0.0
    %184 = vmatprep.subr.mxu0 0.0
    %185 = vmatpush2.msra.mxu0 0.0
    %186 = vmatprep.subr.mxu0 0.0
    %187 = vmatpush2.msra.mxu0 0.0
    %188 = vmatprep.subr.mxu0 0.0
    %189 = vmatpush2.msra.mxu0 0.0
    %190 = vmatprep.mubr.f32.mxu0 0.0
    %191 = vmatmul.mubr.f32.gmra.mxu0 %v103
    %v192 = vpop.f32.mrf.mxu0
    %v193 = vadd.f32 %v94, %v192
    %v194 = vpop.f32.mrf.mxu0
    %v195 = vadd.f32 %v98, %v194
    %196 = vmatprep.mubr.f32.mxu0 0.0
    %197 = vmatmul.mubr.f32.gmra.mxu0 %v106
    %v198 = vpop.f32.mrf.mxu0
    %v199 = vadd.f32 %v94, %v198
    %v200 = vpop.f32.mrf.mxu0
    %v201 = vadd.f32 %v98, %v200
    %202 = vmatprep.mubr.f32.mxu0 0.0
    %203 = vmatmul.mubr.f32.gmra.mxu0 %v109
    %v204 = vpop.f32.mrf.mxu0
    %v205 = vadd.f32 %v94, %v204
    %v206 = vpop.f32.mrf.mxu0
    %v207 = vadd.f32 %v98, %v206
    %208 = vmatprep.mubr.f32.mxu0 0.0
    %209 = vmatmul.mubr.f32.gmra.mxu0 %v112
    %v210 = vpop.f32.mrf.mxu0
    %v211 = vadd.f32 %v94, %v210
    %v212 = vpop.f32.mrf.mxu0
    %v213 = vadd.f32 %v98, %v212
    %214 = vmatprep.mubr.f32.mxu0 0.0
    %215 = vmatmul.mubr.f32.gmra.mxu0 %v115
    %v216 = vpop.f32.mrf.mxu0
    %v217 = vadd.f32 %v94, %v216
    %v218 = vpop.f32.mrf.mxu0
    %v219 = vadd.f32 %v98, %v218
    %220 = vmatprep.mubr.f32.mxu0 0.0
    %221 = vmatmul.mubr.f32.gmra.mxu0 %v118
    %v222 = vpop.f32.mrf.mxu0
    %v223 = vadd.f32 %v94, %v222
    %v224 = vpop.f32.mrf.mxu0
    %v225 = vadd.f32 %v98, %v224
    %226 = vmatprep.mubr.f32.mxu0 0.0
    %227 = vmatmul.mubr.f32.gmra.mxu0 %v121
    %v228 = vpop.f32.mrf.mxu0
    %v229 = vadd.f32 %v94, %v228
    %v230 = vpop.f32.mrf.mxu0
    %v231 = vadd.f32 %v98, %v230
    %232 = vmatprep.mubr.f32.mxu0 0.0
    %233 = vmatmul.mubr.f32.gmra.mxu0 %v124
    %v234 = vpop.f32.mrf.mxu0
    %v235 = vadd.f32 %v94, %v234
    %v236 = vpop.f32.mrf.mxu0
    %v237 = vadd.f32 %v98, %v236
    %238 = vdwg.mxu0
    %239 = vst [vmem:[#allocation2] sm:$0xff] %v193
    %vm240 = vcmask 523264
    %241 = vst.msk [vmem:[#allocation2 + $0x8] sm:$0xff] %vm240, %v195
    %242 = vst [vmem:[#allocation2 + $0x10] sm:$0xff] %v199
    %243 = vst.msk [vmem:[#allocation2 + $0x18] sm:$0xff] %vm240, %v201
    %244 = vst [vmem:[#allocation2 + $0x20] sm:$0xff] %v205
    %245 = vst.msk [vmem:[#allocation2 + $0x28] sm:$0xff] %vm240, %v207
    %246 = vst [vmem:[#allocation2 + $0x30] sm:$0xff] %v211
    %247 = vst.msk [vmem:[#allocation2 + $0x38] sm:$0xff] %vm240, %v213
    %248 = vst [vmem:[#allocation2 + $0x40] sm:$0xff] %v217
    %249 = vst.msk [vmem:[#allocation2 + $0x48] sm:$0xff] %vm240, %v219
    %250 = vst [vmem:[#allocation2 + $0x50] sm:$0xff] %v223
    %251 = vst.msk [vmem:[#allocation2 + $0x58] sm:$0xff] %vm240, %v225
    %252 = vst [vmem:[#allocation2 + $0x60] sm:$0xff] %v229
    %253 = vst.msk [vmem:[#allocation2 + $0x68] sm:$0xff] %vm240, %v231
    %254 = vst [vmem:[#allocation2 + $0x70] sm:$0xff] %v235
    %255 = vst.msk [vmem:[#allocation2 + $0x78] sm:$0xff] %vm240, %v237
    %v256 = vld [vmem:[#allocation4] sm:$0xff]
    %v257 = vld [vmem:[#allocation4 + $0x8] sm:$0xff]
    %v258 = vld [vmem:[#allocation4 + $0x10] sm:$0xff]
    %v259 = vld [vmem:[#allocation4 + $0x18] sm:$0xff]
    %v260 = vld [vmem:[#allocation4 + $0x20] sm:$0xff]
    %v261 = vld [vmem:[#allocation4 + $0x28] sm:$0xff]
    %v262 = vld [vmem:[#allocation4 + $0x30] sm:$0xff]
    %v263 = vld [vmem:[#allocation4 + $0x38] sm:$0xff]
    %v264 = vld [vmem:[#allocation4 + $0x40] sm:$0xff]
    %v265 = vld [vmem:[#allocation4 + $0x48] sm:$0xff]
    %v266 = vld [vmem:[#allocation4 + $0x50] sm:$0xff]
    %v267 = vld [vmem:[#allocation4 + $0x58] sm:$0xff]
    %v268 = vld [vmem:[#allocation4 + $0x60] sm:$0xff]
    %v269 = vld [vmem:[#allocation4 + $0x68] sm:$0xff]
    %v270 = vld [vmem:[#allocation4 + $0x70] sm:$0xff]
    %v271 = vld [vmem:[#allocation4 + $0x78] sm:$0xff]
    %v272 = vld [vmem:[%s4] sm:$0x3]
    %v274 = vlaneseq
    %v275 = vshrl.u32 %v274, 7
    %v276 = vsub.s32 0, %v275
    %v277 = vrot.slane %v272, %v276
    %v278 = vlaneseq
    %v279 = vshrl.u32 %v278, 7
    %v280 = vsub.s32 1, %v279
    %v281 = vrot.slane %v272, %v280
    %v285 = vsel %vm240, 0.0, 0
    %287 = vmatprep.subr.mxu0 0.0
    %288 = vmatpush1.msra.mxu0 0.0
    %289 = vmatprep.subr.mxu0 0.0
    %290 = vmatpush1.msra.mxu0 0.0
    %291 = vmatprep.subr.mxu0 0.0
    %292 = vmatpush1.msra.mxu0 0.0
    %293 = vmatprep.subr.mxu0 0.0
    %294 = vmatpush1.msra.mxu0 0.0
    %295 = vmatprep.subr.mxu0 0.0
    %296 = vmatpush1.msra.mxu0 0.0
    %297 = vmatprep.subr.mxu0 0.0
    %298 = vmatpush1.msra.mxu0 0.0
    %299 = vmatprep.subr.mxu0 0.0
    %300 = vmatpush1.msra.mxu0 0.0
    %301 = vmatprep.subr.mxu0 0.0
    %302 = vmatpush1.msra.mxu0 0.0
    %303 = vmatprep.subr.mxu0 %v271
    %304 = vmatpush1.msra.mxu0 %v270
    %305 = vmatprep.subr.mxu0 %v269
    %306 = vmatpush1.msra.mxu0 %v268
    %307 = vmatprep.subr.mxu0 %v267
    %308 = vmatpush1.msra.mxu0 %v266
    %309 = vmatprep.subr.mxu0 %v265
    %310 = vmatpush1.msra.mxu0 %v264
    %311 = vmatprep.subr.mxu0 %v263
    %312 = vmatpush1.msra.mxu0 %v262
    %313 = vmatprep.subr.mxu0 %v261
    %314 = vmatpush1.msra.mxu0 %v260
    %315 = vmatprep.subr.mxu0 %v259
    %316 = vmatpush1.msra.mxu0 %v258
    %317 = vmatprep.subr.mxu0 %v257
    %318 = vmatpush1.msra.mxu0 %v256
    %319 = vmatprep.subr.mxu0 0.0
    %320 = vmatpush2.msra.mxu0 0.0
    %321 = vmatprep.subr.mxu0 0.0
    %322 = vmatpush2.msra.mxu0 0.0
    %323 = vmatprep.subr.mxu0 0.0
    %324 = vmatpush2.msra.mxu0 0.0
    %325 = vmatprep.subr.mxu0 0.0
    %326 = vmatpush2.msra.mxu0 0.0
    %327 = vmatprep.subr.mxu0 0.0
    %328 = vmatpush2.msra.mxu0 0.0
    %329 = vmatprep.subr.mxu0 0.0
    %330 = vmatpush2.msra.mxu0 0.0
    %331 = vmatprep.subr.mxu0 0.0
    %332 = vmatpush2.msra.mxu0 0.0
    %333 = vmatprep.subr.mxu0 0.0
    %334 = vmatpush2.msra.mxu0 0.0
    %335 = vmatprep.subr.mxu0 0.0
    %336 = vmatpush2.msra.mxu0 0.0
    %337 = vmatprep.subr.mxu0 0.0
    %338 = vmatpush2.msra.mxu0 0.0
    %339 = vmatprep.subr.mxu0 0.0
    %340 = vmatpush2.msra.mxu0 0.0
    %341 = vmatprep.subr.mxu0 0.0
    %342 = vmatpush2.msra.mxu0 0.0
    %343 = vmatprep.subr.mxu0 0.0
    %344 = vmatpush2.msra.mxu0 0.0
    %345 = vmatprep.subr.mxu0 0.0
    %346 = vmatpush2.msra.mxu0 0.0
    %347 = vmatprep.subr.mxu0 0.0
    %348 = vmatpush2.msra.mxu0 0.0
    %349 = vmatprep.subr.mxu0 0.0
    %350 = vmatpush2.msra.mxu0 0.0
    %351 = vmatprep.mubr.f32.mxu0 0.0
    %352 = vmatmul.mubr.f32.gmra.mxu0 %v285
    %v353 = vpop.f32.mrf.mxu0
    %v354 = vadd.f32 %v277, %v353
    %v355 = vpop.f32.mrf.mxu0
    %v356 = vadd.f32 %v281, %v355
    %357 = vdwg.mxu0
    %s358 = smul.u32 0, 2
    %s359 = smul.addr %s358, 8
    %s360 = scalar_lea.vmem [#allocation2], %s359
    %v361 = vld [vmem:[%s360] sm:$0xff]
    %v362 = vadd.f32 %v361, %v354
    %v363 = vxor.u32 %v362, 2147483648
    %v364 = vmul.f32 %v363, 1.442695
    %v365 = vpow.pop %v364
    %v366 = vadd.f32 %v365, 1.0
    %v367 = vrcp.pop %v366
    %v368 = vmul.f32 1.0, %v367
    %370 = vrot.lane.b32.xlu0 %v354, 64
    %v371 = vpop.permute.xlu0 %370
    %v373 = vmul.f32 %v368, %v371
    %375 = vrot.lane.b32.xlu0 %v373, 64
    %v376 = vpop.permute.xlu0 %375
    %v378 = vadd.f32 %v361, %v376
    %v379 = vtanh.pop %v378
    %v380 = vsub.f32 1.0, %v368
    %382 = vrot.lane.b32.xlu0 %v379, 96
    %v383 = vpop.permute.xlu0 %382
    %v385 = vmul.f32 %v380, %v383
    %v386 = vmul.f32 %v368, 0.0
    %v387 = vadd.f32 %v385, %v386
    %389 = vrot.lane.b32.xlu0 %v387, 96
    %v390 = vpop.permute.xlu0 %389
    %392 = vst.msk [vmem:[#allocation3] sm:$0xff] %vm101, %v390
    %s393 = smul.u32 7, 2
    %s394 = smul.addr %s393, 8
    %s395 = scalar_lea.vmem [#allocation2], %s394
    %v396 = vld [vmem:[%s395] sm:$0xff]
    %v397 = vld [vmem:[%s395 + $0x8] sm:$0xff]
    %v398 = vadd.f32 %v396, %v354
    %v399 = vxor.u32 %v398, 2147483648
    %v400 = vmul.f32 %v399, 1.442695
    %v401 = vpow.pop %v400
    %v402 = vadd.f32 %v401, 1.0
    %v403 = vrcp.pop %v402
    %v404 = vmul.f32 1.0, %v403
    %v405 = vadd.f32 %v397, %v356
    %v406 = vxor.u32 %v405, 2147483648
    %v407 = vmul.f32 %v406, 1.442695
    %v408 = vpow.pop %v407
    %v409 = vadd.f32 %v408, 1.0
    %v410 = vrcp.pop %v409
    %v411 = vmul.f32 1.0, %v410
    %413 = vrot.lane.b32.xlu0 %v356, 64
    %v414 = vpop.permute.xlu0 %413
    %v416 = vmul.f32 %v404, %v414
    %418 = vrot.lane.b32.xlu0 %v416, 64
    %v419 = vpop.permute.xlu0 %418
    %v421 = vadd.f32 %v397, %v419
    %v422 = vtanh.pop %v421
    %v423 = vsub.f32 1.0, %v411
    %425 = vrot.lane.b32.xlu0 %v422, 96
    %v426 = vpop.permute.xlu0 %425
    %v428 = vmul.f32 %v423, %v426
    %v429 = vmul.f32 %v411, 0.0
    %v430 = vadd.f32 %v428, %v429
    %432 = vrot.lane.b32.xlu0 %v430, 32
    %v433 = vpop.permute.xlu0 %432
    %s435 = scalar_lea.vmem [#allocation3], 56
    %vm436 = vcmask 523520
    %437 = vst.msk [vmem:[%s435] sm:$0xff] %vm436, %v433
    %v438 = vsel %vm101, %v390, %v433
    %v440 = vsel %vm240, %v438, 0
    %442 = vmatprep.subr.mxu0 0.0
    %443 = vmatpush1.msra.mxu0 0.0
    %444 = vmatprep.subr.mxu0 0.0
    %445 = vmatpush1.msra.mxu0 0.0
    %446 = vmatprep.subr.mxu0 0.0
    %447 = vmatpush1.msra.mxu0 0.0
    %448 = vmatprep.subr.mxu0 0.0
    %449 = vmatpush1.msra.mxu0 0.0
    %450 = vmatprep.subr.mxu0 0.0
    %451 = vmatpush1.msra.mxu0 0.0
    %452 = vmatprep.subr.mxu0 0.0
    %453 = vmatpush1.msra.mxu0 0.0
    %454 = vmatprep.subr.mxu0 0.0
    %455 = vmatpush1.msra.mxu0 0.0
    %456 = vmatprep.subr.mxu0 0.0
    %457 = vmatpush1.msra.mxu0 0.0
    %458 = vmatprep.subr.mxu0 %v271
    %459 = vmatpush1.msra.mxu0 %v270
    %460 = vmatprep.subr.mxu0 %v269
    %461 = vmatpush1.msra.mxu0 %v268
    %462 = vmatprep.subr.mxu0 %v267
    %463 = vmatpush1.msra.mxu0 %v266
    %464 = vmatprep.subr.mxu0 %v265
    %465 = vmatpush1.msra.mxu0 %v264
    %466 = vmatprep.subr.mxu0 %v263
    %467 = vmatpush1.msra.mxu0 %v262
    %468 = vmatprep.subr.mxu0 %v261
    %469 = vmatpush1.msra.mxu0 %v260
    %470 = vmatprep.subr.mxu0 %v259
    %471 = vmatpush1.msra.mxu0 %v258
    %472 = vmatprep.subr.mxu0 %v257
    %473 = vmatpush1.msra.mxu0 %v256
    %474 = vmatprep.subr.mxu0 0.0
    %475 = vmatpush2.msra.mxu0 0.0
    %476 = vmatprep.subr.mxu0 0.0
    %477 = vmatpush2.msra.mxu0 0.0
    %478 = vmatprep.subr.mxu0 0.0
    %479 = vmatpush2.msra.mxu0 0.0
    %480 = vmatprep.subr.mxu0 0.0
    %481 = vmatpush2.msra.mxu0 0.0
    %482 = vmatprep.subr.mxu0 0.0
    %483 = vmatpush2.msra.mxu0 0.0
    %484 = vmatprep.subr.mxu0 0.0
    %485 = vmatpush2.msra.mxu0 0.0
    %486 = vmatprep.subr.mxu0 0.0
    %487 = vmatpush2.msra.mxu0 0.0
    %488 = vmatprep.subr.mxu0 0.0
    %489 = vmatpush2.msra.mxu0 0.0
    %490 = vmatprep.subr.mxu0 0.0
    %491 = vmatpush2.msra.mxu0 0.0
    %492 = vmatprep.subr.mxu0 0.0
    %493 = vmatpush2.msra.mxu0 0.0
    %494 = vmatprep.subr.mxu0 0.0
    %495 = vmatpush2.msra.mxu0 0.0
    %496 = vmatprep.subr.mxu0 0.0
    %497 = vmatpush2.msra.mxu0 0.0
    %498 = vmatprep.subr.mxu0 0.0
    %499 = vmatpush2.msra.mxu0 0.0
    %500 = vmatprep.subr.mxu0 0.0
    %501 = vmatpush2.msra.mxu0 0.0
    %502 = vmatprep.subr.mxu0 0.0
    %503 = vmatpush2.msra.mxu0 0.0
    %504 = vmatprep.subr.mxu0 0.0
    %505 = vmatpush2.msra.mxu0 0.0
    %506 = vmatprep.mubr.f32.mxu0 0.0
    %507 = vmatmul.mubr.f32.gmra.mxu0 %v440
    %v508 = vpop.f32.mrf.mxu0
    %v509 = vadd.f32 %v277, %v508
    %v510 = vpop.f32.mrf.mxu0
    %v511 = vadd.f32 %v281, %v510
    %512 = vdwg.mxu0
    %s513 = smul.u32 1, 2
    %s514 = smul.addr %s513, 8
    %s515 = scalar_lea.vmem [#allocation2], %s514
    %v516 = vld [vmem:[%s515] sm:$0xff]
    %v517 = vadd.f32 %v516, %v509
    %v518 = vxor.u32 %v517, 2147483648
    %v519 = vmul.f32 %v518, 1.442695
    %v520 = vpow.pop %v519
    %v521 = vadd.f32 %v520, 1.0
    %v522 = vrcp.pop %v521
    %v523 = vmul.f32 1.0, %v522
    %525 = vrot.lane.b32.xlu0 %v509, 64
    %v526 = vpop.permute.xlu0 %525
    %v528 = vmul.f32 %v523, %v526
    %530 = vrot.lane.b32.xlu0 %v528, 64
    %v531 = vpop.permute.xlu0 %530
    %v533 = vadd.f32 %v516, %v531
    %v534 = vtanh.pop %v533
    %v535 = vsub.f32 1.0, %v523
    %537 = vrot.lane.b32.xlu0 %v534, 96
    %v538 = vpop.permute.xlu0 %537
    %v540 = vmul.f32 %v535, %v538
    %541 = vrot.lane.b32.xlu0 %v438, 32
    %v542 = vpop.permute.xlu0 %541
    %v544 = vmul.f32 %v523, %v542
    %v545 = vadd.f32 %v540, %v544
    %547 = vrot.lane.b32.xlu0 %v545, 96
    %v548 = vpop.permute.xlu0 %547
    %s550 = scalar_lea.vmem [#allocation3], 8
    %551 = vst.msk [vmem:[%s550] sm:$0xff] %vm101, %v548
    %s552 = smul.u32 6, 2
    %s553 = smul.addr %s552, 8
    %s554 = scalar_lea.vmem [#allocation2], %s553
    %v555 = vld [vmem:[%s554] sm:$0xff]
    %v556 = vld [vmem:[%s554 + $0x8] sm:$0xff]
    %v557 = vadd.f32 %v555, %v509
    %v558 = vxor.u32 %v557, 2147483648
    %v559 = vmul.f32 %v558, 1.442695
    %v560 = vpow.pop %v559
    %v561 = vadd.f32 %v560, 1.0
    %v562 = vrcp.pop %v561
    %v563 = vmul.f32 1.0, %v562
    %v564 = vadd.f32 %v556, %v511
    %v565 = vxor.u32 %v564, 2147483648
    %v566 = vmul.f32 %v565, 1.442695
    %v567 = vpow.pop %v566
    %v568 = vadd.f32 %v567, 1.0
    %v569 = vrcp.pop %v568
    %v570 = vmul.f32 1.0, %v569
    %572 = vrot.lane.b32.xlu0 %v511, 64
    %v573 = vpop.permute.xlu0 %572
    %v575 = vmul.f32 %v563, %v573
    %577 = vrot.lane.b32.xlu0 %v575, 64
    %v578 = vpop.permute.xlu0 %577
    %v580 = vadd.f32 %v556, %v578
    %v581 = vtanh.pop %v580
    %v582 = vsub.f32 1.0, %v570
    %584 = vrot.lane.b32.xlu0 %v581, 96
    %v585 = vpop.permute.xlu0 %584
    %v587 = vmul.f32 %v582, %v585
    %588 = vrot.lane.b32.xlu0 %v438, 96
    %v589 = vpop.permute.xlu0 %588
    %v591 = vmul.f32 %v570, %v589
    %v592 = vadd.f32 %v587, %v591
    %594 = vrot.lane.b32.xlu0 %v592, 32
    %v595 = vpop.permute.xlu0 %594
    %s597 = scalar_lea.vmem [#allocation3], 48
    %598 = vst.msk [vmem:[%s597] sm:$0xff] %vm436, %v595
    %v599 = vsel %vm101, %v548, %v595
    %v601 = vsel %vm240, %v599, 0
    %603 = vmatprep.subr.mxu0 0.0
    %604 = vmatpush1.msra.mxu0 0.0
    %605 = vmatprep.subr.mxu0 0.0
    %606 = vmatpush1.msra.mxu0 0.0
    %607 = vmatprep.subr.mxu0 0.0
    %608 = vmatpush1.msra.mxu0 0.0
    %609 = vmatprep.subr.mxu0 0.0
    %610 = vmatpush1.msra.mxu0 0.0
    %611 = vmatprep.subr.mxu0 0.0
    %612 = vmatpush1.msra.mxu0 0.0
    %613 = vmatprep.subr.mxu0 0.0
    %614 = vmatpush1.msra.mxu0 0.0
    %615 = vmatprep.subr.mxu0 0.0
    %616 = vmatpush1.msra.mxu0 0.0
    %617 = vmatprep.subr.mxu0 0.0
    %618 = vmatpush1.msra.mxu0 0.0
    %619 = vmatprep.subr.mxu0 %v271
    %620 = vmatpush1.msra.mxu0 %v270
    %621 = vmatprep.subr.mxu0 %v269
    %622 = vmatpush1.msra.mxu0 %v268
    %623 = vmatprep.subr.mxu0 %v267
    %624 = vmatpush1.msra.mxu0 %v266
    %625 = vmatprep.subr.mxu0 %v265
    %626 = vmatpush1.msra.mxu0 %v264
    %627 = vmatprep.subr.mxu0 %v263
    %628 = vmatpush1.msra.mxu0 %v262
    %629 = vmatprep.subr.mxu0 %v261
    %630 = vmatpush1.msra.mxu0 %v260
    %631 = vmatprep.subr.mxu0 %v259
    %632 = vmatpush1.msra.mxu0 %v258
    %633 = vmatprep.subr.mxu0 %v257
    %634 = vmatpush1.msra.mxu0 %v256
    %635 = vmatprep.subr.mxu0 0.0
    %636 = vmatpush2.msra.mxu0 0.0
    %637 = vmatprep.subr.mxu0 0.0
    %638 = vmatpush2.msra.mxu0 0.0
    %639 = vmatprep.subr.mxu0 0.0
    %640 = vmatpush2.msra.mxu0 0.0
    %641 = vmatprep.subr.mxu0 0.0
    %642 = vmatpush2.msra.mxu0 0.0
    %643 = vmatprep.subr.mxu0 0.0
    %644 = vmatpush2.msra.mxu0 0.0
    %645 = vmatprep.subr.mxu0 0.0
    %646 = vmatpush2.msra.mxu0 0.0
    %647 = vmatprep.subr.mxu0 0.0
    %648 = vmatpush2.msra.mxu0 0.0
    %649 = vmatprep.subr.mxu0 0.0
    %650 = vmatpush2.msra.mxu0 0.0
    %651 = vmatprep.subr.mxu0 0.0
    %652 = vmatpush2.msra.mxu0 0.0
    %653 = vmatprep.subr.mxu0 0.0
    %654 = vmatpush2.msra.mxu0 0.0
    %655 = vmatprep.subr.mxu0 0.0
    %656 = vmatpush2.msra.mxu0 0.0
    %657 = vmatprep.subr.mxu0 0.0
    %658 = vmatpush2.msra.mxu0 0.0
    %659 = vmatprep.subr.mxu0 0.0
    %660 = vmatpush2.msra.mxu0 0.0
    %661 = vmatprep.subr.mxu0 0.0
    %662 = vmatpush2.msra.mxu0 0.0
    %663 = vmatprep.subr.mxu0 0.0
    %664 = vmatpush2.msra.mxu0 0.0
    %665 = vmatprep.subr.mxu0 0.0
    %666 = vmatpush2.msra.mxu0 0.0
    %667 = vmatprep.mubr.f32.mxu0 0.0
    %668 = vmatmul.mubr.f32.gmra.mxu0 %v601
    %v669 = vpop.f32.mrf.mxu0
    %v670 = vadd.f32 %v277, %v669
    %v671 = vpop.f32.mrf.mxu0
    %v672 = vadd.f32 %v281, %v671
    %673 = vdwg.mxu0
    %s674 = smul.u32 2, 2
    %s675 = smul.addr %s674, 8
    %s676 = scalar_lea.vmem [#allocation2], %s675
    %v677 = vld [vmem:[%s676] sm:$0xff]
    %v678 = vadd.f32 %v677, %v670
    %v679 = vxor.u32 %v678, 2147483648
    %v680 = vmul.f32 %v679, 1.442695
    %v681 = vpow.pop %v680
    %v682 = vadd.f32 %v681, 1.0
    %v683 = vrcp.pop %v682
    %v684 = vmul.f32 1.0, %v683
    %686 = vrot.lane.b32.xlu0 %v670, 64
    %v687 = vpop.permute.xlu0 %686
    %v689 = vmul.f32 %v684, %v687
    %691 = vrot.lane.b32.xlu0 %v689, 64
    %v692 = vpop.permute.xlu0 %691
    %v694 = vadd.f32 %v677, %v692
    %v695 = vtanh.pop %v694
    %v696 = vsub.f32 1.0, %v684
    %698 = vrot.lane.b32.xlu0 %v695, 96
    %v699 = vpop.permute.xlu0 %698
    %v701 = vmul.f32 %v696, %v699
    %702 = vrot.lane.b32.xlu0 %v599, 32
    %v703 = vpop.permute.xlu0 %702
    %v705 = vmul.f32 %v684, %v703
    %v706 = vadd.f32 %v701, %v705
    %708 = vrot.lane.b32.xlu0 %v706, 96
    %v709 = vpop.permute.xlu0 %708
    %s711 = scalar_lea.vmem [#allocation3], 16
    %712 = vst.msk [vmem:[%s711] sm:$0xff] %vm101, %v709
    %s713 = smul.u32 5, 2
    %s714 = smul.addr %s713, 8
    %s715 = scalar_lea.vmem [#allocation2], %s714
    %v716 = vld [vmem:[%s715] sm:$0xff]
    %v717 = vld [vmem:[%s715 + $0x8] sm:$0xff]
    %v718 = vadd.f32 %v716, %v670
    %v719 = vxor.u32 %v718, 2147483648
    %v720 = vmul.f32 %v719, 1.442695
    %v721 = vpow.pop %v720
    %v722 = vadd.f32 %v721, 1.0
    %v723 = vrcp.pop %v722
    %v724 = vmul.f32 1.0, %v723
    %v725 = vadd.f32 %v717, %v672
    %v726 = vxor.u32 %v725, 2147483648
    %v727 = vmul.f32 %v726, 1.442695
    %v728 = vpow.pop %v727
    %v729 = vadd.f32 %v728, 1.0
    %v730 = vrcp.pop %v729
    %v731 = vmul.f32 1.0, %v730
    %733 = vrot.lane.b32.xlu0 %v672, 64
    %v734 = vpop.permute.xlu0 %733
    %v736 = vmul.f32 %v724, %v734
    %738 = vrot.lane.b32.xlu0 %v736, 64
    %v739 = vpop.permute.xlu0 %738
    %v741 = vadd.f32 %v717, %v739
    %v742 = vtanh.pop %v741
    %v743 = vsub.f32 1.0, %v731
    %745 = vrot.lane.b32.xlu0 %v742, 96
    %v746 = vpop.permute.xlu0 %745
    %v748 = vmul.f32 %v743, %v746
    %749 = vrot.lane.b32.xlu0 %v599, 96
    %v750 = vpop.permute.xlu0 %749
    %v752 = vmul.f32 %v731, %v750
    %v753 = vadd.f32 %v748, %v752
    %755 = vrot.lane.b32.xlu0 %v753, 32
    %v756 = vpop.permute.xlu0 %755
    %s758 = scalar_lea.vmem [#allocation3], 40
    %759 = vst.msk [vmem:[%s758] sm:$0xff] %vm436, %v756
    %v760 = vsel %vm101, %v709, %v756
    %v762 = vsel %vm240, %v760, 0
    %764 = vmatprep.subr.mxu0 0.0
    %765 = vmatpush1.msra.mxu0 0.0
    %766 = vmatprep.subr.mxu0 0.0
    %767 = vmatpush1.msra.mxu0 0.0
    %768 = vmatprep.subr.mxu0 0.0
    %769 = vmatpush1.msra.mxu0 0.0
    %770 = vmatprep.subr.mxu0 0.0
    %771 = vmatpush1.msra.mxu0 0.0
    %772 = vmatprep.subr.mxu0 0.0
    %773 = vmatpush1.msra.mxu0 0.0
    %774 = vmatprep.subr.mxu0 0.0
    %775 = vmatpush1.msra.mxu0 0.0
    %776 = vmatprep.subr.mxu0 0.0
    %777 = vmatpush1.msra.mxu0 0.0
    %778 = vmatprep.subr.mxu0 0.0
    %779 = vmatpush1.msra.mxu0 0.0
    %780 = vmatprep.subr.mxu0 %v271
    %781 = vmatpush1.msra.mxu0 %v270
    %782 = vmatprep.subr.mxu0 %v269
    %783 = vmatpush1.msra.mxu0 %v268
    %784 = vmatprep.subr.mxu0 %v267
    %785 = vmatpush1.msra.mxu0 %v266
    %786 = vmatprep.subr.mxu0 %v265
    %787 = vmatpush1.msra.mxu0 %v264
    %788 = vmatprep.subr.mxu0 %v263
    %789 = vmatpush1.msra.mxu0 %v262
    %790 = vmatprep.subr.mxu0 %v261
    %791 = vmatpush1.msra.mxu0 %v260
    %792 = vmatprep.subr.mxu0 %v259
    %793 = vmatpush1.msra.mxu0 %v258
    %794 = vmatprep.subr.mxu0 %v257
    %795 = vmatpush1.msra.mxu0 %v256
    %796 = vmatprep.subr.mxu0 0.0
    %797 = vmatpush2.msra.mxu0 0.0
    %798 = vmatprep.subr.mxu0 0.0
    %799 = vmatpush2.msra.mxu0 0.0
    %800 = vmatprep.subr.mxu0 0.0
    %801 = vmatpush2.msra.mxu0 0.0
    %802 = vmatprep.subr.mxu0 0.0
    %803 = vmatpush2.msra.mxu0 0.0
    %804 = vmatprep.subr.mxu0 0.0
    %805 = vmatpush2.msra.mxu0 0.0
    %806 = vmatprep.subr.mxu0 0.0
    %807 = vmatpush2.msra.mxu0 0.0
    %808 = vmatprep.subr.mxu0 0.0
    %809 = vmatpush2.msra.mxu0 0.0
    %810 = vmatprep.subr.mxu0 0.0
    %811 = vmatpush2.msra.mxu0 0.0
    %812 = vmatprep.subr.mxu0 0.0
    %813 = vmatpush2.msra.mxu0 0.0
    %814 = vmatprep.subr.mxu0 0.0
    %815 = vmatpush2.msra.mxu0 0.0
    %816 = vmatprep.subr.mxu0 0.0
    %817 = vmatpush2.msra.mxu0 0.0
    %818 = vmatprep.subr.mxu0 0.0
    %819 = vmatpush2.msra.mxu0 0.0
    %820 = vmatprep.subr.mxu0 0.0
    %821 = vmatpush2.msra.mxu0 0.0
    %822 = vmatprep.subr.mxu0 0.0
    %823 = vmatpush2.msra.mxu0 0.0
    %824 = vmatprep.subr.mxu0 0.0
    %825 = vmatpush2.msra.mxu0 0.0
    %826 = vmatprep.subr.mxu0 0.0
    %827 = vmatpush2.msra.mxu0 0.0
    %828 = vmatprep.mubr.f32.mxu0 0.0
    %829 = vmatmul.mubr.f32.gmra.mxu0 %v762
    %v830 = vpop.f32.mrf.mxu0
    %v831 = vadd.f32 %v277, %v830
    %v832 = vpop.f32.mrf.mxu0
    %v833 = vadd.f32 %v281, %v832
    %834 = vdwg.mxu0
    %s835 = smul.u32 3, 2
    %s836 = smul.addr %s835, 8
    %s837 = scalar_lea.vmem [#allocation2], %s836
    %v838 = vld [vmem:[%s837] sm:$0xff]
    %v839 = vadd.f32 %v838, %v831
    %v840 = vxor.u32 %v839, 2147483648
    %v841 = vmul.f32 %v840, 1.442695
    %v842 = vpow.pop %v841
    %v843 = vadd.f32 %v842, 1.0
    %v844 = vrcp.pop %v843
    %v845 = vmul.f32 1.0, %v844
    %847 = vrot.lane.b32.xlu0 %v831, 64
    %v848 = vpop.permute.xlu0 %847
    %v850 = vmul.f32 %v845, %v848
    %852 = vrot.lane.b32.xlu0 %v850, 64
    %v853 = vpop.permute.xlu0 %852
    %v855 = vadd.f32 %v838, %v853
    %v856 = vtanh.pop %v855
    %v857 = vsub.f32 1.0, %v845
    %859 = vrot.lane.b32.xlu0 %v856, 96
    %v860 = vpop.permute.xlu0 %859
    %v862 = vmul.f32 %v857, %v860
    %863 = vrot.lane.b32.xlu0 %v760, 32
    %v864 = vpop.permute.xlu0 %863
    %v866 = vmul.f32 %v845, %v864
    %v867 = vadd.f32 %v862, %v866
    %869 = vrot.lane.b32.xlu0 %v867, 96
    %v870 = vpop.permute.xlu0 %869
    %s872 = scalar_lea.vmem [#allocation3], 24
    %873 = vst.msk [vmem:[%s872] sm:$0xff] %vm101, %v870
    %s874 = smul.u32 4, 2
    %s875 = smul.addr %s874, 8
    %s876 = scalar_lea.vmem [#allocation2], %s875
    %v877 = vld [vmem:[%s876] sm:$0xff]
    %v878 = vld [vmem:[%s876 + $0x8] sm:$0xff]
    %v879 = vadd.f32 %v877, %v831
    %v880 = vxor.u32 %v879, 2147483648
    %v881 = vmul.f32 %v880, 1.442695
    %v882 = vpow.pop %v881
    %v883 = vadd.f32 %v882, 1.0
    %v884 = vrcp.pop %v883
    %v885 = vmul.f32 1.0, %v884
    %v886 = vadd.f32 %v878, %v833
    %v887 = vxor.u32 %v886, 2147483648
    %v888 = vmul.f32 %v887, 1.442695
    %v889 = vpow.pop %v888
    %v890 = vadd.f32 %v889, 1.0
    %v891 = vrcp.pop %v890
    %v892 = vmul.f32 1.0, %v891
    %894 = vrot.lane.b32.xlu0 %v833, 64
    %v895 = vpop.permute.xlu0 %894
    %v897 = vmul.f32 %v885, %v895
    %899 = vrot.lane.b32.xlu0 %v897, 64
    %v900 = vpop.permute.xlu0 %899
    %v902 = vadd.f32 %v878, %v900
    %v903 = vtanh.pop %v902
    %v904 = vsub.f32 1.0, %v892
    %906 = vrot.lane.b32.xlu0 %v903, 96
    %v907 = vpop.permute.xlu0 %906
    %v909 = vmul.f32 %v904, %v907
    %910 = vrot.lane.b32.xlu0 %v760, 96
    %v911 = vpop.permute.xlu0 %910
    %v913 = vmul.f32 %v892, %v911
    %v914 = vadd.f32 %v909, %v913
    %916 = vrot.lane.b32.xlu0 %v914, 32
    %v917 = vpop.permute.xlu0 %916
    %s919 = scalar_lea.vmem [#allocation3], 32
    %920 = vst.msk [vmem:[%s919] sm:$0xff] %vm436, %v917
    %v921 = vsel %vm101, %v870, %v917
    %v923 = vsel %vm240, %v921, 0
    %925 = vmatprep.subr.mxu0 0.0
    %926 = vmatpush1.msra.mxu0 0.0
    %927 = vmatprep.subr.mxu0 0.0
    %928 = vmatpush1.msra.mxu0 0.0
    %929 = vmatprep.subr.mxu0 0.0
    %930 = vmatpush1.msra.mxu0 0.0
    %931 = vmatprep.subr.mxu0 0.0
    %932 = vmatpush1.msra.mxu0 0.0
    %933 = vmatprep.subr.mxu0 0.0
    %934 = vmatpush1.msra.mxu0 0.0
    %935 = vmatprep.subr.mxu0 0.0
    %936 = vmatpush1.msra.mxu0 0.0
    %937 = vmatprep.subr.mxu0 0.0
    %938 = vmatpush1.msra.mxu0 0.0
    %939 = vmatprep.subr.mxu0 0.0
    %940 = vmatpush1.msra.mxu0 0.0
    %941 = vmatprep.subr.mxu0 %v271
    %942 = vmatpush1.msra.mxu0 %v270
    %943 = vmatprep.subr.mxu0 %v269
    %944 = vmatpush1.msra.mxu0 %v268
    %945 = vmatprep.subr.mxu0 %v267
    %946 = vmatpush1.msra.mxu0 %v266
    %947 = vmatprep.subr.mxu0 %v265
    %948 = vmatpush1.msra.mxu0 %v264
    %949 = vmatprep.subr.mxu0 %v263
    %950 = vmatpush1.msra.mxu0 %v262
    %951 = vmatprep.subr.mxu0 %v261
    %952 = vmatpush1.msra.mxu0 %v260
    %953 = vmatprep.subr.mxu0 %v259
    %954 = vmatpush1.msra.mxu0 %v258
    %955 = vmatprep.subr.mxu0 %v257
    %956 = vmatpush1.msra.mxu0 %v256
    %957 = vmatprep.subr.mxu0 0.0
    %958 = vmatpush2.msra.mxu0 0.0
    %959 = vmatprep.subr.mxu0 0.0
    %960 = vmatpush2.msra.mxu0 0.0
    %961 = vmatprep.subr.mxu0 0.0
    %962 = vmatpush2.msra.mxu0 0.0
    %963 = vmatprep.subr.mxu0 0.0
    %964 = vmatpush2.msra.mxu0 0.0
    %965 = vmatprep.subr.mxu0 0.0
    %966 = vmatpush2.msra.mxu0 0.0
    %967 = vmatprep.subr.mxu0 0.0
    %968 = vmatpush2.msra.mxu0 0.0
    %969 = vmatprep.subr.mxu0 0.0
    %970 = vmatpush2.msra.mxu0 0.0
    %971 = vmatprep.subr.mxu0 0.0
    %972 = vmatpush2.msra.mxu0 0.0
    %973 = vmatprep.subr.mxu0 0.0
    %974 = vmatpush2.msra.mxu0 0.0
    %975 = vmatprep.subr.mxu0 0.0
    %976 = vmatpush2.msra.mxu0 0.0
    %977 = vmatprep.subr.mxu0 0.0
    %978 = vmatpush2.msra.mxu0 0.0
    %979 = vmatprep.subr.mxu0 0.0
    %980 = vmatpush2.msra.mxu0 0.0
    %981 = vmatprep.subr.mxu0 0.0
    %982 = vmatpush2.msra.mxu0 0.0
    %983 = vmatprep.subr.mxu0 0.0
    %984 = vmatpush2.msra.mxu0 0.0
    %985 = vmatprep.subr.mxu0 0.0
    %986 = vmatpush2.msra.mxu0 0.0
    %987 = vmatprep.subr.mxu0 0.0
    %988 = vmatpush2.msra.mxu0 0.0
    %989 = vmatprep.mubr.f32.mxu0 0.0
    %990 = vmatmul.mubr.f32.gmra.mxu0 %v923
    %v991 = vpop.f32.mrf.mxu0
    %v992 = vadd.f32 %v277, %v991
    %v993 = vpop.f32.mrf.mxu0
    %v994 = vadd.f32 %v281, %v993
    %995 = vdwg.mxu0
    %v996 = vld [vmem:[%s876] sm:$0xff]
    %v997 = vadd.f32 %v996, %v992
    %v998 = vxor.u32 %v997, 2147483648
    %v999 = vmul.f32 %v998, 1.442695
    %v1000 = vpow.pop %v999
    %v1001 = vadd.f32 %v1000, 1.0
    %v1002 = vrcp.pop %v1001
    %v1003 = vmul.f32 1.0, %v1002
    %1005 = vrot.lane.b32.xlu0 %v992, 64
    %v1006 = vpop.permute.xlu0 %1005
    %v1008 = vmul.f32 %v1003, %v1006
    %1010 = vrot.lane.b32.xlu0 %v1008, 64
    %v1011 = vpop.permute.xlu0 %1010
    %v1013 = vadd.f32 %v996, %v1011
    %v1014 = vtanh.pop %v1013
    %v1015 = vsub.f32 1.0, %v1003
    %1017 = vrot.lane.b32.xlu0 %v1014, 96
    %v1018 = vpop.permute.xlu0 %1017
    %v1020 = vmul.f32 %v1015, %v1018
    %1021 = vrot.lane.b32.xlu0 %v921, 32
    %v1022 = vpop.permute.xlu0 %1021
    %v1024 = vmul.f32 %v1003, %v1022
    %v1025 = vadd.f32 %v1020, %v1024
    %1027 = vrot.lane.b32.xlu0 %v1025, 96
    %v1028 = vpop.permute.xlu0 %1027
    %1030 = vst.msk [vmem:[%s919] sm:$0xff] %vm101, %v1028
    %v1031 = vld [vmem:[%s837] sm:$0xff]
    %v1032 = vld [vmem:[%s837 + $0x8] sm:$0xff]
    %v1033 = vadd.f32 %v1031, %v992
    %v1034 = vxor.u32 %v1033, 2147483648
    %v1035 = vmul.f32 %v1034, 1.442695
    %v1036 = vpow.pop %v1035
    %v1037 = vadd.f32 %v1036, 1.0
    %v1038 = vrcp.pop %v1037
    %v1039 = vmul.f32 1.0, %v1038
    %v1040 = vadd.f32 %v1032, %v994
    %v1041 = vxor.u32 %v1040, 2147483648
    %v1042 = vmul.f32 %v1041, 1.442695
    %v1043 = vpow.pop %v1042
    %v1044 = vadd.f32 %v1043, 1.0
    %v1045 = vrcp.pop %v1044
    %v1046 = vmul.f32 1.0, %v1045
    %1048 = vrot.lane.b32.xlu0 %v994, 64
    %v1049 = vpop.permute.xlu0 %1048
    %v1051 = vmul.f32 %v1039, %v1049
    %1053 = vrot.lane.b32.xlu0 %v1051, 64
    %v1054 = vpop.permute.xlu0 %1053
    %v1056 = vadd.f32 %v1032, %v1054
    %v1057 = vtanh.pop %v1056
    %v1058 = vsub.f32 1.0, %v1046
    %1060 = vrot.lane.b32.xlu0 %v1057, 96
    %v1061 = vpop.permute.xlu0 %1060
    %v1063 = vmul.f32 %v1058, %v1061
    %1064 = vrot.lane.b32.xlu0 %v921, 96
    %v1065 = vpop.permute.xlu0 %1064
    %v1067 = vmul.f32 %v1046, %v1065
    %v1068 = vadd.f32 %v1063, %v1067
    %1070 = vrot.lane.b32.xlu0 %v1068, 32
    %v1071 = vpop.permute.xlu0 %1070
    %1073 = vst.msk [vmem:[%s872] sm:$0xff] %vm436, %v1071
    %v1074 = vsel %vm101, %v1028, %v1071
    %v1076 = vsel %vm240, %v1074, 0
    %1078 = vmatprep.subr.mxu0 0.0
    %1079 = vmatpush1.msra.mxu0 0.0
    %1080 = vmatprep.subr.mxu0 0.0
    %1081 = vmatpush1.msra.mxu0 0.0
    %1082 = vmatprep.subr.mxu0 0.0
    %1083 = vmatpush1.msra.mxu0 0.0
    %1084 = vmatprep.subr.mxu0 0.0
    %1085 = vmatpush1.msra.mxu0 0.0
    %1086 = vmatprep.subr.mxu0 0.0
    %1087 = vmatpush1.msra.mxu0 0.0
    %1088 = vmatprep.subr.mxu0 0.0
    %1089 = vmatpush1.msra.mxu0 0.0
    %1090 = vmatprep.subr.mxu0 0.0
    %1091 = vmatpush1.msra.mxu0 0.0
    %1092 = vmatprep.subr.mxu0 0.0
    %1093 = vmatpush1.msra.mxu0 0.0
    %1094 = vmatprep.subr.mxu0 %v271
    %1095 = vmatpush1.msra.mxu0 %v270
    %1096 = vmatprep.subr.mxu0 %v269
    %1097 = vmatpush1.msra.mxu0 %v268
    %1098 = vmatprep.subr.mxu0 %v267
    %1099 = vmatpush1.msra.mxu0 %v266
    %1100 = vmatprep.subr.mxu0 %v265
    %1101 = vmatpush1.msra.mxu0 %v264
    %1102 = vmatprep.subr.mxu0 %v263
    %1103 = vmatpush1.msra.mxu0 %v262
    %1104 = vmatprep.subr.mxu0 %v261
    %1105 = vmatpush1.msra.mxu0 %v260
    %1106 = vmatprep.subr.mxu0 %v259
    %1107 = vmatpush1.msra.mxu0 %v258
    %1108 = vmatprep.subr.mxu0 %v257
    %1109 = vmatpush1.msra.mxu0 %v256
    %1110 = vmatprep.subr.mxu0 0.0
    %1111 = vmatpush2.msra.mxu0 0.0
    %1112 = vmatprep.subr.mxu0 0.0
    %1113 = vmatpush2.msra.mxu0 0.0
    %1114 = vmatprep.subr.mxu0 0.0
    %1115 = vmatpush2.msra.mxu0 0.0
    %1116 = vmatprep.subr.mxu0 0.0
    %1117 = vmatpush2.msra.mxu0 0.0
    %1118 = vmatprep.subr.mxu0 0.0
    %1119 = vmatpush2.msra.mxu0 0.0
    %1120 = vmatprep.subr.mxu0 0.0
    %1121 = vmatpush2.msra.mxu0 0.0
    %1122 = vmatprep.subr.mxu0 0.0
    %1123 = vmatpush2.msra.mxu0 0.0
    %1124 = vmatprep.subr.mxu0 0.0
    %1125 = vmatpush2.msra.mxu0 0.0
    %1126 = vmatprep.subr.mxu0 0.0
    %1127 = vmatpush2.msra.mxu0 0.0
    %1128 = vmatprep.subr.mxu0 0.0
    %1129 = vmatpush2.msra.mxu0 0.0
    %1130 = vmatprep.subr.mxu0 0.0
    %1131 = vmatpush2.msra.mxu0 0.0
    %1132 = vmatprep.subr.mxu0 0.0
    %1133 = vmatpush2.msra.mxu0 0.0
    %1134 = vmatprep.subr.mxu0 0.0
    %1135 = vmatpush2.msra.mxu0 0.0
    %1136 = vmatprep.subr.mxu0 0.0
    %1137 = vmatpush2.msra.mxu0 0.0
    %1138 = vmatprep.subr.mxu0 0.0
    %1139 = vmatpush2.msra.mxu0 0.0
    %1140 = vmatprep.subr.mxu0 0.0
    %1141 = vmatpush2.msra.mxu0 0.0
    %1142 = vmatprep.mubr.f32.mxu0 0.0
    %1143 = vmatmul.mubr.f32.gmra.mxu0 %v1076
    %v1144 = vpop.f32.mrf.mxu0
    %v1145 = vadd.f32 %v277, %v1144
    %v1146 = vpop.f32.mrf.mxu0
    %v1147 = vadd.f32 %v281, %v1146
    %1148 = vdwg.mxu0
    %v1149 = vld [vmem:[%s715] sm:$0xff]
    %v1150 = vadd.f32 %v1149, %v1145
    %v1151 = vxor.u32 %v1150, 2147483648
    %v1152 = vmul.f32 %v1151, 1.442695
    %v1153 = vpow.pop %v1152
    %v1154 = vadd.f32 %v1153, 1.0
    %v1155 = vrcp.pop %v1154
    %v1156 = vmul.f32 1.0, %v1155
    %1158 = vrot.lane.b32.xlu0 %v1145, 64
    %v1159 = vpop.permute.xlu0 %1158
    %v1161 = vmul.f32 %v1156, %v1159
    %1163 = vrot.lane.b32.xlu0 %v1161, 64
    %v1164 = vpop.permute.xlu0 %1163
    %v1166 = vadd.f32 %v1149, %v1164
    %v1167 = vtanh.pop %v1166
    %v1168 = vsub.f32 1.0, %v1156
    %1170 = vrot.lane.b32.xlu0 %v1167, 96
    %v1171 = vpop.permute.xlu0 %1170
    %v1173 = vmul.f32 %v1168, %v1171
    %1174 = vrot.lane.b32.xlu0 %v1074, 32
    %v1175 = vpop.permute.xlu0 %1174
    %v1177 = vmul.f32 %v1156, %v1175
    %v1178 = vadd.f32 %v1173, %v1177
    %1180 = vrot.lane.b32.xlu0 %v1178, 96
    %v1181 = vpop.permute.xlu0 %1180
    %1183 = vst.msk [vmem:[%s758] sm:$0xff] %vm101, %v1181
    %v1184 = vld [vmem:[%s676] sm:$0xff]
    %v1185 = vld [vmem:[%s676 + $0x8] sm:$0xff]
    %v1186 = vadd.f32 %v1184, %v1145
    %v1187 = vxor.u32 %v1186, 2147483648
    %v1188 = vmul.f32 %v1187, 1.442695
    %v1189 = vpow.pop %v1188
    %v1190 = vadd.f32 %v1189, 1.0
    %v1191 = vrcp.pop %v1190
    %v1192 = vmul.f32 1.0, %v1191
    %v1193 = vadd.f32 %v1185, %v1147
    %v1194 = vxor.u32 %v1193, 2147483648
    %v1195 = vmul.f32 %v1194, 1.442695
    %v1196 = vpow.pop %v1195
    %v1197 = vadd.f32 %v1196, 1.0
    %v1198 = vrcp.pop %v1197
    %v1199 = vmul.f32 1.0, %v1198
    %1201 = vrot.lane.b32.xlu0 %v1147, 64
    %v1202 = vpop.permute.xlu0 %1201
    %v1204 = vmul.f32 %v1192, %v1202
    %1206 = vrot.lane.b32.xlu0 %v1204, 64
    %v1207 = vpop.permute.xlu0 %1206
    %v1209 = vadd.f32 %v1185, %v1207
    %v1210 = vtanh.pop %v1209
    %v1211 = vsub.f32 1.0, %v1199
    %1213 = vrot.lane.b32.xlu0 %v1210, 96
    %v1214 = vpop.permute.xlu0 %1213
    %v1216 = vmul.f32 %v1211, %v1214
    %1217 = vrot.lane.b32.xlu0 %v1074, 96
    %v1218 = vpop.permute.xlu0 %1217
    %v1220 = vmul.f32 %v1199, %v1218
    %v1221 = vadd.f32 %v1216, %v1220
    %1223 = vrot.lane.b32.xlu0 %v1221, 32
    %v1224 = vpop.permute.xlu0 %1223
    %1226 = vst.msk [vmem:[%s711] sm:$0xff] %vm436, %v1224
    %v1227 = vsel %vm101, %v1181, %v1224
    %v1229 = vsel %vm240, %v1227, 0
    %1231 = vmatprep.subr.mxu0 0.0
    %1232 = vmatpush1.msra.mxu0 0.0
    %1233 = vmatprep.subr.mxu0 0.0
    %1234 = vmatpush1.msra.mxu0 0.0
    %1235 = vmatprep.subr.mxu0 0.0
    %1236 = vmatpush1.msra.mxu0 0.0
    %1237 = vmatprep.subr.mxu0 0.0
    %1238 = vmatpush1.msra.mxu0 0.0
    %1239 = vmatprep.subr.mxu0 0.0
    %1240 = vmatpush1.msra.mxu0 0.0
    %1241 = vmatprep.subr.mxu0 0.0
    %1242 = vmatpush1.msra.mxu0 0.0
    %1243 = vmatprep.subr.mxu0 0.0
    %1244 = vmatpush1.msra.mxu0 0.0
    %1245 = vmatprep.subr.mxu0 0.0
    %1246 = vmatpush1.msra.mxu0 0.0
    %1247 = vmatprep.subr.mxu0 %v271
    %1248 = vmatpush1.msra.mxu0 %v270
    %1249 = vmatprep.subr.mxu0 %v269
    %1250 = vmatpush1.msra.mxu0 %v268
    %1251 = vmatprep.subr.mxu0 %v267
    %1252 = vmatpush1.msra.mxu0 %v266
    %1253 = vmatprep.subr.mxu0 %v265
    %1254 = vmatpush1.msra.mxu0 %v264
    %1255 = vmatprep.subr.mxu0 %v263
    %1256 = vmatpush1.msra.mxu0 %v262
    %1257 = vmatprep.subr.mxu0 %v261
    %1258 = vmatpush1.msra.mxu0 %v260
    %1259 = vmatprep.subr.mxu0 %v259
    %1260 = vmatpush1.msra.mxu0 %v258
    %1261 = vmatprep.subr.mxu0 %v257
    %1262 = vmatpush1.msra.mxu0 %v256
    %1263 = vmatprep.subr.mxu0 0.0
    %1264 = vmatpush2.msra.mxu0 0.0
    %1265 = vmatprep.subr.mxu0 0.0
    %1266 = vmatpush2.msra.mxu0 0.0
    %1267 = vmatprep.subr.mxu0 0.0
    %1268 = vmatpush2.msra.mxu0 0.0
    %1269 = vmatprep.subr.mxu0 0.0
    %1270 = vmatpush2.msra.mxu0 0.0
    %1271 = vmatprep.subr.mxu0 0.0
    %1272 = vmatpush2.msra.mxu0 0.0
    %1273 = vmatprep.subr.mxu0 0.0
    %1274 = vmatpush2.msra.mxu0 0.0
    %1275 = vmatprep.subr.mxu0 0.0
    %1276 = vmatpush2.msra.mxu0 0.0
    %1277 = vmatprep.subr.mxu0 0.0
    %1278 = vmatpush2.msra.mxu0 0.0
    %1279 = vmatprep.subr.mxu0 0.0
    %1280 = vmatpush2.msra.mxu0 0.0
    %1281 = vmatprep.subr.mxu0 0.0
    %1282 = vmatpush2.msra.mxu0 0.0
    %1283 = vmatprep.subr.mxu0 0.0
    %1284 = vmatpush2.msra.mxu0 0.0
    %1285 = vmatprep.subr.mxu0 0.0
    %1286 = vmatpush2.msra.mxu0 0.0
    %1287 = vmatprep.subr.mxu0 0.0
    %1288 = vmatpush2.msra.mxu0 0.0
    %1289 = vmatprep.subr.mxu0 0.0
    %1290 = vmatpush2.msra.mxu0 0.0
    %1291 = vmatprep.subr.mxu0 0.0
    %1292 = vmatpush2.msra.mxu0 0.0
    %1293 = vmatprep.subr.mxu0 0.0
    %1294 = vmatpush2.msra.mxu0 0.0
    %1295 = vmatprep.mubr.f32.mxu0 0.0
    %1296 = vmatmul.mubr.f32.gmra.mxu0 %v1229
    %v1297 = vpop.f32.mrf.mxu0
    %v1298 = vadd.f32 %v277, %v1297
    %v1299 = vpop.f32.mrf.mxu0
    %v1300 = vadd.f32 %v281, %v1299
    %1301 = vdwg.mxu0
    %v1302 = vld [vmem:[%s554] sm:$0xff]
    %v1303 = vadd.f32 %v1302, %v1298
    %v1304 = vxor.u32 %v1303, 2147483648
    %v1305 = vmul.f32 %v1304, 1.442695
    %v1306 = vpow.pop %v1305
    %v1307 = vadd.f32 %v1306, 1.0
    %v1308 = vrcp.pop %v1307
    %v1309 = vmul.f32 1.0, %v1308
    %1311 = vrot.lane.b32.xlu0 %v1298, 64
    %v1312 = vpop.permute.xlu0 %1311
    %v1314 = vmul.f32 %v1309, %v1312
    %1316 = vrot.lane.b32.xlu0 %v1314, 64
    %v1317 = vpop.permute.xlu0 %1316
    %v1319 = vadd.f32 %v1302, %v1317
    %v1320 = vtanh.pop %v1319
    %v1321 = vsub.f32 1.0, %v1309
    %1323 = vrot.lane.b32.xlu0 %v1320, 96
    %v1324 = vpop.permute.xlu0 %1323
    %v1326 = vmul.f32 %v1321, %v1324
    %1327 = vrot.lane.b32.xlu0 %v1227, 32
    %v1328 = vpop.permute.xlu0 %1327
    %v1330 = vmul.f32 %v1309, %v1328
    %v1331 = vadd.f32 %v1326, %v1330
    %1333 = vrot.lane.b32.xlu0 %v1331, 96
    %v1334 = vpop.permute.xlu0 %1333
    %1336 = vst.msk [vmem:[%s597] sm:$0xff] %vm101, %v1334
    %v1337 = vld [vmem:[%s515] sm:$0xff]
    %v1338 = vld [vmem:[%s515 + $0x8] sm:$0xff]
    %v1339 = vadd.f32 %v1337, %v1298
    %v1340 = vxor.u32 %v1339, 2147483648
    %v1341 = vmul.f32 %v1340, 1.442695
    %v1342 = vpow.pop %v1341
    %v1343 = vadd.f32 %v1342, 1.0
    %v1344 = vrcp.pop %v1343
    %v1345 = vmul.f32 1.0, %v1344
    %v1346 = vadd.f32 %v1338, %v1300
    %v1347 = vxor.u32 %v1346, 2147483648
    %v1348 = vmul.f32 %v1347, 1.442695
    %v1349 = vpow.pop %v1348
    %v1350 = vadd.f32 %v1349, 1.0
    %v1351 = vrcp.pop %v1350
    %v1352 = vmul.f32 1.0, %v1351
    %1354 = vrot.lane.b32.xlu0 %v1300, 64
    %v1355 = vpop.permute.xlu0 %1354
    %v1357 = vmul.f32 %v1345, %v1355
    %1359 = vrot.lane.b32.xlu0 %v1357, 64
    %v1360 = vpop.permute.xlu0 %1359
    %v1362 = vadd.f32 %v1338, %v1360
    %v1363 = vtanh.pop %v1362
    %v1364 = vsub.f32 1.0, %v1352
    %1366 = vrot.lane.b32.xlu0 %v1363, 96
    %v1367 = vpop.permute.xlu0 %1366
    %v1369 = vmul.f32 %v1364, %v1367
    %1370 = vrot.lane.b32.xlu0 %v1227, 96
    %v1371 = vpop.permute.xlu0 %1370
    %v1373 = vmul.f32 %v1352, %v1371
    %v1374 = vadd.f32 %v1369, %v1373
    %1376 = vrot.lane.b32.xlu0 %v1374, 32
    %v1377 = vpop.permute.xlu0 %1376
    %1379 = vst.msk [vmem:[%s550] sm:$0xff] %vm436, %v1377
    %v1380 = vsel %vm101, %v1334, %v1377
    %v1382 = vsel %vm240, %v1380, 0
    %1384 = vmatprep.subr.mxu0 0.0
    %1385 = vmatpush1.msra.mxu0 0.0
    %1386 = vmatprep.subr.mxu0 0.0
    %1387 = vmatpush1.msra.mxu0 0.0
    %1388 = vmatprep.subr.mxu0 0.0
    %1389 = vmatpush1.msra.mxu0 0.0
    %1390 = vmatprep.subr.mxu0 0.0
    %1391 = vmatpush1.msra.mxu0 0.0
    %1392 = vmatprep.subr.mxu0 0.0
    %1393 = vmatpush1.msra.mxu0 0.0
    %1394 = vmatprep.subr.mxu0 0.0
    %1395 = vmatpush1.msra.mxu0 0.0
    %1396 = vmatprep.subr.mxu0 0.0
    %1397 = vmatpush1.msra.mxu0 0.0
    %1398 = vmatprep.subr.mxu0 0.0
    %1399 = vmatpush1.msra.mxu0 0.0
    %1400 = vmatprep.subr.mxu0 %v271
    %1401 = vmatpush1.msra.mxu0 %v270
    %1402 = vmatprep.subr.mxu0 %v269
    %1403 = vmatpush1.msra.mxu0 %v268
    %1404 = vmatprep.subr.mxu0 %v267
    %1405 = vmatpush1.msra.mxu0 %v266
    %1406 = vmatprep.subr.mxu0 %v265
    %1407 = vmatpush1.msra.mxu0 %v264
    %1408 = vmatprep.subr.mxu0 %v263
    %1409 = vmatpush1.msra.mxu0 %v262
    %1410 = vmatprep.subr.mxu0 %v261
    %1411 = vmatpush1.msra.mxu0 %v260
    %1412 = vmatprep.subr.mxu0 %v259
    %1413 = vmatpush1.msra.mxu0 %v258
    %1414 = vmatprep.subr.mxu0 %v257
    %1415 = vmatpush1.msra.mxu0 %v256
    %1416 = vmatprep.subr.mxu0 0.0
    %1417 = vmatpush2.msra.mxu0 0.0
    %1418 = vmatprep.subr.mxu0 0.0
    %1419 = vmatpush2.msra.mxu0 0.0
    %1420 = vmatprep.subr.mxu0 0.0
    %1421 = vmatpush2.msra.mxu0 0.0
    %1422 = vmatprep.subr.mxu0 0.0
    %1423 = vmatpush2.msra.mxu0 0.0
    %1424 = vmatprep.subr.mxu0 0.0
    %1425 = vmatpush2.msra.mxu0 0.0
    %1426 = vmatprep.subr.mxu0 0.0
    %1427 = vmatpush2.msra.mxu0 0.0
    %1428 = vmatprep.subr.mxu0 0.0
    %1429 = vmatpush2.msra.mxu0 0.0
    %1430 = vmatprep.subr.mxu0 0.0
    %1431 = vmatpush2.msra.mxu0 0.0
    %1432 = vmatprep.subr.mxu0 0.0
    %1433 = vmatpush2.msra.mxu0 0.0
    %1434 = vmatprep.subr.mxu0 0.0
    %1435 = vmatpush2.msra.mxu0 0.0
    %1436 = vmatprep.subr.mxu0 0.0
    %1437 = vmatpush2.msra.mxu0 0.0
    %1438 = vmatprep.subr.mxu0 0.0
    %1439 = vmatpush2.msra.mxu0 0.0
    %1440 = vmatprep.subr.mxu0 0.0
    %1441 = vmatpush2.msra.mxu0 0.0
    %1442 = vmatprep.subr.mxu0 0.0
    %1443 = vmatpush2.msra.mxu0 0.0
    %1444 = vmatprep.subr.mxu0 0.0
    %1445 = vmatpush2.msra.mxu0 0.0
    %1446 = vmatprep.subr.mxu0 0.0
    %1447 = vmatpush2.msra.mxu0 0.0
    %1448 = vmatprep.mubr.f32.mxu0 0.0
    %1449 = vmatmul.mubr.f32.gmra.mxu0 %v1382
    %v1450 = vpop.f32.mrf.mxu0
    %v1451 = vadd.f32 %v277, %v1450
    %v1452 = vpop.f32.mrf.mxu0
    %v1453 = vadd.f32 %v281, %v1452
    %1454 = vdwg.mxu0
    %v1455 = vld [vmem:[%s395] sm:$0xff]
    %v1456 = vadd.f32 %v1455, %v1451
    %v1457 = vxor.u32 %v1456, 2147483648
    %v1458 = vmul.f32 %v1457, 1.442695
    %v1459 = vpow.pop %v1458
    %v1460 = vadd.f32 %v1459, 1.0
    %v1461 = vrcp.pop %v1460
    %v1462 = vmul.f32 1.0, %v1461
    %1464 = vrot.lane.b32.xlu0 %v1451, 64
    %v1465 = vpop.permute.xlu0 %1464
    %v1467 = vmul.f32 %v1462, %v1465
    %1469 = vrot.lane.b32.xlu0 %v1467, 64
    %v1470 = vpop.permute.xlu0 %1469
    %v1472 = vadd.f32 %v1455, %v1470
    %v1473 = vtanh.pop %v1472
    %v1474 = vsub.f32 1.0, %v1462
    %1476 = vrot.lane.b32.xlu0 %v1473, 96
    %v1477 = vpop.permute.xlu0 %1476
    %v1479 = vmul.f32 %v1474, %v1477
    %1480 = vrot.lane.b32.xlu0 %v1380, 32
    %v1481 = vpop.permute.xlu0 %1480
    %v1483 = vmul.f32 %v1462, %v1481
    %v1484 = vadd.f32 %v1479, %v1483
    %1486 = vrot.lane.b32.xlu0 %v1484, 96
    %v1487 = vpop.permute.xlu0 %1486
    %1489 = vst.msk [vmem:[%s435] sm:$0xff] %vm101, %v1487
    %v1490 = vld [vmem:[%s360] sm:$0xff]
    %v1491 = vld [vmem:[%s360 + $0x8] sm:$0xff]
    %v1492 = vadd.f32 %v1490, %v1451
    %v1493 = vxor.u32 %v1492, 2147483648
    %v1494 = vmul.f32 %v1493, 1.442695
    %v1495 = vpow.pop %v1494
    %v1496 = vadd.f32 %v1495, 1.0
    %v1497 = vrcp.pop %v1496
    %v1498 = vmul.f32 1.0, %v1497
    %v1499 = vadd.f32 %v1491, %v1453
    %v1500 = vxor.u32 %v1499, 2147483648
    %v1501 = vmul.f32 %v1500, 1.442695
    %v1502 = vpow.pop %v1501
    %v1503 = vadd.f32 %v1502, 1.0
    %v1504 = vrcp.pop %v1503
    %v1505 = vmul.f32 1.0, %v1504
    %1507 = vrot.lane.b32.xlu0 %v1453, 64
    %v1508 = vpop.permute.xlu0 %1507
    %v1510 = vmul.f32 %v1498, %v1508
    %1512 = vrot.lane.b32.xlu0 %v1510, 64
    %v1513 = vpop.permute.xlu0 %1512
    %v1515 = vadd.f32 %v1491, %v1513
    %v1516 = vtanh.pop %v1515
    %v1517 = vsub.f32 1.0, %v1505
    %1519 = vrot.lane.b32.xlu0 %v1516, 96
    %v1520 = vpop.permute.xlu0 %1519
    %v1522 = vmul.f32 %v1517, %v1520
    %1523 = vrot.lane.b32.xlu0 %v1380, 96
    %v1524 = vpop.permute.xlu0 %1523
    %v1526 = vmul.f32 %v1505, %v1524
    %v1527 = vadd.f32 %v1522, %v1526
    %1529 = vrot.lane.b32.xlu0 %v1527, 32
    %v1530 = vpop.permute.xlu0 %1529
    %1532 = vst.msk [vmem:[#allocation3] sm:$0xff] %vm436, %v1530
    %v1533 = vld [vmem:[#allocation3] sm:$0xff]
    %v1534 = vld [vmem:[#allocation3 + $0x8] sm:$0xff]
    %v1535 = vld [vmem:[#allocation3 + $0x10] sm:$0xff]
    %v1536 = vld [vmem:[#allocation3 + $0x18] sm:$0xff]
    %v1537 = vld [vmem:[#allocation3 + $0x20] sm:$0xff]
    %v1538 = vld [vmem:[#allocation3 + $0x28] sm:$0xff]
    %v1539 = vld [vmem:[#allocation3 + $0x30] sm:$0xff]
    %v1540 = vld [vmem:[#allocation3 + $0x38] sm:$0xff]
    %v1541 = vld [vmem:[#allocation6] sm:$0xff]
    %v1542 = vld [vmem:[#allocation6 + $0x8] sm:$0xff]
    %v1543 = vld [vmem:[#allocation6 + $0x10] sm:$0xff]
    %v1544 = vld [vmem:[#allocation6 + $0x18] sm:$0xff]
    %v1545 = vld [vmem:[#allocation6 + $0x20] sm:$0xff]
    %v1546 = vld [vmem:[#allocation6 + $0x28] sm:$0xff]
    %v1547 = vld [vmem:[#allocation6 + $0x30] sm:$0xff]
    %v1548 = vld [vmem:[#allocation6 + $0x38] sm:$0xff]
    %v1549 = vld [vmem:[#allocation6 + $0x40] sm:$0xff]
    %v1550 = vld [vmem:[#allocation6 + $0x48] sm:$0xff]
    %v1551 = vld [vmem:[#allocation6 + $0x50] sm:$0xff]
    %v1552 = vld [vmem:[#allocation6 + $0x58] sm:$0xff]
    %v1553 = vld [vmem:[#allocation6 + $0x60] sm:$0xff]
    %v1554 = vld [vmem:[#allocation6 + $0x68] sm:$0xff]
    %v1555 = vld [vmem:[#allocation6 + $0x70] sm:$0xff]
    %v1556 = vld [vmem:[#allocation6 + $0x78] sm:$0xff]
    %v1557 = vld [vmem:[%s7] sm:$0x3]
    %v1559 = vlaneseq
    %v1560 = vshrl.u32 %v1559, 7
    %v1561 = vsub.s32 0, %v1560
    %v1562 = vrot.slane %v1557, %v1561
    %v1563 = vlaneseq
    %v1564 = vshrl.u32 %v1563, 7
    %v1565 = vsub.s32 1, %v1564
    %v1566 = vrot.slane %v1557, %v1565
    %v1570 = vsel %vm240, %v1533, 0
    %v1573 = vsel %vm240, %v1534, 0
    %v1576 = vsel %vm240, %v1535, 0
    %v1579 = vsel %vm240, %v1536, 0
    %v1582 = vsel %vm240, %v1537, 0
    %v1585 = vsel %vm240, %v1538, 0
    %v1588 = vsel %vm240, %v1539, 0
    %v1591 = vsel %vm240, %v1540, 0
    %1593 = vmatprep.subr.mxu0 0.0
    %1594 = vmatpush1.msra.mxu0 0.0
    %1595 = vmatprep.subr.mxu0 0.0
    %1596 = vmatpush1.msra.mxu0 0.0
    %1597 = vmatprep.subr.mxu0 0.0
    %1598 = vmatpush1.msra.mxu0 0.0
    %1599 = vmatprep.subr.mxu0 0.0
    %1600 = vmatpush1.msra.mxu0 0.0
    %1601 = vmatprep.subr.mxu0 0.0
    %1602 = vmatpush1.msra.mxu0 0.0
    %1603 = vmatprep.subr.mxu0 0.0
    %1604 = vmatpush1.msra.mxu0 0.0
    %1605 = vmatprep.subr.mxu0 0.0
    %1606 = vmatpush1.msra.mxu0 0.0
    %1607 = vmatprep.subr.mxu0 0.0
    %1608 = vmatpush1.msra.mxu0 0.0
    %1609 = vmatprep.subr.mxu0 %v1556
    %1610 = vmatpush1.msra.mxu0 %v1555
    %1611 = vmatprep.subr.mxu0 %v1554
    %1612 = vmatpush1.msra.mxu0 %v1553
    %1613 = vmatprep.subr.mxu0 %v1552
    %1614 = vmatpush1.msra.mxu0 %v1551
    %1615 = vmatprep.subr.mxu0 %v1550
    %1616 = vmatpush1.msra.mxu0 %v1549
    %1617 = vmatprep.subr.mxu0 %v1548
    %1618 = vmatpush1.msra.mxu0 %v1547
    %1619 = vmatprep.subr.mxu0 %v1546
    %1620 = vmatpush1.msra.mxu0 %v1545
    %1621 = vmatprep.subr.mxu0 %v1544
    %1622 = vmatpush1.msra.mxu0 %v1543
    %1623 = vmatprep.subr.mxu0 %v1542
    %1624 = vmatpush1.msra.mxu0 %v1541
    %1625 = vmatprep.subr.mxu0 0.0
    %1626 = vmatpush2.msra.mxu0 0.0
    %1627 = vmatprep.subr.mxu0 0.0
    %1628 = vmatpush2.msra.mxu0 0.0
    %1629 = vmatprep.subr.mxu0 0.0
    %1630 = vmatpush2.msra.mxu0 0.0
    %1631 = vmatprep.subr.mxu0 0.0
    %1632 = vmatpush2.msra.mxu0 0.0
    %1633 = vmatprep.subr.mxu0 0.0
    %1634 = vmatpush2.msra.mxu0 0.0
    %1635 = vmatprep.subr.mxu0 0.0
    %1636 = vmatpush2.msra.mxu0 0.0
    %1637 = vmatprep.subr.mxu0 0.0
    %1638 = vmatpush2.msra.mxu0 0.0
    %1639 = vmatprep.subr.mxu0 0.0
    %1640 = vmatpush2.msra.mxu0 0.0
    %1641 = vmatprep.subr.mxu0 0.0
    %1642 = vmatpush2.msra.mxu0 0.0
    %1643 = vmatprep.subr.mxu0 0.0
    %1644 = vmatpush2.msra.mxu0 0.0
    %1645 = vmatprep.subr.mxu0 0.0
    %1646 = vmatpush2.msra.mxu0 0.0
    %1647 = vmatprep.subr.mxu0 0.0
    %1648 = vmatpush2.msra.mxu0 0.0
    %1649 = vmatprep.subr.mxu0 0.0
    %1650 = vmatpush2.msra.mxu0 0.0
    %1651 = vmatprep.subr.mxu0 0.0
    %1652 = vmatpush2.msra.mxu0 0.0
    %1653 = vmatprep.subr.mxu0 0.0
    %1654 = vmatpush2.msra.mxu0 0.0
    %1655 = vmatprep.subr.mxu0 0.0
    %1656 = vmatpush2.msra.mxu0 0.0
    %1657 = vmatprep.mubr.f32.mxu0 0.0
    %1658 = vmatmul.mubr.f32.gmra.mxu0 %v1570
    %v1659 = vpop.f32.mrf.mxu0
    %v1660 = vadd.f32 %v1562, %v1659
    %v1661 = vpop.f32.mrf.mxu0
    %v1662 = vadd.f32 %v1566, %v1661
    %1663 = vmatprep.mubr.f32.mxu0 0.0
    %1664 = vmatmul.mubr.f32.gmra.mxu0 %v1573
    %v1665 = vpop.f32.mrf.mxu0
    %v1666 = vadd.f32 %v1562, %v1665
    %v1667 = vpop.f32.mrf.mxu0
    %v1668 = vadd.f32 %v1566, %v1667
    %1669 = vmatprep.mubr.f32.mxu0 0.0
    %1670 = vmatmul.mubr.f32.gmra.mxu0 %v1576
    %v1671 = vpop.f32.mrf.mxu0
    %v1672 = vadd.f32 %v1562, %v1671
    %v1673 = vpop.f32.mrf.mxu0
    %v1674 = vadd.f32 %v1566, %v1673
    %1675 = vmatprep.mubr.f32.mxu0 0.0
    %1676 = vmatmul.mubr.f32.gmra.mxu0 %v1579
    %v1677 = vpop.f32.mrf.mxu0
    %v1678 = vadd.f32 %v1562, %v1677
    %v1679 = vpop.f32.mrf.mxu0
    %v1680 = vadd.f32 %v1566, %v1679
    %1681 = vmatprep.mubr.f32.mxu0 0.0
    %1682 = vmatmul.mubr.f32.gmra.mxu0 %v1582
    %v1683 = vpop.f32.mrf.mxu0
    %v1684 = vadd.f32 %v1562, %v1683
    %v1685 = vpop.f32.mrf.mxu0
    %v1686 = vadd.f32 %v1566, %v1685
    %1687 = vmatprep.mubr.f32.mxu0 0.0
    %1688 = vmatmul.mubr.f32.gmra.mxu0 %v1585
    %v1689 = vpop.f32.mrf.mxu0
    %v1690 = vadd.f32 %v1562, %v1689
    %v1691 = vpop.f32.mrf.mxu0
    %v1692 = vadd.f32 %v1566, %v1691
    %1693 = vmatprep.mubr.f32.mxu0 0.0
    %1694 = vmatmul.mubr.f32.gmra.mxu0 %v1588
    %v1695 = vpop.f32.mrf.mxu0
    %v1696 = vadd.f32 %v1562, %v1695
    %v1697 = vpop.f32.mrf.mxu0
    %v1698 = vadd.f32 %v1566, %v1697
    %1699 = vmatprep.mubr.f32.mxu0 0.0
    %1700 = vmatmul.mubr.f32.gmra.mxu0 %v1591
    %v1701 = vpop.f32.mrf.mxu0
    %v1702 = vadd.f32 %v1562, %v1701
    %v1703 = vpop.f32.mrf.mxu0
    %v1704 = vadd.f32 %v1566, %v1703
    %1705 = vdwg.mxu0
    %1706 = vst [vmem:[#allocation2] sm:$0xff] %v1660
    %1707 = vst.msk [vmem:[#allocation2 + $0x8] sm:$0xff] %vm240, %v1662
    %1708 = vst [vmem:[#allocation2 + $0x10] sm:$0xff] %v1666
    %1709 = vst.msk [vmem:[#allocation2 + $0x18] sm:$0xff] %vm240, %v1668
    %1710 = vst [vmem:[#allocation2 + $0x20] sm:$0xff] %v1672
    %1711 = vst.msk [vmem:[#allocation2 + $0x28] sm:$0xff] %vm240, %v1674
    %1712 = vst [vmem:[#allocation2 + $0x30] sm:$0xff] %v1678
    %1713 = vst.msk [vmem:[#allocation2 + $0x38] sm:$0xff] %vm240, %v1680
    %1714 = vst [vmem:[#allocation2 + $0x40] sm:$0xff] %v1684
    %1715 = vst.msk [vmem:[#allocation2 + $0x48] sm:$0xff] %vm240, %v1686
    %1716 = vst [vmem:[#allocation2 + $0x50] sm:$0xff] %v1690
    %1717 = vst.msk [vmem:[#allocation2 + $0x58] sm:$0xff] %vm240, %v1692
    %1718 = vst [vmem:[#allocation2 + $0x60] sm:$0xff] %v1696
    %1719 = vst.msk [vmem:[#allocation2 + $0x68] sm:$0xff] %vm240, %v1698
    %1720 = vst [vmem:[#allocation2 + $0x70] sm:$0xff] %v1702
    %1721 = vst.msk [vmem:[#allocation2 + $0x78] sm:$0xff] %vm240, %v1704
    %v1722 = vld [vmem:[#allocation8] sm:$0xff]
    %v1723 = vld [vmem:[#allocation8 + $0x8] sm:$0xff]
    %v1724 = vld [vmem:[#allocation8 + $0x10] sm:$0xff]
    %v1725 = vld [vmem:[#allocation8 + $0x18] sm:$0xff]
    %v1726 = vld [vmem:[#allocation8 + $0x20] sm:$0xff]
    %v1727 = vld [vmem:[#allocation8 + $0x28] sm:$0xff]
    %v1728 = vld [vmem:[#allocation8 + $0x30] sm:$0xff]
    %v1729 = vld [vmem:[#allocation8 + $0x38] sm:$0xff]
    %v1730 = vld [vmem:[#allocation8 + $0x40] sm:$0xff]
    %v1731 = vld [vmem:[#allocation8 + $0x48] sm:$0xff]
    %v1732 = vld [vmem:[#allocation8 + $0x50] sm:$0xff]
    %v1733 = vld [vmem:[#allocation8 + $0x58] sm:$0xff]
    %v1734 = vld [vmem:[#allocation8 + $0x60] sm:$0xff]
    %v1735 = vld [vmem:[#allocation8 + $0x68] sm:$0xff]
    %v1736 = vld [vmem:[#allocation8 + $0x70] sm:$0xff]
    %v1737 = vld [vmem:[#allocation8 + $0x78] sm:$0xff]
    %v1738 = vld [vmem:[%s8] sm:$0x3]
    %v1740 = vlaneseq
    %v1741 = vshrl.u32 %v1740, 7
    %v1742 = vsub.s32 0, %v1741
    %v1743 = vrot.slane %v1738, %v1742
    %v1744 = vlaneseq
    %v1745 = vshrl.u32 %v1744, 7
    %v1746 = vsub.s32 1, %v1745
    %v1747 = vrot.slane %v1738, %v1746
    %1750 = vmatprep.subr.mxu0 0.0
    %1751 = vmatpush1.msra.mxu0 0.0
    %1752 = vmatprep.subr.mxu0 0.0
    %1753 = vmatpush1.msra.mxu0 0.0
    %1754 = vmatprep.subr.mxu0 0.0
    %1755 = vmatpush1.msra.mxu0 0.0
    %1756 = vmatprep.subr.mxu0 0.0
    %1757 = vmatpush1.msra.mxu0 0.0
    %1758 = vmatprep.subr.mxu0 0.0
    %1759 = vmatpush1.msra.mxu0 0.0
    %1760 = vmatprep.subr.mxu0 0.0
    %1761 = vmatpush1.msra.mxu0 0.0
    %1762 = vmatprep.subr.mxu0 0.0
    %1763 = vmatpush1.msra.mxu0 0.0
    %1764 = vmatprep.subr.mxu0 0.0
    %1765 = vmatpush1.msra.mxu0 0.0
    %1766 = vmatprep.subr.mxu0 %v1737
    %1767 = vmatpush1.msra.mxu0 %v1736
    %1768 = vmatprep.subr.mxu0 %v1735
    %1769 = vmatpush1.msra.mxu0 %v1734
    %1770 = vmatprep.subr.mxu0 %v1733
    %1771 = vmatpush1.msra.mxu0 %v1732
    %1772 = vmatprep.subr.mxu0 %v1731
    %1773 = vmatpush1.msra.mxu0 %v1730
    %1774 = vmatprep.subr.mxu0 %v1729
    %1775 = vmatpush1.msra.mxu0 %v1728
    %1776 = vmatprep.subr.mxu0 %v1727
    %1777 = vmatpush1.msra.mxu0 %v1726
    %1778 = vmatprep.subr.mxu0 %v1725
    %1779 = vmatpush1.msra.mxu0 %v1724
    %1780 = vmatprep.subr.mxu0 %v1723
    %1781 = vmatpush1.msra.mxu0 %v1722
    %1782 = vmatprep.subr.mxu0 0.0
    %1783 = vmatpush2.msra.mxu0 0.0
    %1784 = vmatprep.subr.mxu0 0.0
    %1785 = vmatpush2.msra.mxu0 0.0
    %1786 = vmatprep.subr.mxu0 0.0
    %1787 = vmatpush2.msra.mxu0 0.0
    %1788 = vmatprep.subr.mxu0 0.0
    %1789 = vmatpush2.msra.mxu0 0.0
    %1790 = vmatprep.subr.mxu0 0.0
    %1791 = vmatpush2.msra.mxu0 0.0
    %1792 = vmatprep.subr.mxu0 0.0
    %1793 = vmatpush2.msra.mxu0 0.0
    %1794 = vmatprep.subr.mxu0 0.0
    %1795 = vmatpush2.msra.mxu0 0.0
    %1796 = vmatprep.subr.mxu0 0.0
    %1797 = vmatpush2.msra.mxu0 0.0
    %1798 = vmatprep.subr.mxu0 0.0
    %1799 = vmatpush2.msra.mxu0 0.0
    %1800 = vmatprep.subr.mxu0 0.0
    %1801 = vmatpush2.msra.mxu0 0.0
    %1802 = vmatprep.subr.mxu0 0.0
    %1803 = vmatpush2.msra.mxu0 0.0
    %1804 = vmatprep.subr.mxu0 0.0
    %1805 = vmatpush2.msra.mxu0 0.0
    %1806 = vmatprep.subr.mxu0 0.0
    %1807 = vmatpush2.msra.mxu0 0.0
    %1808 = vmatprep.subr.mxu0 0.0
    %1809 = vmatpush2.msra.mxu0 0.0
    %1810 = vmatprep.subr.mxu0 0.0
    %1811 = vmatpush2.msra.mxu0 0.0
    %1812 = vmatprep.subr.mxu0 0.0
    %1813 = vmatpush2.msra.mxu0 0.0
    %1814 = vmatprep.mubr.f32.mxu0 0.0
    %1815 = vmatmul.mubr.f32.gmra.mxu0 %v285
    %v1816 = vpop.f32.mrf.mxu0
    %v1817 = vadd.f32 %v1743, %v1816
    %v1818 = vpop.f32.mrf.mxu0
    %v1819 = vadd.f32 %v1747, %v1818
    %1820 = vdwg.mxu0
    %v1821 = vld [vmem:[%s360] sm:$0xff]
    %v1822 = vadd.f32 %v1821, %v1817
    %v1823 = vxor.u32 %v1822, 2147483648
    %v1824 = vmul.f32 %v1823, 1.442695
    %v1825 = vpow.pop %v1824
    %v1826 = vadd.f32 %v1825, 1.0
    %v1827 = vrcp.pop %v1826
    %v1828 = vmul.f32 1.0, %v1827
    %1830 = vrot.lane.b32.xlu0 %v1817, 64
    %v1831 = vpop.permute.xlu0 %1830
    %v1833 = vmul.f32 %v1828, %v1831
    %1835 = vrot.lane.b32.xlu0 %v1833, 64
    %v1836 = vpop.permute.xlu0 %1835
    %v1838 = vadd.f32 %v1821, %v1836
    %v1839 = vtanh.pop %v1838
    %v1840 = vsub.f32 1.0, %v1828
    %1842 = vrot.lane.b32.xlu0 %v1839, 96
    %v1843 = vpop.permute.xlu0 %1842
    %v1845 = vmul.f32 %v1840, %v1843
    %v1846 = vmul.f32 %v1828, 0.0
    %v1847 = vadd.f32 %v1845, %v1846
    %1849 = vrot.lane.b32.xlu0 %v1847, 96
    %v1850 = vpop.permute.xlu0 %1849
    %1852 = vst.msk [vmem:[%s9] sm:$0xff] %vm101, %v1850
    %v1853 = vld [vmem:[%s395] sm:$0xff]
    %v1854 = vld [vmem:[%s395 + $0x8] sm:$0xff]
    %v1855 = vadd.f32 %v1853, %v1817
    %v1856 = vxor.u32 %v1855, 2147483648
    %v1857 = vmul.f32 %v1856, 1.442695
    %v1858 = vpow.pop %v1857
    %v1859 = vadd.f32 %v1858, 1.0
    %v1860 = vrcp.pop %v1859
    %v1861 = vmul.f32 1.0, %v1860
    %v1862 = vadd.f32 %v1854, %v1819
    %v1863 = vxor.u32 %v1862, 2147483648
    %v1864 = vmul.f32 %v1863, 1.442695
    %v1865 = vpow.pop %v1864
    %v1866 = vadd.f32 %v1865, 1.0
    %v1867 = vrcp.pop %v1866
    %v1868 = vmul.f32 1.0, %v1867
    %1870 = vrot.lane.b32.xlu0 %v1819, 64
    %v1871 = vpop.permute.xlu0 %1870
    %v1873 = vmul.f32 %v1861, %v1871
    %1875 = vrot.lane.b32.xlu0 %v1873, 64
    %v1876 = vpop.permute.xlu0 %1875
    %v1878 = vadd.f32 %v1854, %v1876
    %v1879 = vtanh.pop %v1878
    %v1880 = vsub.f32 1.0, %v1868
    %1882 = vrot.lane.b32.xlu0 %v1879, 96
    %v1883 = vpop.permute.xlu0 %1882
    %v1885 = vmul.f32 %v1880, %v1883
    %v1886 = vmul.f32 %v1868, 0.0
    %v1887 = vadd.f32 %v1885, %v1886
    %1889 = vrot.lane.b32.xlu0 %v1887, 32
    %v1890 = vpop.permute.xlu0 %1889
    %s1892 = scalar_lea.vmem %s9, 56
    %1893 = vst.msk [vmem:[%s1892] sm:$0xff] %vm436, %v1890
    %v1894 = vsel %vm101, %v1850, %v1890
    %v1896 = vsel %vm240, %v1894, 0
    %1898 = vmatprep.subr.mxu0 0.0
    %1899 = vmatpush1.msra.mxu0 0.0
    %1900 = vmatprep.subr.mxu0 0.0
    %1901 = vmatpush1.msra.mxu0 0.0
    %1902 = vmatprep.subr.mxu0 0.0
    %1903 = vmatpush1.msra.mxu0 0.0
    %1904 = vmatprep.subr.mxu0 0.0
    %1905 = vmatpush1.msra.mxu0 0.0
    %1906 = vmatprep.subr.mxu0 0.0
    %1907 = vmatpush1.msra.mxu0 0.0
    %1908 = vmatprep.subr.mxu0 0.0
    %1909 = vmatpush1.msra.mxu0 0.0
    %1910 = vmatprep.subr.mxu0 0.0
    %1911 = vmatpush1.msra.mxu0 0.0
    %1912 = vmatprep.subr.mxu0 0.0
    %1913 = vmatpush1.msra.mxu0 0.0
    %1914 = vmatprep.subr.mxu0 %v1737
    %1915 = vmatpush1.msra.mxu0 %v1736
    %1916 = vmatprep.subr.mxu0 %v1735
    %1917 = vmatpush1.msra.mxu0 %v1734
    %1918 = vmatprep.subr.mxu0 %v1733
    %1919 = vmatpush1.msra.mxu0 %v1732
    %1920 = vmatprep.subr.mxu0 %v1731
    %1921 = vmatpush1.msra.mxu0 %v1730
    %1922 = vmatprep.subr.mxu0 %v1729
    %1923 = vmatpush1.msra.mxu0 %v1728
    %1924 = vmatprep.subr.mxu0 %v1727
    %1925 = vmatpush1.msra.mxu0 %v1726
    %1926 = vmatprep.subr.mxu0 %v1725
    %1927 = vmatpush1.msra.mxu0 %v1724
    %1928 = vmatprep.subr.mxu0 %v1723
    %1929 = vmatpush1.msra.mxu0 %v1722
    %1930 = vmatprep.subr.mxu0 0.0
    %1931 = vmatpush2.msra.mxu0 0.0
    %1932 = vmatprep.subr.mxu0 0.0
    %1933 = vmatpush2.msra.mxu0 0.0
    %1934 = vmatprep.subr.mxu0 0.0
    %1935 = vmatpush2.msra.mxu0 0.0
    %1936 = vmatprep.subr.mxu0 0.0
    %1937 = vmatpush2.msra.mxu0 0.0
    %1938 = vmatprep.subr.mxu0 0.0
    %1939 = vmatpush2.msra.mxu0 0.0
    %1940 = vmatprep.subr.mxu0 0.0
    %1941 = vmatpush2.msra.mxu0 0.0
    %1942 = vmatprep.subr.mxu0 0.0
    %1943 = vmatpush2.msra.mxu0 0.0
    %1944 = vmatprep.subr.mxu0 0.0
    %1945 = vmatpush2.msra.mxu0 0.0
    %1946 = vmatprep.subr.mxu0 0.0
    %1947 = vmatpush2.msra.mxu0 0.0
    %1948 = vmatprep.subr.mxu0 0.0
    %1949 = vmatpush2.msra.mxu0 0.0
    %1950 = vmatprep.subr.mxu0 0.0
    %1951 = vmatpush2.msra.mxu0 0.0
    %1952 = vmatprep.subr.mxu0 0.0
    %1953 = vmatpush2.msra.mxu0 0.0
    %1954 = vmatprep.subr.mxu0 0.0
    %1955 = vmatpush2.msra.mxu0 0.0
    %1956 = vmatprep.subr.mxu0 0.0
    %1957 = vmatpush2.msra.mxu0 0.0
    %1958 = vmatprep.subr.mxu0 0.0
    %1959 = vmatpush2.msra.mxu0 0.0
    %1960 = vmatprep.subr.mxu0 0.0
    %1961 = vmatpush2.msra.mxu0 0.0
    %1962 = vmatprep.mubr.f32.mxu0 0.0
    %1963 = vmatmul.mubr.f32.gmra.mxu0 %v1896
    %v1964 = vpop.f32.mrf.mxu0
    %v1965 = vadd.f32 %v1743, %v1964
    %v1966 = vpop.f32.mrf.mxu0
    %v1967 = vadd.f32 %v1747, %v1966
    %1968 = vdwg.mxu0
    %v1969 = vld [vmem:[%s515] sm:$0xff]
    %v1970 = vadd.f32 %v1969, %v1965
    %v1971 = vxor.u32 %v1970, 2147483648
    %v1972 = vmul.f32 %v1971, 1.442695
    %v1973 = vpow.pop %v1972
    %v1974 = vadd.f32 %v1973, 1.0
    %v1975 = vrcp.pop %v1974
    %v1976 = vmul.f32 1.0, %v1975
    %1978 = vrot.lane.b32.xlu0 %v1965, 64
    %v1979 = vpop.permute.xlu0 %1978
    %v1981 = vmul.f32 %v1976, %v1979
    %1983 = vrot.lane.b32.xlu0 %v1981, 64
    %v1984 = vpop.permute.xlu0 %1983
    %v1986 = vadd.f32 %v1969, %v1984
    %v1987 = vtanh.pop %v1986
    %v1988 = vsub.f32 1.0, %v1976
    %1990 = vrot.lane.b32.xlu0 %v1987, 96
    %v1991 = vpop.permute.xlu0 %1990
    %v1993 = vmul.f32 %v1988, %v1991
    %1994 = vrot.lane.b32.xlu0 %v1894, 32
    %v1995 = vpop.permute.xlu0 %1994
    %v1997 = vmul.f32 %v1976, %v1995
    %v1998 = vadd.f32 %v1993, %v1997
    %2000 = vrot.lane.b32.xlu0 %v1998, 96
    %v2001 = vpop.permute.xlu0 %2000
    %s2003 = scalar_lea.vmem %s9, 8
    %2004 = vst.msk [vmem:[%s2003] sm:$0xff] %vm101, %v2001
    %v2005 = vld [vmem:[%s554] sm:$0xff]
    %v2006 = vld [vmem:[%s554 + $0x8] sm:$0xff]
    %v2007 = vadd.f32 %v2005, %v1965
    %v2008 = vxor.u32 %v2007, 2147483648
    %v2009 = vmul.f32 %v2008, 1.442695
    %v2010 = vpow.pop %v2009
    %v2011 = vadd.f32 %v2010, 1.0
    %v2012 = vrcp.pop %v2011
    %v2013 = vmul.f32 1.0, %v2012
    %v2014 = vadd.f32 %v2006, %v1967
    %v2015 = vxor.u32 %v2014, 2147483648
    %v2016 = vmul.f32 %v2015, 1.442695
    %v2017 = vpow.pop %v2016
    %v2018 = vadd.f32 %v2017, 1.0
    %v2019 = vrcp.pop %v2018
    %v2020 = vmul.f32 1.0, %v2019
    %2022 = vrot.lane.b32.xlu0 %v1967, 64
    %v2023 = vpop.permute.xlu0 %2022
    %v2025 = vmul.f32 %v2013, %v2023
    %2027 = vrot.lane.b32.xlu0 %v2025, 64
    %v2028 = vpop.permute.xlu0 %2027
    %v2030 = vadd.f32 %v2006, %v2028
    %v2031 = vtanh.pop %v2030
    %v2032 = vsub.f32 1.0, %v2020
    %2034 = vrot.lane.b32.xlu0 %v2031, 96
    %v2035 = vpop.permute.xlu0 %2034
    %v2037 = vmul.f32 %v2032, %v2035
    %2038 = vrot.lane.b32.xlu0 %v1894, 96
    %v2039 = vpop.permute.xlu0 %2038
    %v2041 = vmul.f32 %v2020, %v2039
    %v2042 = vadd.f32 %v2037, %v2041
    %2044 = vrot.lane.b32.xlu0 %v2042, 32
    %v2045 = vpop.permute.xlu0 %2044
    %s2047 = scalar_lea.vmem %s9, 48
    %2048 = vst.msk [vmem:[%s2047] sm:$0xff] %vm436, %v2045
    %v2049 = vsel %vm101, %v2001, %v2045
    %v2051 = vsel %vm240, %v2049, 0
    %2053 = vmatprep.subr.mxu0 0.0
    %2054 = vmatpush1.msra.mxu0 0.0
    %2055 = vmatprep.subr.mxu0 0.0
    %2056 = vmatpush1.msra.mxu0 0.0
    %2057 = vmatprep.subr.mxu0 0.0
    %2058 = vmatpush1.msra.mxu0 0.0
    %2059 = vmatprep.subr.mxu0 0.0
    %2060 = vmatpush1.msra.mxu0 0.0
    %2061 = vmatprep.subr.mxu0 0.0
    %2062 = vmatpush1.msra.mxu0 0.0
    %2063 = vmatprep.subr.mxu0 0.0
    %2064 = vmatpush1.msra.mxu0 0.0
    %2065 = vmatprep.subr.mxu0 0.0
    %2066 = vmatpush1.msra.mxu0 0.0
    %2067 = vmatprep.subr.mxu0 0.0
    %2068 = vmatpush1.msra.mxu0 0.0
    %2069 = vmatprep.subr.mxu0 %v1737
    %2070 = vmatpush1.msra.mxu0 %v1736
    %2071 = vmatprep.subr.mxu0 %v1735
    %2072 = vmatpush1.msra.mxu0 %v1734
    %2073 = vmatprep.subr.mxu0 %v1733
    %2074 = vmatpush1.msra.mxu0 %v1732
    %2075 = vmatprep.subr.mxu0 %v1731
    %2076 = vmatpush1.msra.mxu0 %v1730
    %2077 = vmatprep.subr.mxu0 %v1729
    %2078 = vmatpush1.msra.mxu0 %v1728
    %2079 = vmatprep.subr.mxu0 %v1727
    %2080 = vmatpush1.msra.mxu0 %v1726
    %2081 = vmatprep.subr.mxu0 %v1725
    %2082 = vmatpush1.msra.mxu0 %v1724
    %2083 = vmatprep.subr.mxu0 %v1723
    %2084 = vmatpush1.msra.mxu0 %v1722
    %2085 = vmatprep.subr.mxu0 0.0
    %2086 = vmatpush2.msra.mxu0 0.0
    %2087 = vmatprep.subr.mxu0 0.0
    %2088 = vmatpush2.msra.mxu0 0.0
    %2089 = vmatprep.subr.mxu0 0.0
    %2090 = vmatpush2.msra.mxu0 0.0
    %2091 = vmatprep.subr.mxu0 0.0
    %2092 = vmatpush2.msra.mxu0 0.0
    %2093 = vmatprep.subr.mxu0 0.0
    %2094 = vmatpush2.msra.mxu0 0.0
    %2095 = vmatprep.subr.mxu0 0.0
    %2096 = vmatpush2.msra.mxu0 0.0
    %2097 = vmatprep.subr.mxu0 0.0
    %2098 = vmatpush2.msra.mxu0 0.0
    %2099 = vmatprep.subr.mxu0 0.0
    %2100 = vmatpush2.msra.mxu0 0.0
    %2101 = vmatprep.subr.mxu0 0.0
    %2102 = vmatpush2.msra.mxu0 0.0
    %2103 = vmatprep.subr.mxu0 0.0
    %2104 = vmatpush2.msra.mxu0 0.0
    %2105 = vmatprep.subr.mxu0 0.0
    %2106 = vmatpush2.msra.mxu0 0.0
    %2107 = vmatprep.subr.mxu0 0.0
    %2108 = vmatpush2.msra.mxu0 0.0
    %2109 = vmatprep.subr.mxu0 0.0
    %2110 = vmatpush2.msra.mxu0 0.0
    %2111 = vmatprep.subr.mxu0 0.0
    %2112 = vmatpush2.msra.mxu0 0.0
    %2113 = vmatprep.subr.mxu0 0.0
    %2114 = vmatpush2.msra.mxu0 0.0
    %2115 = vmatprep.subr.mxu0 0.0
    %2116 = vmatpush2.msra.mxu0 0.0
    %2117 = vmatprep.mubr.f32.mxu0 0.0
    %2118 = vmatmul.mubr.f32.gmra.mxu0 %v2051
    %v2119 = vpop.f32.mrf.mxu0
    %v2120 = vadd.f32 %v1743, %v2119
    %v2121 = vpop.f32.mrf.mxu0
    %v2122 = vadd.f32 %v1747, %v2121
    %2123 = vdwg.mxu0
    %v2124 = vld [vmem:[%s676] sm:$0xff]
    %v2125 = vadd.f32 %v2124, %v2120
    %v2126 = vxor.u32 %v2125, 2147483648
    %v2127 = vmul.f32 %v2126, 1.442695
    %v2128 = vpow.pop %v2127
    %v2129 = vadd.f32 %v2128, 1.0
    %v2130 = vrcp.pop %v2129
    %v2131 = vmul.f32 1.0, %v2130
    %2133 = vrot.lane.b32.xlu0 %v2120, 64
    %v2134 = vpop.permute.xlu0 %2133
    %v2136 = vmul.f32 %v2131, %v2134
    %2138 = vrot.lane.b32.xlu0 %v2136, 64
    %v2139 = vpop.permute.xlu0 %2138
    %v2141 = vadd.f32 %v2124, %v2139
    %v2142 = vtanh.pop %v2141
    %v2143 = vsub.f32 1.0, %v2131
    %2145 = vrot.lane.b32.xlu0 %v2142, 96
    %v2146 = vpop.permute.xlu0 %2145
    %v2148 = vmul.f32 %v2143, %v2146
    %2149 = vrot.lane.b32.xlu0 %v2049, 32
    %v2150 = vpop.permute.xlu0 %2149
    %v2152 = vmul.f32 %v2131, %v2150
    %v2153 = vadd.f32 %v2148, %v2152
    %2155 = vrot.lane.b32.xlu0 %v2153, 96
    %v2156 = vpop.permute.xlu0 %2155
    %s2158 = scalar_lea.vmem %s9, 16
    %2159 = vst.msk [vmem:[%s2158] sm:$0xff] %vm101, %v2156
    %v2160 = vld [vmem:[%s715] sm:$0xff]
    %v2161 = vld [vmem:[%s715 + $0x8] sm:$0xff]
    %v2162 = vadd.f32 %v2160, %v2120
    %v2163 = vxor.u32 %v2162, 2147483648
    %v2164 = vmul.f32 %v2163, 1.442695
    %v2165 = vpow.pop %v2164
    %v2166 = vadd.f32 %v2165, 1.0
    %v2167 = vrcp.pop %v2166
    %v2168 = vmul.f32 1.0, %v2167
    %v2169 = vadd.f32 %v2161, %v2122
    %v2170 = vxor.u32 %v2169, 2147483648
    %v2171 = vmul.f32 %v2170, 1.442695
    %v2172 = vpow.pop %v2171
    %v2173 = vadd.f32 %v2172, 1.0
    %v2174 = vrcp.pop %v2173
    %v2175 = vmul.f32 1.0, %v2174
    %2177 = vrot.lane.b32.xlu0 %v2122, 64
    %v2178 = vpop.permute.xlu0 %2177
    %v2180 = vmul.f32 %v2168, %v2178
    %2182 = vrot.lane.b32.xlu0 %v2180, 64
    %v2183 = vpop.permute.xlu0 %2182
    %v2185 = vadd.f32 %v2161, %v2183
    %v2186 = vtanh.pop %v2185
    %v2187 = vsub.f32 1.0, %v2175
    %2189 = vrot.lane.b32.xlu0 %v2186, 96
    %v2190 = vpop.permute.xlu0 %2189
    %v2192 = vmul.f32 %v2187, %v2190
    %2193 = vrot.lane.b32.xlu0 %v2049, 96
    %v2194 = vpop.permute.xlu0 %2193
    %v2196 = vmul.f32 %v2175, %v2194
    %v2197 = vadd.f32 %v2192, %v2196
    %2199 = vrot.lane.b32.xlu0 %v2197, 32
    %v2200 = vpop.permute.xlu0 %2199
    %s2202 = scalar_lea.vmem %s9, 40
    %2203 = vst.msk [vmem:[%s2202] sm:$0xff] %vm436, %v2200
    %v2204 = vsel %vm101, %v2156, %v2200
    %v2206 = vsel %vm240, %v2204, 0
    %2208 = vmatprep.subr.mxu0 0.0
    %2209 = vmatpush1.msra.mxu0 0.0
    %2210 = vmatprep.subr.mxu0 0.0
    %2211 = vmatpush1.msra.mxu0 0.0
    %2212 = vmatprep.subr.mxu0 0.0
    %2213 = vmatpush1.msra.mxu0 0.0
    %2214 = vmatprep.subr.mxu0 0.0
    %2215 = vmatpush1.msra.mxu0 0.0
    %2216 = vmatprep.subr.mxu0 0.0
    %2217 = vmatpush1.msra.mxu0 0.0
    %2218 = vmatprep.subr.mxu0 0.0
    %2219 = vmatpush1.msra.mxu0 0.0
    %2220 = vmatprep.subr.mxu0 0.0
    %2221 = vmatpush1.msra.mxu0 0.0
    %2222 = vmatprep.subr.mxu0 0.0
    %2223 = vmatpush1.msra.mxu0 0.0
    %2224 = vmatprep.subr.mxu0 %v1737
    %2225 = vmatpush1.msra.mxu0 %v1736
    %2226 = vmatprep.subr.mxu0 %v1735
    %2227 = vmatpush1.msra.mxu0 %v1734
    %2228 = vmatprep.subr.mxu0 %v1733
    %2229 = vmatpush1.msra.mxu0 %v1732
    %2230 = vmatprep.subr.mxu0 %v1731
    %2231 = vmatpush1.msra.mxu0 %v1730
    %2232 = vmatprep.subr.mxu0 %v1729
    %2233 = vmatpush1.msra.mxu0 %v1728
    %2234 = vmatprep.subr.mxu0 %v1727
    %2235 = vmatpush1.msra.mxu0 %v1726
    %2236 = vmatprep.subr.mxu0 %v1725
    %2237 = vmatpush1.msra.mxu0 %v1724
    %2238 = vmatprep.subr.mxu0 %v1723
    %2239 = vmatpush1.msra.mxu0 %v1722
    %2240 = vmatprep.subr.mxu0 0.0
    %2241 = vmatpush2.msra.mxu0 0.0
    %2242 = vmatprep.subr.mxu0 0.0
    %2243 = vmatpush2.msra.mxu0 0.0
    %2244 = vmatprep.subr.mxu0 0.0
    %2245 = vmatpush2.msra.mxu0 0.0
    %2246 = vmatprep.subr.mxu0 0.0
    %2247 = vmatpush2.msra.mxu0 0.0
    %2248 = vmatprep.subr.mxu0 0.0
    %2249 = vmatpush2.msra.mxu0 0.0
    %2250 = vmatprep.subr.mxu0 0.0
    %2251 = vmatpush2.msra.mxu0 0.0
    %2252 = vmatprep.subr.mxu0 0.0
    %2253 = vmatpush2.msra.mxu0 0.0
    %2254 = vmatprep.subr.mxu0 0.0
    %2255 = vmatpush2.msra.mxu0 0.0
    %2256 = vmatprep.subr.mxu0 0.0
    %2257 = vmatpush2.msra.mxu0 0.0
    %2258 = vmatprep.subr.mxu0 0.0
    %2259 = vmatpush2.msra.mxu0 0.0
    %2260 = vmatprep.subr.mxu0 0.0
    %2261 = vmatpush2.msra.mxu0 0.0
    %2262 = vmatprep.subr.mxu0 0.0
    %2263 = vmatpush2.msra.mxu0 0.0
    %2264 = vmatprep.subr.mxu0 0.0
    %2265 = vmatpush2.msra.mxu0 0.0
    %2266 = vmatprep.subr.mxu0 0.0
    %2267 = vmatpush2.msra.mxu0 0.0
    %2268 = vmatprep.subr.mxu0 0.0
    %2269 = vmatpush2.msra.mxu0 0.0
    %2270 = vmatprep.subr.mxu0 0.0
    %2271 = vmatpush2.msra.mxu0 0.0
    %2272 = vmatprep.mubr.f32.mxu0 0.0
    %2273 = vmatmul.mubr.f32.gmra.mxu0 %v2206
    %v2274 = vpop.f32.mrf.mxu0
    %v2275 = vadd.f32 %v1743, %v2274
    %v2276 = vpop.f32.mrf.mxu0
    %v2277 = vadd.f32 %v1747, %v2276
    %2278 = vdwg.mxu0
    %v2279 = vld [vmem:[%s837] sm:$0xff]
    %v2280 = vadd.f32 %v2279, %v2275
    %v2281 = vxor.u32 %v2280, 2147483648
    %v2282 = vmul.f32 %v2281, 1.442695
    %v2283 = vpow.pop %v2282
    %v2284 = vadd.f32 %v2283, 1.0
    %v2285 = vrcp.pop %v2284
    %v2286 = vmul.f32 1.0, %v2285
    %2288 = vrot.lane.b32.xlu0 %v2275, 64
    %v2289 = vpop.permute.xlu0 %2288
    %v2291 = vmul.f32 %v2286, %v2289
    %2293 = vrot.lane.b32.xlu0 %v2291, 64
    %v2294 = vpop.permute.xlu0 %2293
    %v2296 = vadd.f32 %v2279, %v2294
    %v2297 = vtanh.pop %v2296
    %v2298 = vsub.f32 1.0, %v2286
    %2300 = vrot.lane.b32.xlu0 %v2297, 96
    %v2301 = vpop.permute.xlu0 %2300
    %v2303 = vmul.f32 %v2298, %v2301
    %2304 = vrot.lane.b32.xlu0 %v2204, 32
    %v2305 = vpop.permute.xlu0 %2304
    %v2307 = vmul.f32 %v2286, %v2305
    %v2308 = vadd.f32 %v2303, %v2307
    %2310 = vrot.lane.b32.xlu0 %v2308, 96
    %v2311 = vpop.permute.xlu0 %2310
    %s2313 = scalar_lea.vmem %s9, 24
    %2314 = vst.msk [vmem:[%s2313] sm:$0xff] %vm101, %v2311
    %v2315 = vld [vmem:[%s876] sm:$0xff]
    %v2316 = vld [vmem:[%s876 + $0x8] sm:$0xff]
    %v2317 = vadd.f32 %v2315, %v2275
    %v2318 = vxor.u32 %v2317, 2147483648
    %v2319 = vmul.f32 %v2318, 1.442695
    %v2320 = vpow.pop %v2319
    %v2321 = vadd.f32 %v2320, 1.0
    %v2322 = vrcp.pop %v2321
    %v2323 = vmul.f32 1.0, %v2322
    %v2324 = vadd.f32 %v2316, %v2277
    %v2325 = vxor.u32 %v2324, 2147483648
    %v2326 = vmul.f32 %v2325, 1.442695
    %v2327 = vpow.pop %v2326
    %v2328 = vadd.f32 %v2327, 1.0
    %v2329 = vrcp.pop %v2328
    %v2330 = vmul.f32 1.0, %v2329
    %2332 = vrot.lane.b32.xlu0 %v2277, 64
    %v2333 = vpop.permute.xlu0 %2332
    %v2335 = vmul.f32 %v2323, %v2333
    %2337 = vrot.lane.b32.xlu0 %v2335, 64
    %v2338 = vpop.permute.xlu0 %2337
    %v2340 = vadd.f32 %v2316, %v2338
    %v2341 = vtanh.pop %v2340
    %v2342 = vsub.f32 1.0, %v2330
    %2344 = vrot.lane.b32.xlu0 %v2341, 96
    %v2345 = vpop.permute.xlu0 %2344
    %v2347 = vmul.f32 %v2342, %v2345
    %2348 = vrot.lane.b32.xlu0 %v2204, 96
    %v2349 = vpop.permute.xlu0 %2348
    %v2351 = vmul.f32 %v2330, %v2349
    %v2352 = vadd.f32 %v2347, %v2351
    %2354 = vrot.lane.b32.xlu0 %v2352, 32
    %v2355 = vpop.permute.xlu0 %2354
    %s2357 = scalar_lea.vmem %s9, 32
    %2358 = vst.msk [vmem:[%s2357] sm:$0xff] %vm436, %v2355
    %v2359 = vsel %vm101, %v2311, %v2355
    %v2361 = vsel %vm240, %v2359, 0
    %2363 = vmatprep.subr.mxu0 0.0
    %2364 = vmatpush1.msra.mxu0 0.0
    %2365 = vmatprep.subr.mxu0 0.0
    %2366 = vmatpush1.msra.mxu0 0.0
    %2367 = vmatprep.subr.mxu0 0.0
    %2368 = vmatpush1.msra.mxu0 0.0
    %2369 = vmatprep.subr.mxu0 0.0
    %2370 = vmatpush1.msra.mxu0 0.0
    %2371 = vmatprep.subr.mxu0 0.0
    %2372 = vmatpush1.msra.mxu0 0.0
    %2373 = vmatprep.subr.mxu0 0.0
    %2374 = vmatpush1.msra.mxu0 0.0
    %2375 = vmatprep.subr.mxu0 0.0
    %2376 = vmatpush1.msra.mxu0 0.0
    %2377 = vmatprep.subr.mxu0 0.0
    %2378 = vmatpush1.msra.mxu0 0.0
    %2379 = vmatprep.subr.mxu0 %v1737
    %2380 = vmatpush1.msra.mxu0 %v1736
    %2381 = vmatprep.subr.mxu0 %v1735
    %2382 = vmatpush1.msra.mxu0 %v1734
    %2383 = vmatprep.subr.mxu0 %v1733
    %2384 = vmatpush1.msra.mxu0 %v1732
    %2385 = vmatprep.subr.mxu0 %v1731
    %2386 = vmatpush1.msra.mxu0 %v1730
    %2387 = vmatprep.subr.mxu0 %v1729
    %2388 = vmatpush1.msra.mxu0 %v1728
    %2389 = vmatprep.subr.mxu0 %v1727
    %2390 = vmatpush1.msra.mxu0 %v1726
    %2391 = vmatprep.subr.mxu0 %v1725
    %2392 = vmatpush1.msra.mxu0 %v1724
    %2393 = vmatprep.subr.mxu0 %v1723
    %2394 = vmatpush1.msra.mxu0 %v1722
    %2395 = vmatprep.subr.mxu0 0.0
    %2396 = vmatpush2.msra.mxu0 0.0
    %2397 = vmatprep.subr.mxu0 0.0
    %2398 = vmatpush2.msra.mxu0 0.0
    %2399 = vmatprep.subr.mxu0 0.0
    %2400 = vmatpush2.msra.mxu0 0.0
    %2401 = vmatprep.subr.mxu0 0.0
    %2402 = vmatpush2.msra.mxu0 0.0
    %2403 = vmatprep.subr.mxu0 0.0
    %2404 = vmatpush2.msra.mxu0 0.0
    %2405 = vmatprep.subr.mxu0 0.0
    %2406 = vmatpush2.msra.mxu0 0.0
    %2407 = vmatprep.subr.mxu0 0.0
    %2408 = vmatpush2.msra.mxu0 0.0
    %2409 = vmatprep.subr.mxu0 0.0
    %2410 = vmatpush2.msra.mxu0 0.0
    %2411 = vmatprep.subr.mxu0 0.0
    %2412 = vmatpush2.msra.mxu0 0.0
    %2413 = vmatprep.subr.mxu0 0.0
    %2414 = vmatpush2.msra.mxu0 0.0
    %2415 = vmatprep.subr.mxu0 0.0
    %2416 = vmatpush2.msra.mxu0 0.0
    %2417 = vmatprep.subr.mxu0 0.0
    %2418 = vmatpush2.msra.mxu0 0.0
    %2419 = vmatprep.subr.mxu0 0.0
    %2420 = vmatpush2.msra.mxu0 0.0
    %2421 = vmatprep.subr.mxu0 0.0
    %2422 = vmatpush2.msra.mxu0 0.0
    %2423 = vmatprep.subr.mxu0 0.0
    %2424 = vmatpush2.msra.mxu0 0.0
    %2425 = vmatprep.subr.mxu0 0.0
    %2426 = vmatpush2.msra.mxu0 0.0
    %2427 = vmatprep.mubr.f32.mxu0 0.0
    %2428 = vmatmul.mubr.f32.gmra.mxu0 %v2361
    %v2429 = vpop.f32.mrf.mxu0
    %v2430 = vadd.f32 %v1743, %v2429
    %v2431 = vpop.f32.mrf.mxu0
    %v2432 = vadd.f32 %v1747, %v2431
    %2433 = vdwg.mxu0
    %v2434 = vld [vmem:[%s876] sm:$0xff]
    %v2435 = vadd.f32 %v2434, %v2430
    %v2436 = vxor.u32 %v2435, 2147483648
    %v2437 = vmul.f32 %v2436, 1.442695
    %v2438 = vpow.pop %v2437
    %v2439 = vadd.f32 %v2438, 1.0
    %v2440 = vrcp.pop %v2439
    %v2441 = vmul.f32 1.0, %v2440
    %2443 = vrot.lane.b32.xlu0 %v2430, 64
    %v2444 = vpop.permute.xlu0 %2443
    %v2446 = vmul.f32 %v2441, %v2444
    %2448 = vrot.lane.b32.xlu0 %v2446, 64
    %v2449 = vpop.permute.xlu0 %2448
    %v2451 = vadd.f32 %v2434, %v2449
    %v2452 = vtanh.pop %v2451
    %v2453 = vsub.f32 1.0, %v2441
    %2455 = vrot.lane.b32.xlu0 %v2452, 96
    %v2456 = vpop.permute.xlu0 %2455
    %v2458 = vmul.f32 %v2453, %v2456
    %2459 = vrot.lane.b32.xlu0 %v2359, 32
    %v2460 = vpop.permute.xlu0 %2459
    %v2462 = vmul.f32 %v2441, %v2460
    %v2463 = vadd.f32 %v2458, %v2462
    %2465 = vrot.lane.b32.xlu0 %v2463, 96
    %v2466 = vpop.permute.xlu0 %2465
    %2468 = vst.msk [vmem:[%s2357] sm:$0xff] %vm101, %v2466
    %v2469 = vld [vmem:[%s837] sm:$0xff]
    %v2470 = vld [vmem:[%s837 + $0x8] sm:$0xff]
    %v2471 = vadd.f32 %v2469, %v2430
    %v2472 = vxor.u32 %v2471, 2147483648
    %v2473 = vmul.f32 %v2472, 1.442695
    %v2474 = vpow.pop %v2473
    %v2475 = vadd.f32 %v2474, 1.0
    %v2476 = vrcp.pop %v2475
    %v2477 = vmul.f32 1.0, %v2476
    %v2478 = vadd.f32 %v2470, %v2432
    %v2479 = vxor.u32 %v2478, 2147483648
    %v2480 = vmul.f32 %v2479, 1.442695
    %v2481 = vpow.pop %v2480
    %v2482 = vadd.f32 %v2481, 1.0
    %v2483 = vrcp.pop %v2482
    %v2484 = vmul.f32 1.0, %v2483
    %2486 = vrot.lane.b32.xlu0 %v2432, 64
    %v2487 = vpop.permute.xlu0 %2486
    %v2489 = vmul.f32 %v2477, %v2487
    %2491 = vrot.lane.b32.xlu0 %v2489, 64
    %v2492 = vpop.permute.xlu0 %2491
    %v2494 = vadd.f32 %v2470, %v2492
    %v2495 = vtanh.pop %v2494
    %v2496 = vsub.f32 1.0, %v2484
    %2498 = vrot.lane.b32.xlu0 %v2495, 96
    %v2499 = vpop.permute.xlu0 %2498
    %v2501 = vmul.f32 %v2496, %v2499
    %2502 = vrot.lane.b32.xlu0 %v2359, 96
    %v2503 = vpop.permute.xlu0 %2502
    %v2505 = vmul.f32 %v2484, %v2503
    %v2506 = vadd.f32 %v2501, %v2505
    %2508 = vrot.lane.b32.xlu0 %v2506, 32
    %v2509 = vpop.permute.xlu0 %2508
    %2511 = vst.msk [vmem:[%s2313] sm:$0xff] %vm436, %v2509
    %v2512 = vsel %vm101, %v2466, %v2509
    %v2514 = vsel %vm240, %v2512, 0
    %2516 = vmatprep.subr.mxu0 0.0
    %2517 = vmatpush1.msra.mxu0 0.0
    %2518 = vmatprep.subr.mxu0 0.0
    %2519 = vmatpush1.msra.mxu0 0.0
    %2520 = vmatprep.subr.mxu0 0.0
    %2521 = vmatpush1.msra.mxu0 0.0
    %2522 = vmatprep.subr.mxu0 0.0
    %2523 = vmatpush1.msra.mxu0 0.0
    %2524 = vmatprep.subr.mxu0 0.0
    %2525 = vmatpush1.msra.mxu0 0.0
    %2526 = vmatprep.subr.mxu0 0.0
    %2527 = vmatpush1.msra.mxu0 0.0
    %2528 = vmatprep.subr.mxu0 0.0
    %2529 = vmatpush1.msra.mxu0 0.0
    %2530 = vmatprep.subr.mxu0 0.0
    %2531 = vmatpush1.msra.mxu0 0.0
    %2532 = vmatprep.subr.mxu0 %v1737
    %2533 = vmatpush1.msra.mxu0 %v1736
    %2534 = vmatprep.subr.mxu0 %v1735
    %2535 = vmatpush1.msra.mxu0 %v1734
    %2536 = vmatprep.subr.mxu0 %v1733
    %2537 = vmatpush1.msra.mxu0 %v1732
    %2538 = vmatprep.subr.mxu0 %v1731
    %2539 = vmatpush1.msra.mxu0 %v1730
    %2540 = vmatprep.subr.mxu0 %v1729
    %2541 = vmatpush1.msra.mxu0 %v1728
    %2542 = vmatprep.subr.mxu0 %v1727
    %2543 = vmatpush1.msra.mxu0 %v1726
    %2544 = vmatprep.subr.mxu0 %v1725
    %2545 = vmatpush1.msra.mxu0 %v1724
    %2546 = vmatprep.subr.mxu0 %v1723
    %2547 = vmatpush1.msra.mxu0 %v1722
    %2548 = vmatprep.subr.mxu0 0.0
    %2549 = vmatpush2.msra.mxu0 0.0
    %2550 = vmatprep.subr.mxu0 0.0
    %2551 = vmatpush2.msra.mxu0 0.0
    %2552 = vmatprep.subr.mxu0 0.0
    %2553 = vmatpush2.msra.mxu0 0.0
    %2554 = vmatprep.subr.mxu0 0.0
    %2555 = vmatpush2.msra.mxu0 0.0
    %2556 = vmatprep.subr.mxu0 0.0
    %2557 = vmatpush2.msra.mxu0 0.0
    %2558 = vmatprep.subr.mxu0 0.0
    %2559 = vmatpush2.msra.mxu0 0.0
    %2560 = vmatprep.subr.mxu0 0.0
    %2561 = vmatpush2.msra.mxu0 0.0
    %2562 = vmatprep.subr.mxu0 0.0
    %2563 = vmatpush2.msra.mxu0 0.0
    %2564 = vmatprep.subr.mxu0 0.0
    %2565 = vmatpush2.msra.mxu0 0.0
    %2566 = vmatprep.subr.mxu0 0.0
    %2567 = vmatpush2.msra.mxu0 0.0
    %2568 = vmatprep.subr.mxu0 0.0
    %2569 = vmatpush2.msra.mxu0 0.0
    %2570 = vmatprep.subr.mxu0 0.0
    %2571 = vmatpush2.msra.mxu0 0.0
    %2572 = vmatprep.subr.mxu0 0.0
    %2573 = vmatpush2.msra.mxu0 0.0
    %2574 = vmatprep.subr.mxu0 0.0
    %2575 = vmatpush2.msra.mxu0 0.0
    %2576 = vmatprep.subr.mxu0 0.0
    %2577 = vmatpush2.msra.mxu0 0.0
    %2578 = vmatprep.subr.mxu0 0.0
    %2579 = vmatpush2.msra.mxu0 0.0
    %2580 = vmatprep.mubr.f32.mxu0 0.0
    %2581 = vmatmul.mubr.f32.gmra.mxu0 %v2514
    %v2582 = vpop.f32.mrf.mxu0
    %v2583 = vadd.f32 %v1743, %v2582
    %v2584 = vpop.f32.mrf.mxu0
    %v2585 = vadd.f32 %v1747, %v2584
    %2586 = vdwg.mxu0
    %v2587 = vld [vmem:[%s715] sm:$0xff]
    %v2588 = vadd.f32 %v2587, %v2583
    %v2589 = vxor.u32 %v2588, 2147483648
    %v2590 = vmul.f32 %v2589, 1.442695
    %v2591 = vpow.pop %v2590
    %v2592 = vadd.f32 %v2591, 1.0
    %v2593 = vrcp.pop %v2592
    %v2594 = vmul.f32 1.0, %v2593
    %2596 = vrot.lane.b32.xlu0 %v2583, 64
    %v2597 = vpop.permute.xlu0 %2596
    %v2599 = vmul.f32 %v2594, %v2597
    %2601 = vrot.lane.b32.xlu0 %v2599, 64
    %v2602 = vpop.permute.xlu0 %2601
    %v2604 = vadd.f32 %v2587, %v2602
    %v2605 = vtanh.pop %v2604
    %v2606 = vsub.f32 1.0, %v2594
    %2608 = vrot.lane.b32.xlu0 %v2605, 96
    %v2609 = vpop.permute.xlu0 %2608
    %v2611 = vmul.f32 %v2606, %v2609
    %2612 = vrot.lane.b32.xlu0 %v2512, 32
    %v2613 = vpop.permute.xlu0 %2612
    %v2615 = vmul.f32 %v2594, %v2613
    %v2616 = vadd.f32 %v2611, %v2615
    %2618 = vrot.lane.b32.xlu0 %v2616, 96
    %v2619 = vpop.permute.xlu0 %2618
    %2621 = vst.msk [vmem:[%s2202] sm:$0xff] %vm101, %v2619
    %v2622 = vld [vmem:[%s676] sm:$0xff]
    %v2623 = vld [vmem:[%s676 + $0x8] sm:$0xff]
    %v2624 = vadd.f32 %v2622, %v2583
    %v2625 = vxor.u32 %v2624, 2147483648
    %v2626 = vmul.f32 %v2625, 1.442695
    %v2627 = vpow.pop %v2626
    %v2628 = vadd.f32 %v2627, 1.0
    %v2629 = vrcp.pop %v2628
    %v2630 = vmul.f32 1.0, %v2629
    %v2631 = vadd.f32 %v2623, %v2585
    %v2632 = vxor.u32 %v2631, 2147483648
    %v2633 = vmul.f32 %v2632, 1.442695
    %v2634 = vpow.pop %v2633
    %v2635 = vadd.f32 %v2634, 1.0
    %v2636 = vrcp.pop %v2635
    %v2637 = vmul.f32 1.0, %v2636
    %2639 = vrot.lane.b32.xlu0 %v2585, 64
    %v2640 = vpop.permute.xlu0 %2639
    %v2642 = vmul.f32 %v2630, %v2640
    %2644 = vrot.lane.b32.xlu0 %v2642, 64
    %v2645 = vpop.permute.xlu0 %2644
    %v2647 = vadd.f32 %v2623, %v2645
    %v2648 = vtanh.pop %v2647
    %v2649 = vsub.f32 1.0, %v2637
    %2651 = vrot.lane.b32.xlu0 %v2648, 96
    %v2652 = vpop.permute.xlu0 %2651
    %v2654 = vmul.f32 %v2649, %v2652
    %2655 = vrot.lane.b32.xlu0 %v2512, 96
    %v2656 = vpop.permute.xlu0 %2655
    %v2658 = vmul.f32 %v2637, %v2656
    %v2659 = vadd.f32 %v2654, %v2658
    %2661 = vrot.lane.b32.xlu0 %v2659, 32
    %v2662 = vpop.permute.xlu0 %2661
    %2664 = vst.msk [vmem:[%s2158] sm:$0xff] %vm436, %v2662
    %v2665 = vsel %vm101, %v2619, %v2662
    %v2667 = vsel %vm240, %v2665, 0
    %2669 = vmatprep.subr.mxu0 0.0
    %2670 = vmatpush1.msra.mxu0 0.0
    %2671 = vmatprep.subr.mxu0 0.0
    %2672 = vmatpush1.msra.mxu0 0.0
    %2673 = vmatprep.subr.mxu0 0.0
    %2674 = vmatpush1.msra.mxu0 0.0
    %2675 = vmatprep.subr.mxu0 0.0
    %2676 = vmatpush1.msra.mxu0 0.0
    %2677 = vmatprep.subr.mxu0 0.0
    %2678 = vmatpush1.msra.mxu0 0.0
    %2679 = vmatprep.subr.mxu0 0.0
    %2680 = vmatpush1.msra.mxu0 0.0
    %2681 = vmatprep.subr.mxu0 0.0
    %2682 = vmatpush1.msra.mxu0 0.0
    %2683 = vmatprep.subr.mxu0 0.0
    %2684 = vmatpush1.msra.mxu0 0.0
    %2685 = vmatprep.subr.mxu0 %v1737
    %2686 = vmatpush1.msra.mxu0 %v1736
    %2687 = vmatprep.subr.mxu0 %v1735
    %2688 = vmatpush1.msra.mxu0 %v1734
    %2689 = vmatprep.subr.mxu0 %v1733
    %2690 = vmatpush1.msra.mxu0 %v1732
    %2691 = vmatprep.subr.mxu0 %v1731
    %2692 = vmatpush1.msra.mxu0 %v1730
    %2693 = vmatprep.subr.mxu0 %v1729
    %2694 = vmatpush1.msra.mxu0 %v1728
    %2695 = vmatprep.subr.mxu0 %v1727
    %2696 = vmatpush1.msra.mxu0 %v1726
    %2697 = vmatprep.subr.mxu0 %v1725
    %2698 = vmatpush1.msra.mxu0 %v1724
    %2699 = vmatprep.subr.mxu0 %v1723
    %2700 = vmatpush1.msra.mxu0 %v1722
    %2701 = vmatprep.subr.mxu0 0.0
    %2702 = vmatpush2.msra.mxu0 0.0
    %2703 = vmatprep.subr.mxu0 0.0
    %2704 = vmatpush2.msra.mxu0 0.0
    %2705 = vmatprep.subr.mxu0 0.0
    %2706 = vmatpush2.msra.mxu0 0.0
    %2707 = vmatprep.subr.mxu0 0.0
    %2708 = vmatpush2.msra.mxu0 0.0
    %2709 = vmatprep.subr.mxu0 0.0
    %2710 = vmatpush2.msra.mxu0 0.0
    %2711 = vmatprep.subr.mxu0 0.0
    %2712 = vmatpush2.msra.mxu0 0.0
    %2713 = vmatprep.subr.mxu0 0.0
    %2714 = vmatpush2.msra.mxu0 0.0
    %2715 = vmatprep.subr.mxu0 0.0
    %2716 = vmatpush2.msra.mxu0 0.0
    %2717 = vmatprep.subr.mxu0 0.0
    %2718 = vmatpush2.msra.mxu0 0.0
    %2719 = vmatprep.subr.mxu0 0.0
    %2720 = vmatpush2.msra.mxu0 0.0
    %2721 = vmatprep.subr.mxu0 0.0
    %2722 = vmatpush2.msra.mxu0 0.0
    %2723 = vmatprep.subr.mxu0 0.0
    %2724 = vmatpush2.msra.mxu0 0.0
    %2725 = vmatprep.subr.mxu0 0.0
    %2726 = vmatpush2.msra.mxu0 0.0
    %2727 = vmatprep.subr.mxu0 0.0
    %2728 = vmatpush2.msra.mxu0 0.0
    %2729 = vmatprep.subr.mxu0 0.0
    %2730 = vmatpush2.msra.mxu0 0.0
    %2731 = vmatprep.subr.mxu0 0.0
    %2732 = vmatpush2.msra.mxu0 0.0
    %2733 = vmatprep.mubr.f32.mxu0 0.0
    %2734 = vmatmul.mubr.f32.gmra.mxu0 %v2667
    %v2735 = vpop.f32.mrf.mxu0
    %v2736 = vadd.f32 %v1743, %v2735
    %v2737 = vpop.f32.mrf.mxu0
    %v2738 = vadd.f32 %v1747, %v2737
    %2739 = vdwg.mxu0
    %v2740 = vld [vmem:[%s554] sm:$0xff]
    %v2741 = vadd.f32 %v2740, %v2736
    %v2742 = vxor.u32 %v2741, 2147483648
    %v2743 = vmul.f32 %v2742, 1.442695
    %v2744 = vpow.pop %v2743
    %v2745 = vadd.f32 %v2744, 1.0
    %v2746 = vrcp.pop %v2745
    %v2747 = vmul.f32 1.0, %v2746
    %2749 = vrot.lane.b32.xlu0 %v2736, 64
    %v2750 = vpop.permute.xlu0 %2749
    %v2752 = vmul.f32 %v2747, %v2750
    %2754 = vrot.lane.b32.xlu0 %v2752, 64
    %v2755 = vpop.permute.xlu0 %2754
    %v2757 = vadd.f32 %v2740, %v2755
    %v2758 = vtanh.pop %v2757
    %v2759 = vsub.f32 1.0, %v2747
    %2761 = vrot.lane.b32.xlu0 %v2758, 96
    %v2762 = vpop.permute.xlu0 %2761
    %v2764 = vmul.f32 %v2759, %v2762
    %2765 = vrot.lane.b32.xlu0 %v2665, 32
    %v2766 = vpop.permute.xlu0 %2765
    %v2768 = vmul.f32 %v2747, %v2766
    %v2769 = vadd.f32 %v2764, %v2768
    %2771 = vrot.lane.b32.xlu0 %v2769, 96
    %v2772 = vpop.permute.xlu0 %2771
    %2774 = vst.msk [vmem:[%s2047] sm:$0xff] %vm101, %v2772
    %v2775 = vld [vmem:[%s515] sm:$0xff]
    %v2776 = vld [vmem:[%s515 + $0x8] sm:$0xff]
    %v2777 = vadd.f32 %v2775, %v2736
    %v2778 = vxor.u32 %v2777, 2147483648
    %v2779 = vmul.f32 %v2778, 1.442695
    %v2780 = vpow.pop %v2779
    %v2781 = vadd.f32 %v2780, 1.0
    %v2782 = vrcp.pop %v2781
    %v2783 = vmul.f32 1.0, %v2782
    %v2784 = vadd.f32 %v2776, %v2738
    %v2785 = vxor.u32 %v2784, 2147483648
    %v2786 = vmul.f32 %v2785, 1.442695
    %v2787 = vpow.pop %v2786
    %v2788 = vadd.f32 %v2787, 1.0
    %v2789 = vrcp.pop %v2788
    %v2790 = vmul.f32 1.0, %v2789
    %2792 = vrot.lane.b32.xlu0 %v2738, 64
    %v2793 = vpop.permute.xlu0 %2792
    %v2795 = vmul.f32 %v2783, %v2793
    %2797 = vrot.lane.b32.xlu0 %v2795, 64
    %v2798 = vpop.permute.xlu0 %2797
    %v2800 = vadd.f32 %v2776, %v2798
    %v2801 = vtanh.pop %v2800
    %v2802 = vsub.f32 1.0, %v2790
    %2804 = vrot.lane.b32.xlu0 %v2801, 96
    %v2805 = vpop.permute.xlu0 %2804
    %v2807 = vmul.f32 %v2802, %v2805
    %2808 = vrot.lane.b32.xlu0 %v2665, 96
    %v2809 = vpop.permute.xlu0 %2808
    %v2811 = vmul.f32 %v2790, %v2809
    %v2812 = vadd.f32 %v2807, %v2811
    %2814 = vrot.lane.b32.xlu0 %v2812, 32
    %v2815 = vpop.permute.xlu0 %2814
    %2817 = vst.msk [vmem:[%s2003] sm:$0xff] %vm436, %v2815
    %v2818 = vsel %vm101, %v2772, %v2815
    %v2820 = vsel %vm240, %v2818, 0
    %2822 = vmatprep.subr.mxu0 0.0
    %2823 = vmatpush1.msra.mxu0 0.0
    %2824 = vmatprep.subr.mxu0 0.0
    %2825 = vmatpush1.msra.mxu0 0.0
    %2826 = vmatprep.subr.mxu0 0.0
    %2827 = vmatpush1.msra.mxu0 0.0
    %2828 = vmatprep.subr.mxu0 0.0
    %2829 = vmatpush1.msra.mxu0 0.0
    %2830 = vmatprep.subr.mxu0 0.0
    %2831 = vmatpush1.msra.mxu0 0.0
    %2832 = vmatprep.subr.mxu0 0.0
    %2833 = vmatpush1.msra.mxu0 0.0
    %2834 = vmatprep.subr.mxu0 0.0
    %2835 = vmatpush1.msra.mxu0 0.0
    %2836 = vmatprep.subr.mxu0 0.0
    %2837 = vmatpush1.msra.mxu0 0.0
    %2838 = vmatprep.subr.mxu0 %v1737
    %2839 = vmatpush1.msra.mxu0 %v1736
    %2840 = vmatprep.subr.mxu0 %v1735
    %2841 = vmatpush1.msra.mxu0 %v1734
    %2842 = vmatprep.subr.mxu0 %v1733
    %2843 = vmatpush1.msra.mxu0 %v1732
    %2844 = vmatprep.subr.mxu0 %v1731
    %2845 = vmatpush1.msra.mxu0 %v1730
    %2846 = vmatprep.subr.mxu0 %v1729
    %2847 = vmatpush1.msra.mxu0 %v1728
    %2848 = vmatprep.subr.mxu0 %v1727
    %2849 = vmatpush1.msra.mxu0 %v1726
    %2850 = vmatprep.subr.mxu0 %v1725
    %2851 = vmatpush1.msra.mxu0 %v1724
    %2852 = vmatprep.subr.mxu0 %v1723
    %2853 = vmatpush1.msra.mxu0 %v1722
    %2854 = vmatprep.subr.mxu0 0.0
    %2855 = vmatpush2.msra.mxu0 0.0
    %2856 = vmatprep.subr.mxu0 0.0
    %2857 = vmatpush2.msra.mxu0 0.0
    %2858 = vmatprep.subr.mxu0 0.0
    %2859 = vmatpush2.msra.mxu0 0.0
    %2860 = vmatprep.subr.mxu0 0.0
    %2861 = vmatpush2.msra.mxu0 0.0
    %2862 = vmatprep.subr.mxu0 0.0
    %2863 = vmatpush2.msra.mxu0 0.0
    %2864 = vmatprep.subr.mxu0 0.0
    %2865 = vmatpush2.msra.mxu0 0.0
    %2866 = vmatprep.subr.mxu0 0.0
    %2867 = vmatpush2.msra.mxu0 0.0
    %2868 = vmatprep.subr.mxu0 0.0
    %2869 = vmatpush2.msra.mxu0 0.0
    %2870 = vmatprep.subr.mxu0 0.0
    %2871 = vmatpush2.msra.mxu0 0.0
    %2872 = vmatprep.subr.mxu0 0.0
    %2873 = vmatpush2.msra.mxu0 0.0
    %2874 = vmatprep.subr.mxu0 0.0
    %2875 = vmatpush2.msra.mxu0 0.0
    %2876 = vmatprep.subr.mxu0 0.0
    %2877 = vmatpush2.msra.mxu0 0.0
    %2878 = vmatprep.subr.mxu0 0.0
    %2879 = vmatpush2.msra.mxu0 0.0
    %2880 = vmatprep.subr.mxu0 0.0
    %2881 = vmatpush2.msra.mxu0 0.0
    %2882 = vmatprep.subr.mxu0 0.0
    %2883 = vmatpush2.msra.mxu0 0.0
    %2884 = vmatprep.subr.mxu0 0.0
    %2885 = vmatpush2.msra.mxu0 0.0
    %2886 = vmatprep.mubr.f32.mxu0 0.0
    %2887 = vmatmul.mubr.f32.gmra.mxu0 %v2820
    %v2888 = vpop.f32.mrf.mxu0
    %v2889 = vadd.f32 %v1743, %v2888
    %v2890 = vpop.f32.mrf.mxu0
    %v2891 = vadd.f32 %v1747, %v2890
    %2892 = vdwg.mxu0
    %v2893 = vld [vmem:[%s395] sm:$0xff]
    %v2894 = vadd.f32 %v2893, %v2889
    %v2895 = vxor.u32 %v2894, 2147483648
    %v2896 = vmul.f32 %v2895, 1.442695
    %v2897 = vpow.pop %v2896
    %v2898 = vadd.f32 %v2897, 1.0
    %v2899 = vrcp.pop %v2898
    %v2900 = vmul.f32 1.0, %v2899
    %2902 = vrot.lane.b32.xlu0 %v2889, 64
    %v2903 = vpop.permute.xlu0 %2902
    %v2905 = vmul.f32 %v2900, %v2903
    %2907 = vrot.lane.b32.xlu0 %v2905, 64
    %v2908 = vpop.permute.xlu0 %2907
    %v2910 = vadd.f32 %v2893, %v2908
    %v2911 = vtanh.pop %v2910
    %v2912 = vsub.f32 1.0, %v2900
    %2914 = vrot.lane.b32.xlu0 %v2911, 96
    %v2915 = vpop.permute.xlu0 %2914
    %v2917 = vmul.f32 %v2912, %v2915
    %2918 = vrot.lane.b32.xlu0 %v2818, 32
    %v2919 = vpop.permute.xlu0 %2918
    %v2921 = vmul.f32 %v2900, %v2919
    %v2922 = vadd.f32 %v2917, %v2921
    %2924 = vrot.lane.b32.xlu0 %v2922, 96
    %v2925 = vpop.permute.xlu0 %2924
    %2927 = vst.msk [vmem:[%s1892] sm:$0xff] %vm101, %v2925
    %v2928 = vld [vmem:[%s360] sm:$0xff]
    %v2929 = vld [vmem:[%s360 + $0x8] sm:$0xff]
    %v2930 = vadd.f32 %v2928, %v2889
    %v2931 = vxor.u32 %v2930, 2147483648
    %v2932 = vmul.f32 %v2931, 1.442695
    %v2933 = vpow.pop %v2932
    %v2934 = vadd.f32 %v2933, 1.0
    %v2935 = vrcp.pop %v2934
    %v2936 = vmul.f32 1.0, %v2935
    %v2937 = vadd.f32 %v2929, %v2891
    %v2938 = vxor.u32 %v2937, 2147483648
    %v2939 = vmul.f32 %v2938, 1.442695
    %v2940 = vpow.pop %v2939
    %v2941 = vadd.f32 %v2940, 1.0
    %v2942 = vrcp.pop %v2941
    %v2943 = vmul.f32 1.0, %v2942
    %2945 = vrot.lane.b32.xlu0 %v2891, 64
    %v2946 = vpop.permute.xlu0 %2945
    %v2948 = vmul.f32 %v2936, %v2946
    %2950 = vrot.lane.b32.xlu0 %v2948, 64
    %v2951 = vpop.permute.xlu0 %2950
    %v2953 = vadd.f32 %v2929, %v2951
    %v2954 = vtanh.pop %v2953
    %v2955 = vsub.f32 1.0, %v2943
    %2957 = vrot.lane.b32.xlu0 %v2954, 96
    %v2958 = vpop.permute.xlu0 %2957
    %v2960 = vmul.f32 %v2955, %v2958
    %2961 = vrot.lane.b32.xlu0 %v2818, 96
    %v2962 = vpop.permute.xlu0 %2961
    %v2964 = vmul.f32 %v2943, %v2962
    %v2965 = vadd.f32 %v2960, %v2964
    %2967 = vrot.lane.b32.xlu0 %v2965, 32
    %v2968 = vpop.permute.xlu0 %2967
    %2970 = vst.msk [vmem:[%s9] sm:$0xff] %vm436, %v2968
    // Predicated region
    $region50: #{forward.1} parent=1 // pred_check
      _
    $region51: #{forward.1} parent=1 // pred_check_branch
      %2972 = sbr.rel (0) target = $region53
    $region52: #{forward.1} parent=1 // pred_region
      _
    $region53: #{forward.1} parent=1 // pred_fallthru
      _
    // Predicated region
    $region54: #{forward.1} parent=1 // pred_check
      _
    $region55: #{forward.1} parent=1 // pred_check_branch
      %2974 = sbr.rel (0) target = $region57
    $region56: #{forward.1} parent=1 // pred_region
      _
    $region57: #{forward.1} parent=1 // pred_fallthru
      _
    %2975 = vsyncpa [#allocation5], 1
    %2976 = vsyncpa [#allocation7], 1

</llo_original>
